<compile_context>
chip_gen: v7x
topology: tpu7x:2x2x1
jax: 0.10.0
libtpu: 0.0.40
codegen_flags: <defaults>
</compile_context>

<pallas_src>
import jax
import jax.numpy as jnp
from jax.experimental import pallas as pl
from jax.experimental.pallas import tpu as pltpu

INPUT_SIZE = 784
HIDDEN_SIZE = 500
NUM_CLASSES = 10

HIDDEN_PAD = 512        # hidden dim rounded up to a multiple of 128 (lane width)
OUT_PAD = 128           # logits padded to one full lane group (unmasked stores)
MAX_BATCH_TILE = 1024   # target rows per grid step for large batches
SMALL_BATCH = 512       # batches at/below this run as a single (8-aligned) tile
MIN_GRID_STEPS = 4      # keep >=4 steps for large batches (v7x dual-TC sharding)


def _round_up(n, m):
    return ((n + m - 1) // m) * m


def _cdiv(a, b):
    return -(-a // b)


def _choose_tile(B):
    """Pick the batch tile (static, from x.shape).

    Small batches: one 8-aligned tile (pipeline overhead dominates; splitting
    tiny work across grid steps just adds per-step cost).
    Large batches: aim for ~MAX_BATCH_TILE rows per step but keep at least
    MIN_GRID_STEPS steps (v7x has 2 TensorCores) and derive the tile from the
    step count so batch-row padding stays at a few percent, not ~2x.
    """
    Bp8 = _round_up(B, 8)
    if Bp8 <= SMALL_BATCH:
        return Bp8
    n_steps = max(MIN_GRID_STEPS, _cdiv(Bp8, MAX_BATCH_TILE))
    return _round_up(_cdiv(Bp8, n_steps), 8)


def preprocess_params(w1, b1, w2, b2, w3, b3):
    """One-time parameter prep (hoisted out of the forward).

    Pads the hidden dim 500->512 and the output dim 10->128 with zeros
    (mathematically inert through ReLU and the final matmul) and casts the
    weights to bf16 for the MXU. Biases stay f32 (added to the f32 accumulator).
    Weights are stored [in, out] so the kernel computes x @ W + b directly.
    """
    hp = HIDDEN_PAD - HIDDEN_SIZE
    op = OUT_PAD - NUM_CLASSES
    w1p = jnp.pad(w1, ((0, 0), (0, hp))).astype(jnp.bfloat16)
    b1p = jnp.pad(b1, ((0, 0), (0, hp)))
    w2p = jnp.pad(w2, ((0, hp), (0, hp))).astype(jnp.bfloat16)
    b2p = jnp.pad(b2, ((0, 0), (0, hp)))
    w3p = jnp.pad(w3, ((0, hp), (0, op))).astype(jnp.bfloat16)
    b3p = jnp.pad(b3, ((0, 0), (0, op)))
    return w1p, b1p, w2p, b2p, w3p, b3p


def mlp_kernel(x_ref, w1_ref, b1_ref, w2_ref, b2_ref, w3_ref, b3_ref, out_ref):
    # In-kernel f32 -> bf16 cast of the activations (hides under MXU work;
    # avoids a separate un-fusable XLA cast pass over x in the wrapper).
    xb = x_ref[...].astype(jnp.bfloat16)
    # fc1 + ReLU (bf16 operands, f32 accumulation on the MXU)
    h1 = jnp.dot(xb, w1_ref[...], preferred_element_type=jnp.float32)
    h1 = jnp.maximum(h1 + b1_ref[...], 0.0)
    # fc2 + ReLU
    h2 = jnp.dot(h1.astype(w2_ref.dtype), w2_ref[...],
                 preferred_element_type=jnp.float32)
    h2 = jnp.maximum(h2 + b2_ref[...], 0.0)
    # fc3 (no activation); output block is lane-dense (128 wide), padded cols
    # carry zero weights/biases and are sliced off in the wrapper.
    h3 = jnp.dot(h2.astype(w3_ref.dtype), w3_ref[...],
                 preferred_element_type=jnp.float32)
    out_ref[...] = (h3 + b3_ref[...]).astype(out_ref.dtype)


def neural_net_forward(x, w1p, b1p, w2p, b2p, w3p, b3p):
    """Forward pass of NeuralNet.

    x: [B, 784] float32. Remaining args are the *preprocessed* (padded, bf16)
    parameters from `preprocess_params`. Returns [B, 10] float32 logits.
    """
    B = x.shape[0]
    tile = _choose_tile(B)
    Bp = _round_up(B, tile)
    if Bp != B:
        # Padding fraction is kept small by _choose_tile (tile derived from the
        # step count, not the other way around).
        x = jnp.pad(x, ((0, Bp - B), (0, 0)))

    grid = (Bp // tile,)

    def resident(shape):
        # Grid-invariant operand: constant index_map, single-buffered to save VMEM.
        return pl.BlockSpec(shape, lambda i: (0, 0), pipeline_mode=pl.Buffered(1))

    out = pl.pallas_call(
        mlp_kernel,
        out_shape=jax.ShapeDtypeStruct((Bp, OUT_PAD), jnp.float32),
        grid_spec=pltpu.PrefetchScalarGridSpec(
            num_scalar_prefetch=0,
            grid=grid,
            in_specs=[
                pl.BlockSpec((tile, INPUT_SIZE), lambda i: (i, 0)),   # x (f32)
                resident((INPUT_SIZE, HIDDEN_PAD)),                   # w1 (bf16)
                resident((1, HIDDEN_PAD)),                            # b1 (f32)
                resident((HIDDEN_PAD, HIDDEN_PAD)),                   # w2 (bf16)
                resident((1, HIDDEN_PAD)),                            # b2 (f32)
                resident((HIDDEN_PAD, OUT_PAD)),                      # w3 (bf16)
                resident((1, OUT_PAD)),                               # b3 (f32)
            ],
            out_specs=pl.BlockSpec((tile, OUT_PAD), lambda i: (i, 0)),
        ),
        compiler_params=pltpu.CompilerParams(
            dimension_semantics=("parallel",),
            vmem_limit_bytes=48 * 1024 * 1024,  # <= v7x's 64 MiB physical VMEM
        ),
    )(x, w1p, b1p, w2p, b2p, w3p, b3p)

    return out[:B, :NUM_CLASSES]


def init_params(key):
    # Deterministic synthetic init (uniform, scaled like PyTorch's default 1/sqrt(fan_in)).
    k1, k2, k3, k4, k5, k6 = jax.random.split(key, 6)

    def lin(kw, kb, fan_in, fan_out):
        bound = 1.0 / jnp.sqrt(jnp.float32(fan_in))
        w = jax.random.uniform(kw, (fan_in, fan_out), jnp.float32, -bound, bound)
        b = jax.random.uniform(kb, (1, fan_out), jnp.float32, -bound, bound)
        return w, b

    w1, b1 = lin(k1, k2, INPUT_SIZE, HIDDEN_SIZE)
    w2, b2 = lin(k3, k4, HIDDEN_SIZE, HIDDEN_SIZE)
    w3, b3 = lin(k5, k6, HIDDEN_SIZE, NUM_CLASSES)
    return w1, b1, w2, b2, w3, b3


if __name__ == "__main__":
    key = jax.random.PRNGKey(0)
    kx, kp = jax.random.split(key)

    # Small batch, deliberately not a multiple of 8/128: exercises tile selection
    # and the (small) batch-row padding path.
    batch = 300
    x = jax.random.normal(kx, (batch, INPUT_SIZE), jnp.float32)
    params = init_params(kp)

    # One-time parameter preprocessing (pad + bf16 cast), hoisted out of forward.
    pparams = preprocess_params(*params)

    fwd = jax.jit(neural_net_forward)
    out = jax.block_until_ready(fwd(x, *pparams))

    # Pure-JAX f32 reference (kernel uses bf16 matmul operands -> loose tolerance).
    w1, b1, w2, b2, w3, b3 = params
    ref = jnp.maximum(x @ w1 + b1, 0.0)
    ref = jnp.maximum(ref @ w2 + b2, 0.0)
    ref = ref @ w3 + b3
    assert out.shape == (batch, NUM_CLASSES)
    assert jnp.allclose(out, ref, atol=2e-2, rtol=2e-2), float(jnp.max(jnp.abs(out - ref)))

    print("KERNEL_OK")
</pallas_src>

<mosaic_0001>
module attributes {stable_mosaic.version = 11 : i64} {
  func.func @mlp_kernel(%arg0: i32, %arg1: memref<304x784xf32, #tpu.memory_space<vmem>>, %arg2: memref<784x512xbf16, #tpu.memory_space<vmem>>, %arg3: memref<1x512xf32, #tpu.memory_space<vmem>>, %arg4: memref<512x512xbf16, #tpu.memory_space<vmem>>, %arg5: memref<1x512xf32, #tpu.memory_space<vmem>>, %arg6: memref<512x128xbf16, #tpu.memory_space<vmem>>, %arg7: memref<1x128xf32, #tpu.memory_space<vmem>>, %arg8: memref<304x128xf32, #tpu.memory_space<vmem>>) attributes {dimension_semantics = [#tpu.dimension_semantics<parallel>], iteration_bounds = array<i64: 1>, scalar_prefetch = 0 : i64, scratch_operands = 0 : i64, tpu.core_type = #tpu.core_type<tc>, window_params = [{transform_indices = @transform_0, window_bounds = array<i64: 304, 784>}, {pipeline_mode = #tpu.pipeline_mode<synchronous>, transform_indices = @transform_1, window_bounds = array<i64: 784, 512>}, {pipeline_mode = #tpu.pipeline_mode<synchronous>, transform_indices = @transform_2, window_bounds = array<i64: 1, 512>}, {pipeline_mode = #tpu.pipeline_mode<synchronous>, transform_indices = @transform_3, window_bounds = array<i64: 512, 512>}, {pipeline_mode = #tpu.pipeline_mode<synchronous>, transform_indices = @transform_4, window_bounds = array<i64: 1, 512>}, {pipeline_mode = #tpu.pipeline_mode<synchronous>, transform_indices = @transform_5, window_bounds = array<i64: 512, 128>}, {pipeline_mode = #tpu.pipeline_mode<synchronous>, transform_indices = @transform_6, window_bounds = array<i64: 1, 128>}, {transform_indices = @transform_7, window_bounds = array<i64: 304, 128>}]} {
    %c0 = arith.constant 0 : index
    %c0_0 = arith.constant 0 : index
    %0 = vector.load %arg1[%c0, %c0_0] : memref<304x784xf32, #tpu.memory_space<vmem>>, vector<304x784xf32>
    %1 = arith.truncf %0 : vector<304x784xf32> to vector<304x784xbf16>
    %c0_1 = arith.constant 0 : index
    %c0_2 = arith.constant 0 : index
    %2 = vector.load %arg2[%c0_1, %c0_2] : memref<784x512xbf16, #tpu.memory_space<vmem>>, vector<784x512xbf16>
    %cst = arith.constant dense<0.000000e+00> : vector<304x512xf32>
    %3 = tpu.matmul %1, %2, %cst {dimension_numbers = #tpu.dot_dimension_numbers<[1], [0], [0], [1], [0, 0, 1, 1], [], []>} : vector<304x784xbf16>, vector<784x512xbf16>, vector<304x512xf32> -> vector<304x512xf32>
    %c0_3 = arith.constant 0 : index
    %c0_4 = arith.constant 0 : index
    %4 = vector.load %arg3[%c0_3, %c0_4] : memref<1x512xf32, #tpu.memory_space<vmem>>, vector<1x512xf32>
    %5 = vector.broadcast %4 : vector<1x512xf32> to vector<304x512xf32>
    %6 = arith.addf %3, %5 : vector<304x512xf32>
    %cst_5 = arith.constant 0.000000e+00 : f32
    %7 = vector.broadcast %cst_5 : f32 to vector<304x512xf32>
    %8 = arith.maximumf %6, %7 : vector<304x512xf32>
    %9 = arith.truncf %8 : vector<304x512xf32> to vector<304x512xbf16>
    %c0_6 = arith.constant 0 : index
    %c0_7 = arith.constant 0 : index
    %10 = vector.load %arg4[%c0_6, %c0_7] : memref<512x512xbf16, #tpu.memory_space<vmem>>, vector<512x512xbf16>
    %cst_8 = arith.constant dense<0.000000e+00> : vector<304x512xf32>
    %11 = tpu.matmul %9, %10, %cst_8 {dimension_numbers = #tpu.dot_dimension_numbers<[1], [0], [0], [1], [0, 0, 1, 1], [], []>} : vector<304x512xbf16>, vector<512x512xbf16>, vector<304x512xf32> -> vector<304x512xf32>
    %c0_9 = arith.constant 0 : index
    %c0_10 = arith.constant 0 : index
    %12 = vector.load %arg5[%c0_9, %c0_10] : memref<1x512xf32, #tpu.memory_space<vmem>>, vector<1x512xf32>
    %13 = vector.broadcast %12 : vector<1x512xf32> to vector<304x512xf32>
    %14 = arith.addf %11, %13 : vector<304x512xf32>
    %cst_11 = arith.constant 0.000000e+00 : f32
    %15 = vector.broadcast %cst_11 : f32 to vector<304x512xf32>
    %16 = arith.maximumf %14, %15 : vector<304x512xf32>
    %17 = arith.truncf %16 : vector<304x512xf32> to vector<304x512xbf16>
    %c0_12 = arith.constant 0 : index
    %c0_13 = arith.constant 0 : index
    %18 = vector.load %arg6[%c0_12, %c0_13] : memref<512x128xbf16, #tpu.memory_space<vmem>>, vector<512x128xbf16>
    %cst_14 = arith.constant dense<0.000000e+00> : vector<304x128xf32>
    %19 = tpu.matmul %17, %18, %cst_14 {dimension_numbers = #tpu.dot_dimension_numbers<[1], [0], [0], [1], [0, 0, 1, 1], [], []>} : vector<304x512xbf16>, vector<512x128xbf16>, vector<304x128xf32> -> vector<304x128xf32>
    %c0_15 = arith.constant 0 : index
    %c0_16 = arith.constant 0 : index
    %20 = vector.load %arg7[%c0_15, %c0_16] : memref<1x128xf32, #tpu.memory_space<vmem>>, vector<1x128xf32>
    %21 = vector.broadcast %20 : vector<1x128xf32> to vector<304x128xf32>
    %22 = arith.addf %19, %21 : vector<304x128xf32>
    %c0_17 = arith.constant 0 : index
    %c0_18 = arith.constant 0 : index
    %23 = vector.load %arg8[%c0_17, %c0_18] : memref<304x128xf32, #tpu.memory_space<vmem>>, vector<304x128xf32>
    tpu.vector_store %arg8[%c0_17, %c0_18], %22 {strides = array<i32>} : memref<304x128xf32, #tpu.memory_space<vmem>>, vector<304x128xf32>,
    return
  }
  func.func @transform_0(%arg0: i32) -> (i32, i32) {
    %c0_i32 = arith.constant 0 : i32
    %c0_i32_0 = arith.constant 0 : i32
    return %arg0, %c0_i32 : i32, i32
  }
  func.func @transform_1(%arg0: i32) -> (i32, i32) {
    %c0_i32 = arith.constant 0 : i32
    %c0_i32_0 = arith.constant 0 : i32
    %c0_i32_1 = arith.constant 0 : i32
    return %c0_i32, %c0_i32_0 : i32, i32
  }
  func.func @transform_2(%arg0: i32) -> (i32, i32) {
    %c0_i32 = arith.constant 0 : i32
    %c0_i32_0 = arith.constant 0 : i32
    %c0_i32_1 = arith.constant 0 : i32
    return %c0_i32, %c0_i32_0 : i32, i32
  }
  func.func @transform_3(%arg0: i32) -> (i32, i32) {
    %c0_i32 = arith.constant 0 : i32
    %c0_i32_0 = arith.constant 0 : i32
    %c0_i32_1 = arith.constant 0 : i32
    return %c0_i32, %c0_i32_0 : i32, i32
  }
  func.func @transform_4(%arg0: i32) -> (i32, i32) {
    %c0_i32 = arith.constant 0 : i32
    %c0_i32_0 = arith.constant 0 : i32
    %c0_i32_1 = arith.constant 0 : i32
    return %c0_i32, %c0_i32_0 : i32, i32
  }
  func.func @transform_5(%arg0: i32) -> (i32, i32) {
    %c0_i32 = arith.constant 0 : i32
    %c0_i32_0 = arith.constant 0 : i32
    %c0_i32_1 = arith.constant 0 : i32
    return %c0_i32, %c0_i32_0 : i32, i32
  }
  func.func @transform_6(%arg0: i32) -> (i32, i32) {
    %c0_i32 = arith.constant 0 : i32
    %c0_i32_0 = arith.constant 0 : i32
    %c0_i32_1 = arith.constant 0 : i32
    return %c0_i32, %c0_i32_0 : i32, i32
  }
  func.func @transform_7(%arg0: i32) -> (i32, i32) {
    %c0_i32 = arith.constant 0 : i32
    %c0_i32_0 = arith.constant 0 : i32
    return %arg0, %c0_i32 : i32, i32
  }
}

</mosaic_0001>

<llo_original>
// kernel: neural_net_forward.1
$region0: #{neural_net_forward.1}
  #allocation0 [shape = 'u32[]', space=smem, size = 0x4, offset = 0x4, fixed_abs, tag = 'smem constant byte address 0x4 - core index']
  #allocation1 [shape = 'u32[144,128]{1,0:T(1,128)}', space=vmem, size = 0x12000, scoped, tag = 'internal scratch']
  %s0 = inlined_call_operand.vmem [shape: f32[304,784], index: 0, kind: input, shape index: {}]
  %s1 = inlined_call_operand.vmem [shape: bf16[784,512], index: 1, kind: input, shape index: {}]
  %s2 = inlined_call_operand.vmem [shape: f32[1,512], index: 2, kind: input, shape index: {}]
  %s3 = inlined_call_operand.vmem [shape: bf16[512,512], index: 3, kind: input, shape index: {}]
  %s4 = inlined_call_operand.vmem [shape: f32[1,512], index: 4, kind: input, shape index: {}]
  %s5 = inlined_call_operand.vmem [shape: bf16[512,128], index: 5, kind: input, shape index: {}]
  %s6 = inlined_call_operand.vmem [shape: f32[1,128], index: 6, kind: input, shape index: {}]
  %s7 = inlined_call_operand.vmem [shape: f32[304,128], index: 7, kind: output, shape index: {}]
  %s8 = sld [smem:[#allocation0]]
  $region38: #{neural_net_forward.1} parent=0
    _
  %s10 = ssub.s32 1, %s8
  %s11 = scalar_select 0, %s10, %s8
  // Predicated region
  $region2: #{neural_net_forward.1} parent=0 // pred_check
    _
  $region3: #{neural_net_forward.1} parent=0 // pred_check_branch
    %13 = sbr.rel (0) target = $region5
  $region4: #{neural_net_forward.1} parent=0 // pred_region
    _
  $region5: #{neural_net_forward.1} parent=0 // pred_fallthru
    _
  // Predicated region
  $region6: #{neural_net_forward.1} parent=0 // pred_check
    _
  $region7: #{neural_net_forward.1} parent=0 // pred_check_branch
    %15 = sbr.rel (0) target = $region9
  $region8: #{neural_net_forward.1} parent=0 // pred_region
    _
  $region9: #{neural_net_forward.1} parent=0 // pred_fallthru
    _
  // Predicated region
  $region10: #{neural_net_forward.1} parent=0 // pred_check
    _
  $region11: #{neural_net_forward.1} parent=0 // pred_check_branch
    %17 = sbr.rel (0) target = $region13
  $region12: #{neural_net_forward.1} parent=0 // pred_region
    _
  $region13: #{neural_net_forward.1} parent=0 // pred_fallthru
    _
  // Predicated region
  $region14: #{neural_net_forward.1} parent=0 // pred_check
    _
  $region15: #{neural_net_forward.1} parent=0 // pred_check_branch
    %19 = sbr.rel (0) target = $region17
  $region16: #{neural_net_forward.1} parent=0 // pred_region
    _
  $region17: #{neural_net_forward.1} parent=0 // pred_fallthru
    _
  // Predicated region
  $region18: #{neural_net_forward.1} parent=0 // pred_check
    _
  $region19: #{neural_net_forward.1} parent=0 // pred_check_branch
    %21 = sbr.rel (0) target = $region21
  $region20: #{neural_net_forward.1} parent=0 // pred_region
    _
  $region21: #{neural_net_forward.1} parent=0 // pred_fallthru
    _
  // Predicated region
  $region22: #{neural_net_forward.1} parent=0 // pred_check
    _
  $region23: #{neural_net_forward.1} parent=0 // pred_check_branch
    %23 = sbr.rel (0) target = $region25
  $region24: #{neural_net_forward.1} parent=0 // pred_region
    _
  $region25: #{neural_net_forward.1} parent=0 // pred_fallthru
    _
  // Predicated region
  $region26: #{neural_net_forward.1} parent=0 // pred_check
    _
  $region27: #{neural_net_forward.1} parent=0 // pred_check_branch
    %25 = sbr.rel (0) target = $region29
  $region28: #{neural_net_forward.1} parent=0 // pred_region
    _
  $region29: #{neural_net_forward.1} parent=0 // pred_fallthru
    _
  %v27 = vld [vmem:[%s0] sm:$0xff]
  %v28 = vld [vmem:[%s0 + $0x8] sm:$0xff]
  %v29 = vld [vmem:[%s0 + $0x10] sm:$0xff]
  %v30 = vld [vmem:[%s0 + $0x18] sm:$0xff]
  %v31 = vld [vmem:[%s0 + $0x20] sm:$0xff]
  %v32 = vld [vmem:[%s0 + $0x28] sm:$0xff]
  %v33 = vld [vmem:[%s0 + $0x30] sm:$0xff]
  %v34 = vld [vmem:[%s0 + $0x38] sm:$0xff]
  %v35 = vld [vmem:[%s0 + $0x40] sm:$0xff]
  %v36 = vld [vmem:[%s0 + $0x48] sm:$0xff]
  %v37 = vld [vmem:[%s0 + $0x50] sm:$0xff]
  %v38 = vld [vmem:[%s0 + $0x58] sm:$0xff]
  %v39 = vld [vmem:[%s0 + $0x60] sm:$0xff]
  %v40 = vld [vmem:[%s0 + $0x68] sm:$0xff]
  %v41 = vld [vmem:[%s0 + $0x70] sm:$0xff]
  %v42 = vld [vmem:[%s0 + $0x78] sm:$0xff]
  %v43 = vld [vmem:[%s0 + $0x80] sm:$0xff]
  %v44 = vld [vmem:[%s0 + $0x88] sm:$0xff]
  %v45 = vld [vmem:[%s0 + $0x90] sm:$0xff]
  %v46 = vld [vmem:[%s0 + $0x98] sm:$0xff]
  %v47 = vld [vmem:[%s0 + $0xa0] sm:$0xff]
  %v48 = vld [vmem:[%s0 + $0xa8] sm:$0xff]
  %v49 = vld [vmem:[%s0 + $0xb0] sm:$0xff]
  %v50 = vld [vmem:[%s0 + $0xb8] sm:$0xff]
  %v51 = vld [vmem:[%s0 + $0xc0] sm:$0xff]
  %v52 = vld [vmem:[%s0 + $0xc8] sm:$0xff]
  %v53 = vld [vmem:[%s0 + $0xd0] sm:$0xff]
  %v54 = vld [vmem:[%s0 + $0xd8] sm:$0xff]
  %v55 = vld [vmem:[%s0 + $0xe0] sm:$0xff]
  %v56 = vld [vmem:[%s0 + $0xe8] sm:$0xff]
  %v57 = vld [vmem:[%s0 + $0xf0] sm:$0xff]
  %v58 = vld [vmem:[%s0 + $0xf8] sm:$0xff]
  %v59 = vld [vmem:[%s0 + $0x100] sm:$0xff]
  %v60 = vld [vmem:[%s0 + $0x108] sm:$0xff]
  %v61 = vld [vmem:[%s0 + $0x110] sm:$0xff]
  %v62 = vld [vmem:[%s0 + $0x118] sm:$0xff]
  %v63 = vld [vmem:[%s0 + $0x120] sm:$0xff]
  %v64 = vld [vmem:[%s0 + $0x128] sm:$0xff]
  %v65 = vld [vmem:[%s0 + $0x130] sm:$0xff]
  %v66 = vld [vmem:[%s0 + $0x138] sm:$0xff]
  %v67 = vld [vmem:[%s0 + $0x140] sm:$0xff]
  %v68 = vld [vmem:[%s0 + $0x148] sm:$0xff]
  %v69 = vld [vmem:[%s0 + $0x150] sm:$0xff]
  %v70 = vld [vmem:[%s0 + $0x158] sm:$0xff]
  %v71 = vld [vmem:[%s0 + $0x160] sm:$0xff]
  %v72 = vld [vmem:[%s0 + $0x168] sm:$0xff]
  %v73 = vld [vmem:[%s0 + $0x170] sm:$0xff]
  %v74 = vld [vmem:[%s0 + $0x178] sm:$0xff]
  %v75 = vld [vmem:[%s0 + $0x180] sm:$0xff]
  %v76 = vld [vmem:[%s0 + $0x188] sm:$0xff]
  %v77 = vld [vmem:[%s0 + $0x190] sm:$0xff]
  %v78 = vld [vmem:[%s0 + $0x198] sm:$0xff]
  %v79 = vld [vmem:[%s0 + $0x1a0] sm:$0xff]
  %v80 = vld [vmem:[%s0 + $0x1a8] sm:$0xff]
  %v81 = vld [vmem:[%s0 + $0x1b0] sm:$0xff]
  %v82 = vld [vmem:[%s0 + $0x1b8] sm:$0xff]
  %v83 = vld [vmem:[%s0 + $0x1c0] sm:$0xff]
  %v84 = vld [vmem:[%s0 + $0x1c8] sm:$0xff]
  %v85 = vld [vmem:[%s0 + $0x1d0] sm:$0xff]
  %v86 = vld [vmem:[%s0 + $0x1d8] sm:$0xff]
  %v87 = vld [vmem:[%s0 + $0x1e0] sm:$0xff]
  %v88 = vld [vmem:[%s0 + $0x1e8] sm:$0xff]
  %v89 = vld [vmem:[%s0 + $0x1f0] sm:$0xff]
  %v90 = vld [vmem:[%s0 + $0x1f8] sm:$0xff]
  %v91 = vld [vmem:[%s0 + $0x200] sm:$0xff]
  %v92 = vld [vmem:[%s0 + $0x208] sm:$0xff]
  %v93 = vld [vmem:[%s0 + $0x210] sm:$0xff]
  %v94 = vld [vmem:[%s0 + $0x218] sm:$0xff]
  %v95 = vld [vmem:[%s0 + $0x220] sm:$0xff]
  %v96 = vld [vmem:[%s0 + $0x228] sm:$0xff]
  %v97 = vld [vmem:[%s0 + $0x230] sm:$0xff]
  %v98 = vld [vmem:[%s0 + $0x238] sm:$0xff]
  %v99 = vld [vmem:[%s0 + $0x240] sm:$0xff]
  %v100 = vld [vmem:[%s0 + $0x248] sm:$0xff]
  %v101 = vld [vmem:[%s0 + $0x250] sm:$0xff]
  %v102 = vld [vmem:[%s0 + $0x258] sm:$0xff]
  %v103 = vld [vmem:[%s0 + $0x260] sm:$0xff]
  %v104 = vld [vmem:[%s0 + $0x268] sm:$0xff]
  %v105 = vld [vmem:[%s0 + $0x270] sm:$0xff]
  %v106 = vld [vmem:[%s0 + $0x278] sm:$0xff]
  %v107 = vld [vmem:[%s0 + $0x280] sm:$0xff]
  %v108 = vld [vmem:[%s0 + $0x288] sm:$0xff]
  %v109 = vld [vmem:[%s0 + $0x290] sm:$0xff]
  %v110 = vld [vmem:[%s0 + $0x298] sm:$0xff]
  %v111 = vld [vmem:[%s0 + $0x2a0] sm:$0xff]
  %v112 = vld [vmem:[%s0 + $0x2a8] sm:$0xff]
  %v113 = vld [vmem:[%s0 + $0x2b0] sm:$0xff]
  %v114 = vld [vmem:[%s0 + $0x2b8] sm:$0xff]
  %v115 = vld [vmem:[%s0 + $0x2c0] sm:$0xff]
  %v116 = vld [vmem:[%s0 + $0x2c8] sm:$0xff]
  %v117 = vld [vmem:[%s0 + $0x2d0] sm:$0xff]
  %v118 = vld [vmem:[%s0 + $0x2d8] sm:$0xff]
  %v119 = vld [vmem:[%s0 + $0x2e0] sm:$0xff]
  %v120 = vld [vmem:[%s0 + $0x2e8] sm:$0xff]
  %v121 = vld [vmem:[%s0 + $0x2f0] sm:$0xff]
  %v122 = vld [vmem:[%s0 + $0x2f8] sm:$0xff]
  %v123 = vld [vmem:[%s0 + $0x300] sm:$0xff]
  %v124 = vld [vmem:[%s0 + $0x308] sm:$0xff]
  %v125 = vld [vmem:[%s0 + $0x310] sm:$0xff]
  %v126 = vld [vmem:[%s0 + $0x318] sm:$0xff]
  %v127 = vld [vmem:[%s0 + $0x320] sm:$0xff]
  %v128 = vld [vmem:[%s0 + $0x328] sm:$0xff]
  %v129 = vld [vmem:[%s0 + $0x330] sm:$0xff]
  %v130 = vld [vmem:[%s0 + $0x338] sm:$0xff]
  %v131 = vld [vmem:[%s0 + $0x340] sm:$0xff]
  %v132 = vld [vmem:[%s0 + $0x348] sm:$0xff]
  %v133 = vld [vmem:[%s0 + $0x350] sm:$0xff]
  %v134 = vld [vmem:[%s0 + $0x358] sm:$0xff]
  %v135 = vld [vmem:[%s0 + $0x360] sm:$0xff]
  %v136 = vld [vmem:[%s0 + $0x368] sm:$0xff]
  %v137 = vld [vmem:[%s0 + $0x370] sm:$0xff]
  %v138 = vld [vmem:[%s0 + $0x378] sm:$0xff]
  %v139 = vld [vmem:[%s0 + $0x380] sm:$0xff]
  %v140 = vld [vmem:[%s0 + $0x388] sm:$0xff]
  %v141 = vld [vmem:[%s0 + $0x390] sm:$0xff]
  %v142 = vld [vmem:[%s0 + $0x398] sm:$0xff]
  %v143 = vld [vmem:[%s0 + $0x3a0] sm:$0xff]
  %v144 = vld [vmem:[%s0 + $0x3a8] sm:$0xff]
  %v145 = vld [vmem:[%s0 + $0x3b0] sm:$0xff]
  %v146 = vld [vmem:[%s0 + $0x3b8] sm:$0xff]
  %v147 = vld [vmem:[%s0 + $0x3c0] sm:$0xff]
  %v148 = vld [vmem:[%s0 + $0x3c8] sm:$0xff]
  %v149 = vld [vmem:[%s0 + $0x3d0] sm:$0xff]
  %v150 = vld [vmem:[%s0 + $0x3d8] sm:$0xff]
  %v151 = vld [vmem:[%s0 + $0x3e0] sm:$0xff]
  %v152 = vld [vmem:[%s0 + $0x3e8] sm:$0xff]
  %v153 = vld [vmem:[%s0 + $0x3f0] sm:$0xff]
  %v154 = vld [vmem:[%s0 + $0x3f8] sm:$0xff]
  %v155 = vld [vmem:[%s0 + $0x400] sm:$0xff]
  %v156 = vld [vmem:[%s0 + $0x408] sm:$0xff]
  %v157 = vld [vmem:[%s0 + $0x410] sm:$0xff]
  %v158 = vld [vmem:[%s0 + $0x418] sm:$0xff]
  %v159 = vld [vmem:[%s0 + $0x420] sm:$0xff]
  %v160 = vld [vmem:[%s0 + $0x428] sm:$0xff]
  %v161 = vld [vmem:[%s0 + $0x430] sm:$0xff]
  %v162 = vld [vmem:[%s0 + $0x438] sm:$0xff]
  %v163 = vld [vmem:[%s0 + $0x440] sm:$0xff]
  %v164 = vld [vmem:[%s0 + $0x448] sm:$0xff]
  %v165 = vld [vmem:[%s0 + $0x450] sm:$0xff]
  %v166 = vld [vmem:[%s0 + $0x458] sm:$0xff]
  %v167 = vld [vmem:[%s0 + $0x460] sm:$0xff]
  %v168 = vld [vmem:[%s0 + $0x468] sm:$0xff]
  %v169 = vld [vmem:[%s0 + $0x470] sm:$0xff]
  %v170 = vld [vmem:[%s0 + $0x478] sm:$0xff]
  %v171 = vld [vmem:[%s0 + $0x480] sm:$0xff]
  %v172 = vld [vmem:[%s0 + $0x488] sm:$0xff]
  %v173 = vld [vmem:[%s0 + $0x490] sm:$0xff]
  %v174 = vld [vmem:[%s0 + $0x498] sm:$0xff]
  %v175 = vld [vmem:[%s0 + $0x4a0] sm:$0xff]
  %v176 = vld [vmem:[%s0 + $0x4a8] sm:$0xff]
  %v177 = vld [vmem:[%s0 + $0x4b0] sm:$0xff]
  %v178 = vld [vmem:[%s0 + $0x4b8] sm:$0xff]
  %v179 = vld [vmem:[%s0 + $0x4c0] sm:$0xff]
  %v180 = vld [vmem:[%s0 + $0x4c8] sm:$0xff]
  %v181 = vld [vmem:[%s0 + $0x4d0] sm:$0xff]
  %v182 = vld [vmem:[%s0 + $0x4d8] sm:$0xff]
  %v183 = vld [vmem:[%s0 + $0x4e0] sm:$0xff]
  %v184 = vld [vmem:[%s0 + $0x4e8] sm:$0xff]
  %v185 = vld [vmem:[%s0 + $0x4f0] sm:$0xff]
  %v186 = vld [vmem:[%s0 + $0x4f8] sm:$0xff]
  %v187 = vld [vmem:[%s0 + $0x500] sm:$0xff]
  %v188 = vld [vmem:[%s0 + $0x508] sm:$0xff]
  %v189 = vld [vmem:[%s0 + $0x510] sm:$0xff]
  %v190 = vld [vmem:[%s0 + $0x518] sm:$0xff]
  %v191 = vld [vmem:[%s0 + $0x520] sm:$0xff]
  %v192 = vld [vmem:[%s0 + $0x528] sm:$0xff]
  %v193 = vld [vmem:[%s0 + $0x530] sm:$0xff]
  %v194 = vld [vmem:[%s0 + $0x538] sm:$0xff]
  %v195 = vld [vmem:[%s0 + $0x540] sm:$0xff]
  %v196 = vld [vmem:[%s0 + $0x548] sm:$0xff]
  %v197 = vld [vmem:[%s0 + $0x550] sm:$0xff]
  %v198 = vld [vmem:[%s0 + $0x558] sm:$0xff]
  %v199 = vld [vmem:[%s0 + $0x560] sm:$0xff]
  %v200 = vld [vmem:[%s0 + $0x568] sm:$0xff]
  %v201 = vld [vmem:[%s0 + $0x570] sm:$0xff]
  %v202 = vld [vmem:[%s0 + $0x578] sm:$0xff]
  %v203 = vld [vmem:[%s0 + $0x580] sm:$0xff]
  %v204 = vld [vmem:[%s0 + $0x588] sm:$0xff]
  %v205 = vld [vmem:[%s0 + $0x590] sm:$0xff]
  %v206 = vld [vmem:[%s0 + $0x598] sm:$0xff]
  %v207 = vld [vmem:[%s0 + $0x5a0] sm:$0xff]
  %v208 = vld [vmem:[%s0 + $0x5a8] sm:$0xff]
  %v209 = vld [vmem:[%s0 + $0x5b0] sm:$0xff]
  %v210 = vld [vmem:[%s0 + $0x5b8] sm:$0xff]
  %v211 = vld [vmem:[%s0 + $0x5c0] sm:$0xff]
  %v212 = vld [vmem:[%s0 + $0x5c8] sm:$0xff]
  %v213 = vld [vmem:[%s0 + $0x5d0] sm:$0xff]
  %v214 = vld [vmem:[%s0 + $0x5d8] sm:$0xff]
  %v215 = vld [vmem:[%s0 + $0x5e0] sm:$0xff]
  %v216 = vld [vmem:[%s0 + $0x5e8] sm:$0xff]
  %v217 = vld [vmem:[%s0 + $0x5f0] sm:$0xff]
  %v218 = vld [vmem:[%s0 + $0x5f8] sm:$0xff]
  %v219 = vld [vmem:[%s0 + $0x600] sm:$0xff]
  %v220 = vld [vmem:[%s0 + $0x608] sm:$0xff]
  %v221 = vld [vmem:[%s0 + $0x610] sm:$0xff]
  %v222 = vld [vmem:[%s0 + $0x618] sm:$0xff]
  %v223 = vld [vmem:[%s0 + $0x620] sm:$0xff]
  %v224 = vld [vmem:[%s0 + $0x628] sm:$0xff]
  %v225 = vld [vmem:[%s0 + $0x630] sm:$0xff]
  %v226 = vld [vmem:[%s0 + $0x638] sm:$0xff]
  %v227 = vld [vmem:[%s0 + $0x640] sm:$0xff]
  %v228 = vld [vmem:[%s0 + $0x648] sm:$0xff]
  %v229 = vld [vmem:[%s0 + $0x650] sm:$0xff]
  %v230 = vld [vmem:[%s0 + $0x658] sm:$0xff]
  %v231 = vld [vmem:[%s0 + $0x660] sm:$0xff]
  %v232 = vld [vmem:[%s0 + $0x668] sm:$0xff]
  %v233 = vld [vmem:[%s0 + $0x670] sm:$0xff]
  %v234 = vld [vmem:[%s0 + $0x678] sm:$0xff]
  %v235 = vld [vmem:[%s0 + $0x680] sm:$0xff]
  %v236 = vld [vmem:[%s0 + $0x688] sm:$0xff]
  %v237 = vld [vmem:[%s0 + $0x690] sm:$0xff]
  %v238 = vld [vmem:[%s0 + $0x698] sm:$0xff]
  %v239 = vld [vmem:[%s0 + $0x6a0] sm:$0xff]
  %v240 = vld [vmem:[%s0 + $0x6a8] sm:$0xff]
  %v241 = vld [vmem:[%s0 + $0x6b0] sm:$0xff]
  %v242 = vld [vmem:[%s0 + $0x6b8] sm:$0xff]
  %v243 = vld [vmem:[%s0 + $0x6c0] sm:$0xff]
  %v244 = vld [vmem:[%s0 + $0x6c8] sm:$0xff]
  %v245 = vld [vmem:[%s0 + $0x6d0] sm:$0xff]
  %v246 = vld [vmem:[%s0 + $0x6d8] sm:$0xff]
  %v247 = vld [vmem:[%s0 + $0x6e0] sm:$0xff]
  %v248 = vld [vmem:[%s0 + $0x6e8] sm:$0xff]
  %v249 = vld [vmem:[%s0 + $0x6f0] sm:$0xff]
  %v250 = vld [vmem:[%s0 + $0x6f8] sm:$0xff]
  %v251 = vld [vmem:[%s0 + $0x700] sm:$0xff]
  %v252 = vld [vmem:[%s0 + $0x708] sm:$0xff]
  %v253 = vld [vmem:[%s0 + $0x710] sm:$0xff]
  %v254 = vld [vmem:[%s0 + $0x718] sm:$0xff]
  %v255 = vld [vmem:[%s0 + $0x720] sm:$0xff]
  %v256 = vld [vmem:[%s0 + $0x728] sm:$0xff]
  %v257 = vld [vmem:[%s0 + $0x730] sm:$0xff]
  %v258 = vld [vmem:[%s0 + $0x738] sm:$0xff]
  %v259 = vld [vmem:[%s0 + $0x740] sm:$0xff]
  %v260 = vld [vmem:[%s0 + $0x748] sm:$0xff]
  %v261 = vld [vmem:[%s0 + $0x750] sm:$0xff]
  %v262 = vld [vmem:[%s0 + $0x758] sm:$0xff]
  %v263 = vld [vmem:[%s0 + $0x760] sm:$0xff]
  %v264 = vld [vmem:[%s0 + $0x768] sm:$0xff]
  %v265 = vld [vmem:[%s0 + $0x770] sm:$0xff]
  %v266 = vld [vmem:[%s0 + $0x778] sm:$0xff]
  %v267 = vld [vmem:[%s0 + $0x780] sm:$0xff]
  %v268 = vld [vmem:[%s0 + $0x788] sm:$0xff]
  %v269 = vld [vmem:[%s0 + $0x790] sm:$0xff]
  %v270 = vld [vmem:[%s0 + $0x798] sm:$0xff]
  %v271 = vld [vmem:[%s0 + $0x7a0] sm:$0xff]
  %v272 = vld [vmem:[%s0 + $0x7a8] sm:$0xff]
  %v273 = vld [vmem:[%s0 + $0x7b0] sm:$0xff]
  %v274 = vld [vmem:[%s0 + $0x7b8] sm:$0xff]
  %v275 = vld [vmem:[%s0 + $0x7c0] sm:$0xff]
  %v276 = vld [vmem:[%s0 + $0x7c8] sm:$0xff]
  %v277 = vld [vmem:[%s0 + $0x7d0] sm:$0xff]
  %v278 = vld [vmem:[%s0 + $0x7d8] sm:$0xff]
  %v279 = vld [vmem:[%s0 + $0x7e0] sm:$0xff]
  %v280 = vld [vmem:[%s0 + $0x7e8] sm:$0xff]
  %v281 = vld [vmem:[%s0 + $0x7f0] sm:$0xff]
  %v282 = vld [vmem:[%s0 + $0x7f8] sm:$0xff]
  %v283 = vld [vmem:[%s0 + $0x800] sm:$0xff]
  %v284 = vld [vmem:[%s0 + $0x808] sm:$0xff]
  %v285 = vld [vmem:[%s0 + $0x810] sm:$0xff]
  %v286 = vld [vmem:[%s0 + $0x818] sm:$0xff]
  %v287 = vld [vmem:[%s0 + $0x820] sm:$0xff]
  %v288 = vld [vmem:[%s0 + $0x828] sm:$0xff]
  %v289 = vld [vmem:[%s0 + $0x830] sm:$0xff]
  %v290 = vld [vmem:[%s0 + $0x838] sm:$0xff]
  %v291 = vld [vmem:[%s0 + $0x840] sm:$0xff]
  %v292 = vld [vmem:[%s0 + $0x848] sm:$0xff]
  %v293 = vpack.c.bf16 %v34, %v27
  %v294 = vpack.c.bf16 %v35, %v28
  %v295 = vpack.c.bf16 %v36, %v29
  %v296 = vpack.c.bf16 %v37, %v30
  %v297 = vpack.c.bf16 %v38, %v31
  %v298 = vpack.c.bf16 %v39, %v32
  %v299 = vpack.c.bf16 %v40, %v33
  %v300 = vpack.c.bf16 %v48, %v41
  %v301 = vpack.c.bf16 %v49, %v42
  %v302 = vpack.c.bf16 %v50, %v43
  %v303 = vpack.c.bf16 %v51, %v44
  %v304 = vpack.c.bf16 %v52, %v45
  %v305 = vpack.c.bf16 %v53, %v46
  %v306 = vpack.c.bf16 %v54, %v47
  %v307 = vpack.c.bf16 %v62, %v55
  %v308 = vpack.c.bf16 %v63, %v56
  %v309 = vpack.c.bf16 %v64, %v57
  %v310 = vpack.c.bf16 %v65, %v58
  %v311 = vpack.c.bf16 %v66, %v59
  %v312 = vpack.c.bf16 %v67, %v60
  %v313 = vpack.c.bf16 %v68, %v61
  %v314 = vpack.c.bf16 %v76, %v69
  %v315 = vpack.c.bf16 %v77, %v70
  %v316 = vpack.c.bf16 %v78, %v71
  %v317 = vpack.c.bf16 %v79, %v72
  %v318 = vpack.c.bf16 %v80, %v73
  %v319 = vpack.c.bf16 %v81, %v74
  %v320 = vpack.c.bf16 %v82, %v75
  %v321 = vpack.c.bf16 %v90, %v83
  %v322 = vpack.c.bf16 %v91, %v84
  %v323 = vpack.c.bf16 %v92, %v85
  %v324 = vpack.c.bf16 %v93, %v86
  %v325 = vpack.c.bf16 %v94, %v87
  %v326 = vpack.c.bf16 %v95, %v88
  %v327 = vpack.c.bf16 %v96, %v89
  %v328 = vpack.c.bf16 %v104, %v97
  %v329 = vpack.c.bf16 %v105, %v98
  %v330 = vpack.c.bf16 %v106, %v99
  %v331 = vpack.c.bf16 %v107, %v100
  %v332 = vpack.c.bf16 %v108, %v101
  %v333 = vpack.c.bf16 %v109, %v102
  %v334 = vpack.c.bf16 %v110, %v103
  %v335 = vpack.c.bf16 %v118, %v111
  %v336 = vpack.c.bf16 %v119, %v112
  %v337 = vpack.c.bf16 %v120, %v113
  %v338 = vpack.c.bf16 %v121, %v114
  %v339 = vpack.c.bf16 %v122, %v115
  %v340 = vpack.c.bf16 %v123, %v116
  %v341 = vpack.c.bf16 %v124, %v117
  %v342 = vpack.c.bf16 %v132, %v125
  %v343 = vpack.c.bf16 %v133, %v126
  %v344 = vpack.c.bf16 %v134, %v127
  %v345 = vpack.c.bf16 %v135, %v128
  %v346 = vpack.c.bf16 %v136, %v129
  %v347 = vpack.c.bf16 %v137, %v130
  %v348 = vpack.c.bf16 %v138, %v131
  %v349 = vpack.c.bf16 %v146, %v139
  %v350 = vpack.c.bf16 %v147, %v140
  %v351 = vpack.c.bf16 %v148, %v141
  %v352 = vpack.c.bf16 %v149, %v142
  %v353 = vpack.c.bf16 %v150, %v143
  %v354 = vpack.c.bf16 %v151, %v144
  %v355 = vpack.c.bf16 %v152, %v145
  %v356 = vpack.c.bf16 %v160, %v153
  %v357 = vpack.c.bf16 %v161, %v154
  %v358 = vpack.c.bf16 %v162, %v155
  %v359 = vpack.c.bf16 %v163, %v156
  %v360 = vpack.c.bf16 %v164, %v157
  %v361 = vpack.c.bf16 %v165, %v158
  %v362 = vpack.c.bf16 %v166, %v159
  %v363 = vpack.c.bf16 %v174, %v167
  %v364 = vpack.c.bf16 %v175, %v168
  %v365 = vpack.c.bf16 %v176, %v169
  %v366 = vpack.c.bf16 %v177, %v170
  %v367 = vpack.c.bf16 %v178, %v171
  %v368 = vpack.c.bf16 %v179, %v172
  %v369 = vpack.c.bf16 %v180, %v173
  %v370 = vpack.c.bf16 %v188, %v181
  %v371 = vpack.c.bf16 %v189, %v182
  %v372 = vpack.c.bf16 %v190, %v183
  %v373 = vpack.c.bf16 %v191, %v184
  %v374 = vpack.c.bf16 %v192, %v185
  %v375 = vpack.c.bf16 %v193, %v186
  %v376 = vpack.c.bf16 %v194, %v187
  %v377 = vpack.c.bf16 %v202, %v195
  %v378 = vpack.c.bf16 %v203, %v196
  %v379 = vpack.c.bf16 %v204, %v197
  %v380 = vpack.c.bf16 %v205, %v198
  %v381 = vpack.c.bf16 %v206, %v199
  %v382 = vpack.c.bf16 %v207, %v200
  %v383 = vpack.c.bf16 %v208, %v201
  %v384 = vpack.c.bf16 %v216, %v209
  %v385 = vpack.c.bf16 %v217, %v210
  %v386 = vpack.c.bf16 %v218, %v211
  %v387 = vpack.c.bf16 %v219, %v212
  %v388 = vpack.c.bf16 %v220, %v213
  %v389 = vpack.c.bf16 %v221, %v214
  %v390 = vpack.c.bf16 %v222, %v215
  %v391 = vpack.c.bf16 %v230, %v223
  %v392 = vpack.c.bf16 %v231, %v224
  %v393 = vpack.c.bf16 %v232, %v225
  %v394 = vpack.c.bf16 %v233, %v226
  %v395 = vpack.c.bf16 %v234, %v227
  %v396 = vpack.c.bf16 %v235, %v228
  %v397 = vpack.c.bf16 %v236, %v229
  %v398 = vpack.c.bf16 %v244, %v237
  %v399 = vpack.c.bf16 %v245, %v238
  %v400 = vpack.c.bf16 %v246, %v239
  %v401 = vpack.c.bf16 %v247, %v240
  %v402 = vpack.c.bf16 %v248, %v241
  %v403 = vpack.c.bf16 %v249, %v242
  %v404 = vpack.c.bf16 %v250, %v243
  %v405 = vpack.c.bf16 %v258, %v251
  %v406 = vpack.c.bf16 %v259, %v252
  %v407 = vpack.c.bf16 %v260, %v253
  %v408 = vpack.c.bf16 %v261, %v254
  %v409 = vpack.c.bf16 %v262, %v255
  %v410 = vpack.c.bf16 %v263, %v256
  %v411 = vpack.c.bf16 %v264, %v257
  %v412 = vpack.c.bf16 %v272, %v265
  %v413 = vpack.c.bf16 %v273, %v266
  %v414 = vpack.c.bf16 %v274, %v267
  %v415 = vpack.c.bf16 %v275, %v268
  %v416 = vpack.c.bf16 %v276, %v269
  %v417 = vpack.c.bf16 %v277, %v270
  %v418 = vpack.c.bf16 %v278, %v271
  %v419 = vpack.c.bf16 %v286, %v279
  %v420 = vpack.c.bf16 %v287, %v280
  %v421 = vpack.c.bf16 %v288, %v281
  %v422 = vpack.c.bf16 %v289, %v282
  %v423 = vpack.c.bf16 %v290, %v283
  %v424 = vpack.c.bf16 %v291, %v284
  %v425 = vpack.c.bf16 %v292, %v285
  %v426 = vld [vmem:[%s1] sm:$0xff]
  %v427 = vld [vmem:[%s1 + $0x8] sm:$0xff]
  %v428 = vld [vmem:[%s1 + $0x10] sm:$0xff]
  %v429 = vld [vmem:[%s1 + $0x18] sm:$0xff]
  %v430 = vld [vmem:[%s1 + $0x20] sm:$0xff]
  %v431 = vld [vmem:[%s1 + $0x28] sm:$0xff]
  %v432 = vld [vmem:[%s1 + $0x30] sm:$0xff]
  %v433 = vld [vmem:[%s1 + $0x38] sm:$0xff]
  %v434 = vld [vmem:[%s1 + $0x40] sm:$0xff]
  %v435 = vld [vmem:[%s1 + $0x48] sm:$0xff]
  %v436 = vld [vmem:[%s1 + $0x50] sm:$0xff]
  %v437 = vld [vmem:[%s1 + $0x58] sm:$0xff]
  %v438 = vld [vmem:[%s1 + $0x60] sm:$0xff]
  %v439 = vld [vmem:[%s1 + $0x68] sm:$0xff]
  %v440 = vld [vmem:[%s1 + $0x70] sm:$0xff]
  %v441 = vld [vmem:[%s1 + $0x78] sm:$0xff]
  %v442 = vld [vmem:[%s1 + $0x80] sm:$0xff]
  %v443 = vld [vmem:[%s1 + $0x88] sm:$0xff]
  %v444 = vld [vmem:[%s1 + $0x90] sm:$0xff]
  %v445 = vld [vmem:[%s1 + $0x98] sm:$0xff]
  %v446 = vld [vmem:[%s1 + $0xa0] sm:$0xff]
  %v447 = vld [vmem:[%s1 + $0xa8] sm:$0xff]
  %v448 = vld [vmem:[%s1 + $0xb0] sm:$0xff]
  %v449 = vld [vmem:[%s1 + $0xb8] sm:$0xff]
  %v450 = vld [vmem:[%s1 + $0xc0] sm:$0xff]
  %v451 = vld [vmem:[%s1 + $0xc8] sm:$0xff]
  %v452 = vld [vmem:[%s1 + $0xd0] sm:$0xff]
  %v453 = vld [vmem:[%s1 + $0xd8] sm:$0xff]
  %v454 = vld [vmem:[%s1 + $0xe0] sm:$0xff]
  %v455 = vld [vmem:[%s1 + $0xe8] sm:$0xff]
  %v456 = vld [vmem:[%s1 + $0xf0] sm:$0xff]
  %v457 = vld [vmem:[%s1 + $0xf8] sm:$0xff]
  %v458 = vld [vmem:[%s1 + $0x100] sm:$0xff]
  %v459 = vld [vmem:[%s1 + $0x108] sm:$0xff]
  %v460 = vld [vmem:[%s1 + $0x110] sm:$0xff]
  %v461 = vld [vmem:[%s1 + $0x118] sm:$0xff]
  %v462 = vld [vmem:[%s1 + $0x120] sm:$0xff]
  %v463 = vld [vmem:[%s1 + $0x128] sm:$0xff]
  %v464 = vld [vmem:[%s1 + $0x130] sm:$0xff]
  %v465 = vld [vmem:[%s1 + $0x138] sm:$0xff]
  %v466 = vld [vmem:[%s1 + $0x140] sm:$0xff]
  %v467 = vld [vmem:[%s1 + $0x148] sm:$0xff]
  %v468 = vld [vmem:[%s1 + $0x150] sm:$0xff]
  %v469 = vld [vmem:[%s1 + $0x158] sm:$0xff]
  %v470 = vld [vmem:[%s1 + $0x160] sm:$0xff]
  %v471 = vld [vmem:[%s1 + $0x168] sm:$0xff]
  %v472 = vld [vmem:[%s1 + $0x170] sm:$0xff]
  %v473 = vld [vmem:[%s1 + $0x178] sm:$0xff]
  %v474 = vld [vmem:[%s1 + $0x180] sm:$0xff]
  %v475 = vld [vmem:[%s1 + $0x188] sm:$0xff]
  %v476 = vld [vmem:[%s1 + $0x190] sm:$0xff]
  %v477 = vld [vmem:[%s1 + $0x198] sm:$0xff]
  %v478 = vld [vmem:[%s1 + $0x1a0] sm:$0xff]
  %v479 = vld [vmem:[%s1 + $0x1a8] sm:$0xff]
  %v480 = vld [vmem:[%s1 + $0x1b0] sm:$0xff]
  %v481 = vld [vmem:[%s1 + $0x1b8] sm:$0xff]
  %v482 = vld [vmem:[%s1 + $0x1c0] sm:$0xff]
  %v483 = vld [vmem:[%s1 + $0x1c8] sm:$0xff]
  %v484 = vld [vmem:[%s1 + $0x1d0] sm:$0xff]
  %v485 = vld [vmem:[%s1 + $0x1d8] sm:$0xff]
  %v486 = vld [vmem:[%s1 + $0x1e0] sm:$0xff]
  %v487 = vld [vmem:[%s1 + $0x1e8] sm:$0xff]
  %v488 = vld [vmem:[%s1 + $0x1f0] sm:$0xff]
  %v489 = vld [vmem:[%s1 + $0x1f8] sm:$0xff]
  %v490 = vld [vmem:[%s1 + $0x200] sm:$0xff]
  %v491 = vld [vmem:[%s1 + $0x208] sm:$0xff]
  %v492 = vld [vmem:[%s1 + $0x210] sm:$0xff]
  %v493 = vld [vmem:[%s1 + $0x218] sm:$0xff]
  %v494 = vld [vmem:[%s1 + $0x220] sm:$0xff]
  %v495 = vld [vmem:[%s1 + $0x228] sm:$0xff]
  %v496 = vld [vmem:[%s1 + $0x230] sm:$0xff]
  %v497 = vld [vmem:[%s1 + $0x238] sm:$0xff]
  %v498 = vld [vmem:[%s1 + $0x240] sm:$0xff]
  %v499 = vld [vmem:[%s1 + $0x248] sm:$0xff]
  %v500 = vld [vmem:[%s1 + $0x250] sm:$0xff]
  %v501 = vld [vmem:[%s1 + $0x258] sm:$0xff]
  %v502 = vld [vmem:[%s1 + $0x260] sm:$0xff]
  %v503 = vld [vmem:[%s1 + $0x268] sm:$0xff]
  %v504 = vld [vmem:[%s1 + $0x270] sm:$0xff]
  %v505 = vld [vmem:[%s1 + $0x278] sm:$0xff]
  %v506 = vld [vmem:[%s1 + $0x280] sm:$0xff]
  %v507 = vld [vmem:[%s1 + $0x288] sm:$0xff]
  %v508 = vld [vmem:[%s1 + $0x290] sm:$0xff]
  %v509 = vld [vmem:[%s1 + $0x298] sm:$0xff]
  %v510 = vld [vmem:[%s1 + $0x2a0] sm:$0xff]
  %v511 = vld [vmem:[%s1 + $0x2a8] sm:$0xff]
  %v512 = vld [vmem:[%s1 + $0x2b0] sm:$0xff]
  %v513 = vld [vmem:[%s1 + $0x2b8] sm:$0xff]
  %v514 = vld [vmem:[%s1 + $0x2c0] sm:$0xff]
  %v515 = vld [vmem:[%s1 + $0x2c8] sm:$0xff]
  %v516 = vld [vmem:[%s1 + $0x2d0] sm:$0xff]
  %v517 = vld [vmem:[%s1 + $0x2d8] sm:$0xff]
  %v518 = vld [vmem:[%s1 + $0x2e0] sm:$0xff]
  %v519 = vld [vmem:[%s1 + $0x2e8] sm:$0xff]
  %v520 = vld [vmem:[%s1 + $0x2f0] sm:$0xff]
  %v521 = vld [vmem:[%s1 + $0x2f8] sm:$0xff]
  %v522 = vld [vmem:[%s1 + $0x300] sm:$0xff]
  %v523 = vld [vmem:[%s1 + $0x308] sm:$0xff]
  %v524 = vld [vmem:[%s1 + $0x310] sm:$0xff]
  %v525 = vld [vmem:[%s1 + $0x318] sm:$0xff]
  %v526 = vld [vmem:[%s1 + $0x320] sm:$0xff]
  %v527 = vld [vmem:[%s1 + $0x328] sm:$0xff]
  %v528 = vld [vmem:[%s1 + $0x330] sm:$0xff]
  %v529 = vld [vmem:[%s1 + $0x338] sm:$0xff]
  %v530 = vld [vmem:[%s1 + $0x340] sm:$0xff]
  %v531 = vld [vmem:[%s1 + $0x348] sm:$0xff]
  %v532 = vld [vmem:[%s1 + $0x350] sm:$0xff]
  %v533 = vld [vmem:[%s1 + $0x358] sm:$0xff]
  %v534 = vld [vmem:[%s1 + $0x360] sm:$0xff]
  %v535 = vld [vmem:[%s1 + $0x368] sm:$0xff]
  %v536 = vld [vmem:[%s1 + $0x370] sm:$0xff]
  %v537 = vld [vmem:[%s1 + $0x378] sm:$0xff]
  %v538 = vld [vmem:[%s1 + $0x380] sm:$0xff]
  %v539 = vld [vmem:[%s1 + $0x388] sm:$0xff]
  %v540 = vld [vmem:[%s1 + $0x390] sm:$0xff]
  %v541 = vld [vmem:[%s1 + $0x398] sm:$0xff]
  %v542 = vld [vmem:[%s1 + $0x3a0] sm:$0xff]
  %v543 = vld [vmem:[%s1 + $0x3a8] sm:$0xff]
  %v544 = vld [vmem:[%s1 + $0x3b0] sm:$0xff]
  %v545 = vld [vmem:[%s1 + $0x3b8] sm:$0xff]
  %v546 = vld [vmem:[%s1 + $0x3c0] sm:$0xff]
  %v547 = vld [vmem:[%s1 + $0x3c8] sm:$0xff]
  %v548 = vld [vmem:[%s1 + $0x3d0] sm:$0xff]
  %v549 = vld [vmem:[%s1 + $0x3d8] sm:$0xff]
  %v550 = vld [vmem:[%s1 + $0x3e0] sm:$0xff]
  %v551 = vld [vmem:[%s1 + $0x3e8] sm:$0xff]
  %v552 = vld [vmem:[%s1 + $0x3f0] sm:$0xff]
  %v553 = vld [vmem:[%s1 + $0x3f8] sm:$0xff]
  %v554 = vld [vmem:[%s1 + $0x400] sm:$0xff]
  %v555 = vld [vmem:[%s1 + $0x408] sm:$0xff]
  %v556 = vld [vmem:[%s1 + $0x410] sm:$0xff]
  %v557 = vld [vmem:[%s1 + $0x418] sm:$0xff]
  %v558 = vld [vmem:[%s1 + $0x420] sm:$0xff]
  %v559 = vld [vmem:[%s1 + $0x428] sm:$0xff]
  %v560 = vld [vmem:[%s1 + $0x430] sm:$0xff]
  %v561 = vld [vmem:[%s1 + $0x438] sm:$0xff]
  %v562 = vld [vmem:[%s1 + $0x440] sm:$0xff]
  %v563 = vld [vmem:[%s1 + $0x448] sm:$0xff]
  %v564 = vld [vmem:[%s1 + $0x450] sm:$0xff]
  %v565 = vld [vmem:[%s1 + $0x458] sm:$0xff]
  %v566 = vld [vmem:[%s1 + $0x460] sm:$0xff]
  %v567 = vld [vmem:[%s1 + $0x468] sm:$0xff]
  %v568 = vld [vmem:[%s1 + $0x470] sm:$0xff]
  %v569 = vld [vmem:[%s1 + $0x478] sm:$0xff]
  %v570 = vld [vmem:[%s1 + $0x480] sm:$0xff]
  %v571 = vld [vmem:[%s1 + $0x488] sm:$0xff]
  %v572 = vld [vmem:[%s1 + $0x490] sm:$0xff]
  %v573 = vld [vmem:[%s1 + $0x498] sm:$0xff]
  %v574 = vld [vmem:[%s1 + $0x4a0] sm:$0xff]
  %v575 = vld [vmem:[%s1 + $0x4a8] sm:$0xff]
  %v576 = vld [vmem:[%s1 + $0x4b0] sm:$0xff]
  %v577 = vld [vmem:[%s1 + $0x4b8] sm:$0xff]
  %v578 = vld [vmem:[%s1 + $0x4c0] sm:$0xff]
  %v579 = vld [vmem:[%s1 + $0x4c8] sm:$0xff]
  %v580 = vld [vmem:[%s1 + $0x4d0] sm:$0xff]
  %v581 = vld [vmem:[%s1 + $0x4d8] sm:$0xff]
  %v582 = vld [vmem:[%s1 + $0x4e0] sm:$0xff]
  %v583 = vld [vmem:[%s1 + $0x4e8] sm:$0xff]
  %v584 = vld [vmem:[%s1 + $0x4f0] sm:$0xff]
  %v585 = vld [vmem:[%s1 + $0x4f8] sm:$0xff]
  %v586 = vld [vmem:[%s1 + $0x500] sm:$0xff]
  %v587 = vld [vmem:[%s1 + $0x508] sm:$0xff]
  %v588 = vld [vmem:[%s1 + $0x510] sm:$0xff]
  %v589 = vld [vmem:[%s1 + $0x518] sm:$0xff]
  %v590 = vld [vmem:[%s1 + $0x520] sm:$0xff]
  %v591 = vld [vmem:[%s1 + $0x528] sm:$0xff]
  %v592 = vld [vmem:[%s1 + $0x530] sm:$0xff]
  %v593 = vld [vmem:[%s1 + $0x538] sm:$0xff]
  %v594 = vld [vmem:[%s1 + $0x540] sm:$0xff]
  %v595 = vld [vmem:[%s1 + $0x548] sm:$0xff]
  %v596 = vld [vmem:[%s1 + $0x550] sm:$0xff]
  %v597 = vld [vmem:[%s1 + $0x558] sm:$0xff]
  %v598 = vld [vmem:[%s1 + $0x560] sm:$0xff]
  %v599 = vld [vmem:[%s1 + $0x568] sm:$0xff]
  %v600 = vld [vmem:[%s1 + $0x570] sm:$0xff]
  %v601 = vld [vmem:[%s1 + $0x578] sm:$0xff]
  %v602 = vld [vmem:[%s1 + $0x580] sm:$0xff]
  %v603 = vld [vmem:[%s1 + $0x588] sm:$0xff]
  %v604 = vld [vmem:[%s1 + $0x590] sm:$0xff]
  %v605 = vld [vmem:[%s1 + $0x598] sm:$0xff]
  %v606 = vld [vmem:[%s1 + $0x5a0] sm:$0xff]
  %v607 = vld [vmem:[%s1 + $0x5a8] sm:$0xff]
  %v608 = vld [vmem:[%s1 + $0x5b0] sm:$0xff]
  %v609 = vld [vmem:[%s1 + $0x5b8] sm:$0xff]
  %v610 = vld [vmem:[%s1 + $0x5c0] sm:$0xff]
  %v611 = vld [vmem:[%s1 + $0x5c8] sm:$0xff]
  %v612 = vld [vmem:[%s1 + $0x5d0] sm:$0xff]
  %v613 = vld [vmem:[%s1 + $0x5d8] sm:$0xff]
  %v614 = vld [vmem:[%s1 + $0x5e0] sm:$0xff]
  %v615 = vld [vmem:[%s1 + $0x5e8] sm:$0xff]
  %v616 = vld [vmem:[%s1 + $0x5f0] sm:$0xff]
  %v617 = vld [vmem:[%s1 + $0x5f8] sm:$0xff]
  %v618 = vld [vmem:[%s1 + $0x600] sm:$0xff]
  %v619 = vld [vmem:[%s1 + $0x608] sm:$0xff]
  %v620 = vld [vmem:[%s1 + $0x610] sm:$0xff]
  %v621 = vld [vmem:[%s1 + $0x618] sm:$0xff]
  %v622 = vld [vmem:[%s2] sm:$0xf]
  %v624 = vlaneseq
  %v625 = vshrl.u32 %v624, 7
  %v626 = vsub.s32 0, %v625
  %v627 = vrot.slane %v622, %v626
  %v628 = vlaneseq
  %v629 = vshrl.u32 %v628, 7
  %v630 = vsub.s32 1, %v629
  %v631 = vrot.slane %v622, %v630
  %v632 = vlaneseq
  %v633 = vshrl.u32 %v632, 7
  %v634 = vsub.s32 2, %v633
  %v635 = vrot.slane %v622, %v634
  %v636 = vlaneseq
  %v637 = vshrl.u32 %v636, 7
  %v638 = vsub.s32 3, %v637
  %v639 = vrot.slane %v622, %v638
  %v840 = vunpack.c.l.b16 %v426
  %v841 = vunpack.c.h.b16 %v426
  %v842 = vunpack.c.l.b16 %v427
  %v843 = vunpack.c.h.b16 %v427
  %v844 = vunpack.c.l.b16 %v428
  %v845 = vunpack.c.h.b16 %v428
  %v846 = vunpack.c.l.b16 %v429
  %v847 = vunpack.c.h.b16 %v429
  %v848 = vunpack.c.l.b16 %v430
  %v849 = vunpack.c.h.b16 %v430
  %v850 = vunpack.c.l.b16 %v431
  %v851 = vunpack.c.h.b16 %v431
  %v852 = vunpack.c.l.b16 %v432
  %v853 = vunpack.c.h.b16 %v432
  %v854 = vunpack.c.l.b16 %v433
  %v855 = vunpack.c.h.b16 %v433
  %v856 = vunpack.c.l.b16 %v434
  %v857 = vunpack.c.h.b16 %v434
  %v858 = vunpack.c.l.b16 %v435
  %v859 = vunpack.c.h.b16 %v435
  %v860 = vunpack.c.l.b16 %v436
  %v861 = vunpack.c.h.b16 %v436
  %v862 = vunpack.c.l.b16 %v437
  %v863 = vunpack.c.h.b16 %v437
  %v864 = vunpack.c.l.b16 %v438
  %v865 = vunpack.c.h.b16 %v438
  %v866 = vunpack.c.l.b16 %v439
  %v867 = vunpack.c.h.b16 %v439
  %v868 = vunpack.c.l.b16 %v440
  %v869 = vunpack.c.h.b16 %v440
  %v870 = vunpack.c.l.b16 %v441
  %v871 = vunpack.c.h.b16 %v441
  %v872 = vunpack.c.l.b16 %v442
  %v873 = vunpack.c.h.b16 %v442
  %v874 = vunpack.c.l.b16 %v443
  %v875 = vunpack.c.h.b16 %v443
  %v876 = vunpack.c.l.b16 %v444
  %v877 = vunpack.c.h.b16 %v444
  %v878 = vunpack.c.l.b16 %v445
  %v879 = vunpack.c.h.b16 %v445
  %v880 = vunpack.c.l.b16 %v446
  %v881 = vunpack.c.h.b16 %v446
  %v882 = vunpack.c.l.b16 %v447
  %v883 = vunpack.c.h.b16 %v447
  %v884 = vunpack.c.l.b16 %v448
  %v885 = vunpack.c.h.b16 %v448
  %v886 = vunpack.c.l.b16 %v449
  %v887 = vunpack.c.h.b16 %v449
  %v888 = vunpack.c.l.b16 %v450
  %v889 = vunpack.c.h.b16 %v450
  %v890 = vunpack.c.l.b16 %v451
  %v891 = vunpack.c.h.b16 %v451
  %v892 = vunpack.c.l.b16 %v452
  %v893 = vunpack.c.h.b16 %v452
  %v894 = vunpack.c.l.b16 %v453
  %v895 = vunpack.c.h.b16 %v453
  %v896 = vunpack.c.l.b16 %v454
  %v897 = vunpack.c.h.b16 %v454
  %v898 = vunpack.c.l.b16 %v455
  %v899 = vunpack.c.h.b16 %v455
  %v900 = vunpack.c.l.b16 %v456
  %v901 = vunpack.c.h.b16 %v456
  %v902 = vunpack.c.l.b16 %v457
  %v903 = vunpack.c.h.b16 %v457
  %v904 = vunpack.c.l.b16 %v458
  %v905 = vunpack.c.h.b16 %v458
  %v906 = vunpack.c.l.b16 %v459
  %v907 = vunpack.c.h.b16 %v459
  %v908 = vunpack.c.l.b16 %v460
  %v909 = vunpack.c.h.b16 %v460
  %v910 = vunpack.c.l.b16 %v461
  %v911 = vunpack.c.h.b16 %v461
  %v912 = vunpack.c.l.b16 %v462
  %v913 = vunpack.c.h.b16 %v462
  %v914 = vunpack.c.l.b16 %v463
  %v915 = vunpack.c.h.b16 %v463
  %v916 = vunpack.c.l.b16 %v464
  %v917 = vunpack.c.h.b16 %v464
  %v918 = vunpack.c.l.b16 %v465
  %v919 = vunpack.c.h.b16 %v465
  %v920 = vunpack.c.l.b16 %v466
  %v921 = vunpack.c.h.b16 %v466
  %v922 = vunpack.c.l.b16 %v467
  %v923 = vunpack.c.h.b16 %v467
  %v924 = vunpack.c.l.b16 %v468
  %v925 = vunpack.c.h.b16 %v468
  %v926 = vunpack.c.l.b16 %v469
  %v927 = vunpack.c.h.b16 %v469
  %v928 = vunpack.c.l.b16 %v470
  %v929 = vunpack.c.h.b16 %v470
  %v930 = vunpack.c.l.b16 %v471
  %v931 = vunpack.c.h.b16 %v471
  %v932 = vunpack.c.l.b16 %v472
  %v933 = vunpack.c.h.b16 %v472
  %v934 = vunpack.c.l.b16 %v473
  %v935 = vunpack.c.h.b16 %v473
  %v936 = vunpack.c.l.b16 %v474
  %v937 = vunpack.c.h.b16 %v474
  %v938 = vunpack.c.l.b16 %v475
  %v939 = vunpack.c.h.b16 %v475
  %v940 = vunpack.c.l.b16 %v476
  %v941 = vunpack.c.h.b16 %v476
  %v942 = vunpack.c.l.b16 %v477
  %v943 = vunpack.c.h.b16 %v477
  %v944 = vunpack.c.l.b16 %v478
  %v945 = vunpack.c.h.b16 %v478
  %v946 = vunpack.c.l.b16 %v479
  %v947 = vunpack.c.h.b16 %v479
  %v948 = vunpack.c.l.b16 %v480
  %v949 = vunpack.c.h.b16 %v480
  %v950 = vunpack.c.l.b16 %v481
  %v951 = vunpack.c.h.b16 %v481
  %v952 = vunpack.c.l.b16 %v482
  %v953 = vunpack.c.h.b16 %v482
  %v954 = vunpack.c.l.b16 %v483
  %v955 = vunpack.c.h.b16 %v483
  %v956 = vunpack.c.l.b16 %v484
  %v957 = vunpack.c.h.b16 %v484
  %v958 = vunpack.c.l.b16 %v485
  %v959 = vunpack.c.h.b16 %v485
  %v960 = vunpack.c.l.b16 %v486
  %v961 = vunpack.c.h.b16 %v486
  %v962 = vunpack.c.l.b16 %v487
  %v963 = vunpack.c.h.b16 %v487
  %v964 = vunpack.c.l.b16 %v488
  %v965 = vunpack.c.h.b16 %v488
  %v966 = vunpack.c.l.b16 %v489
  %v967 = vunpack.c.h.b16 %v489
  %v968 = vunpack.c.l.b16 %v490
  %v969 = vunpack.c.h.b16 %v490
  %v970 = vunpack.c.l.b16 %v491
  %v971 = vunpack.c.h.b16 %v491
  %v972 = vunpack.c.l.b16 %v492
  %v973 = vunpack.c.h.b16 %v492
  %v974 = vunpack.c.l.b16 %v493
  %v975 = vunpack.c.h.b16 %v493
  %v976 = vunpack.c.l.b16 %v494
  %v977 = vunpack.c.h.b16 %v494
  %v978 = vunpack.c.l.b16 %v495
  %v979 = vunpack.c.h.b16 %v495
  %v980 = vunpack.c.l.b16 %v496
  %v981 = vunpack.c.h.b16 %v496
  %v982 = vunpack.c.l.b16 %v497
  %v983 = vunpack.c.h.b16 %v497
  %v984 = vunpack.c.l.b16 %v498
  %v985 = vunpack.c.h.b16 %v498
  %v986 = vunpack.c.l.b16 %v499
  %v987 = vunpack.c.h.b16 %v499
  %v988 = vunpack.c.l.b16 %v500
  %v989 = vunpack.c.h.b16 %v500
  %v990 = vunpack.c.l.b16 %v501
  %v991 = vunpack.c.h.b16 %v501
  %v992 = vunpack.c.l.b16 %v502
  %v993 = vunpack.c.h.b16 %v502
  %v994 = vunpack.c.l.b16 %v503
  %v995 = vunpack.c.h.b16 %v503
  %v996 = vunpack.c.l.b16 %v504
  %v997 = vunpack.c.h.b16 %v504
  %v998 = vunpack.c.l.b16 %v505
  %v999 = vunpack.c.h.b16 %v505
  %v1000 = vunpack.c.l.b16 %v506
  %v1001 = vunpack.c.h.b16 %v506
  %v1002 = vunpack.c.l.b16 %v507
  %v1003 = vunpack.c.h.b16 %v507
  %v1004 = vunpack.c.l.b16 %v508
  %v1005 = vunpack.c.h.b16 %v508
  %v1006 = vunpack.c.l.b16 %v509
  %v1007 = vunpack.c.h.b16 %v509
  %v1008 = vunpack.c.l.b16 %v510
  %v1009 = vunpack.c.h.b16 %v510
  %v1010 = vunpack.c.l.b16 %v511
  %v1011 = vunpack.c.h.b16 %v511
  %v1012 = vunpack.c.l.b16 %v512
  %v1013 = vunpack.c.h.b16 %v512
  %v1014 = vunpack.c.l.b16 %v513
  %v1015 = vunpack.c.h.b16 %v513
  %v1016 = vunpack.c.l.b16 %v514
  %v1017 = vunpack.c.h.b16 %v514
  %v1018 = vunpack.c.l.b16 %v515
  %v1019 = vunpack.c.h.b16 %v515
  %v1020 = vunpack.c.l.b16 %v516
  %v1021 = vunpack.c.h.b16 %v516
  %v1022 = vunpack.c.l.b16 %v517
  %v1023 = vunpack.c.h.b16 %v517
  %v1024 = vunpack.c.l.b16 %v518
  %v1025 = vunpack.c.h.b16 %v518
  %v1026 = vunpack.c.l.b16 %v519
  %v1027 = vunpack.c.h.b16 %v519
  %v1028 = vunpack.c.l.b16 %v520
  %v1029 = vunpack.c.h.b16 %v520
  %v1030 = vunpack.c.l.b16 %v521
  %v1031 = vunpack.c.h.b16 %v521
  %v1032 = vunpack.c.l.b16 %v522
  %v1033 = vunpack.c.h.b16 %v522
  %v1034 = vunpack.c.l.b16 %v523
  %v1035 = vunpack.c.h.b16 %v523
  %v1036 = vunpack.c.l.b16 %v524
  %v1037 = vunpack.c.h.b16 %v524
  %v1038 = vunpack.c.l.b16 %v525
  %v1039 = vunpack.c.h.b16 %v525
  %v1040 = vunpack.c.l.b16 %v526
  %v1041 = vunpack.c.h.b16 %v526
  %v1042 = vunpack.c.l.b16 %v527
  %v1043 = vunpack.c.h.b16 %v527
  %v1044 = vunpack.c.l.b16 %v528
  %v1045 = vunpack.c.h.b16 %v528
  %v1046 = vunpack.c.l.b16 %v529
  %v1047 = vunpack.c.h.b16 %v529
  %v1048 = vunpack.c.l.b16 %v530
  %v1049 = vunpack.c.h.b16 %v530
  %v1050 = vunpack.c.l.b16 %v531
  %v1051 = vunpack.c.h.b16 %v531
  %v1052 = vunpack.c.l.b16 %v532
  %v1053 = vunpack.c.h.b16 %v532
  %v1054 = vunpack.c.l.b16 %v533
  %v1055 = vunpack.c.h.b16 %v533
  %v1056 = vunpack.c.l.b16 %v534
  %v1057 = vunpack.c.h.b16 %v534
  %v1058 = vunpack.c.l.b16 %v535
  %v1059 = vunpack.c.h.b16 %v535
  %v1060 = vunpack.c.l.b16 %v536
  %v1061 = vunpack.c.h.b16 %v536
  %v1062 = vunpack.c.l.b16 %v537
  %v1063 = vunpack.c.h.b16 %v537
  %v1064 = vunpack.c.l.b16 %v538
  %v1065 = vunpack.c.h.b16 %v538
  %v1066 = vunpack.c.l.b16 %v539
  %v1067 = vunpack.c.h.b16 %v539
  %v1068 = vunpack.c.l.b16 %v540
  %v1069 = vunpack.c.h.b16 %v540
  %v1070 = vunpack.c.l.b16 %v541
  %v1071 = vunpack.c.h.b16 %v541
  %v1072 = vunpack.c.l.b16 %v542
  %v1073 = vunpack.c.h.b16 %v542
  %v1074 = vunpack.c.l.b16 %v543
  %v1075 = vunpack.c.h.b16 %v543
  %v1076 = vunpack.c.l.b16 %v544
  %v1077 = vunpack.c.h.b16 %v544
  %v1078 = vunpack.c.l.b16 %v545
  %v1079 = vunpack.c.h.b16 %v545
  %v1080 = vunpack.c.l.b16 %v546
  %v1081 = vunpack.c.h.b16 %v546
  %v1082 = vunpack.c.l.b16 %v547
  %v1083 = vunpack.c.h.b16 %v547
  %v1084 = vunpack.c.l.b16 %v548
  %v1085 = vunpack.c.h.b16 %v548
  %v1086 = vunpack.c.l.b16 %v549
  %v1087 = vunpack.c.h.b16 %v549
  %v1088 = vunpack.c.l.b16 %v550
  %v1089 = vunpack.c.h.b16 %v550
  %v1090 = vunpack.c.l.b16 %v551
  %v1091 = vunpack.c.h.b16 %v551
  %v1092 = vunpack.c.l.b16 %v552
  %v1093 = vunpack.c.h.b16 %v552
  %v1094 = vunpack.c.l.b16 %v553
  %v1095 = vunpack.c.h.b16 %v553
  %v1096 = vunpack.c.l.b16 %v554
  %v1097 = vunpack.c.h.b16 %v554
  %v1098 = vunpack.c.l.b16 %v555
  %v1099 = vunpack.c.h.b16 %v555
  %v1100 = vunpack.c.l.b16 %v556
  %v1101 = vunpack.c.h.b16 %v556
  %v1102 = vunpack.c.l.b16 %v557
  %v1103 = vunpack.c.h.b16 %v557
  %v1104 = vunpack.c.l.b16 %v558
  %v1105 = vunpack.c.h.b16 %v558
  %v1106 = vunpack.c.l.b16 %v559
  %v1107 = vunpack.c.h.b16 %v559
  %v1108 = vunpack.c.l.b16 %v560
  %v1109 = vunpack.c.h.b16 %v560
  %v1110 = vunpack.c.l.b16 %v561
  %v1111 = vunpack.c.h.b16 %v561
  %v1112 = vunpack.c.l.b16 %v562
  %v1113 = vunpack.c.h.b16 %v562
  %v1114 = vunpack.c.l.b16 %v563
  %v1115 = vunpack.c.h.b16 %v563
  %v1116 = vunpack.c.l.b16 %v564
  %v1117 = vunpack.c.h.b16 %v564
  %v1118 = vunpack.c.l.b16 %v565
  %v1119 = vunpack.c.h.b16 %v565
  %v1120 = vunpack.c.l.b16 %v566
  %v1121 = vunpack.c.h.b16 %v566
  %v1122 = vunpack.c.l.b16 %v567
  %v1123 = vunpack.c.h.b16 %v567
  %v1124 = vunpack.c.l.b16 %v568
  %v1125 = vunpack.c.h.b16 %v568
  %v1126 = vunpack.c.l.b16 %v569
  %v1127 = vunpack.c.h.b16 %v569
  %v1128 = vunpack.c.l.b16 %v570
  %v1129 = vunpack.c.h.b16 %v570
  %v1130 = vunpack.c.l.b16 %v571
  %v1131 = vunpack.c.h.b16 %v571
  %v1132 = vunpack.c.l.b16 %v572
  %v1133 = vunpack.c.h.b16 %v572
  %v1134 = vunpack.c.l.b16 %v573
  %v1135 = vunpack.c.h.b16 %v573
  %v1136 = vunpack.c.l.b16 %v574
  %v1137 = vunpack.c.h.b16 %v574
  %v1138 = vunpack.c.l.b16 %v575
  %v1139 = vunpack.c.h.b16 %v575
  %v1140 = vunpack.c.l.b16 %v576
  %v1141 = vunpack.c.h.b16 %v576
  %v1142 = vunpack.c.l.b16 %v577
  %v1143 = vunpack.c.h.b16 %v577
  %v1144 = vunpack.c.l.b16 %v578
  %v1145 = vunpack.c.h.b16 %v578
  %v1146 = vunpack.c.l.b16 %v579
  %v1147 = vunpack.c.h.b16 %v579
  %v1148 = vunpack.c.l.b16 %v580
  %v1149 = vunpack.c.h.b16 %v580
  %v1150 = vunpack.c.l.b16 %v581
  %v1151 = vunpack.c.h.b16 %v581
  %v1152 = vunpack.c.l.b16 %v582
  %v1153 = vunpack.c.h.b16 %v582
  %v1154 = vunpack.c.l.b16 %v583
  %v1155 = vunpack.c.h.b16 %v583
  %v1156 = vunpack.c.l.b16 %v584
  %v1157 = vunpack.c.h.b16 %v584
  %v1158 = vunpack.c.l.b16 %v585
  %v1159 = vunpack.c.h.b16 %v585
  %v1160 = vunpack.c.l.b16 %v586
  %v1161 = vunpack.c.h.b16 %v586
  %v1162 = vunpack.c.l.b16 %v587
  %v1163 = vunpack.c.h.b16 %v587
  %v1164 = vunpack.c.l.b16 %v588
  %v1165 = vunpack.c.h.b16 %v588
  %v1166 = vunpack.c.l.b16 %v589
  %v1167 = vunpack.c.h.b16 %v589
  %v1168 = vunpack.c.l.b16 %v590
  %v1169 = vunpack.c.h.b16 %v590
  %v1170 = vunpack.c.l.b16 %v591
  %v1171 = vunpack.c.h.b16 %v591
  %v1172 = vunpack.c.l.b16 %v592
  %v1173 = vunpack.c.h.b16 %v592
  %v1174 = vunpack.c.l.b16 %v593
  %v1175 = vunpack.c.h.b16 %v593
  %v1176 = vunpack.c.l.b16 %v594
  %v1177 = vunpack.c.h.b16 %v594
  %v1178 = vunpack.c.l.b16 %v595
  %v1179 = vunpack.c.h.b16 %v595
  %v1180 = vunpack.c.l.b16 %v596
  %v1181 = vunpack.c.h.b16 %v596
  %v1182 = vunpack.c.l.b16 %v597
  %v1183 = vunpack.c.h.b16 %v597
  %v1184 = vunpack.c.l.b16 %v598
  %v1185 = vunpack.c.h.b16 %v598
  %v1186 = vunpack.c.l.b16 %v599
  %v1187 = vunpack.c.h.b16 %v599
  %v1188 = vunpack.c.l.b16 %v600
  %v1189 = vunpack.c.h.b16 %v600
  %v1190 = vunpack.c.l.b16 %v601
  %v1191 = vunpack.c.h.b16 %v601
  %v1192 = vunpack.c.l.b16 %v602
  %v1193 = vunpack.c.h.b16 %v602
  %v1194 = vunpack.c.l.b16 %v603
  %v1195 = vunpack.c.h.b16 %v603
  %v1196 = vunpack.c.l.b16 %v604
  %v1197 = vunpack.c.h.b16 %v604
  %v1198 = vunpack.c.l.b16 %v605
  %v1199 = vunpack.c.h.b16 %v605
  %v1200 = vunpack.c.l.b16 %v606
  %v1201 = vunpack.c.h.b16 %v606
  %v1202 = vunpack.c.l.b16 %v607
  %v1203 = vunpack.c.h.b16 %v607
  %v1204 = vunpack.c.l.b16 %v608
  %v1205 = vunpack.c.h.b16 %v608
  %v1206 = vunpack.c.l.b16 %v609
  %v1207 = vunpack.c.h.b16 %v609
  %v1208 = vunpack.c.l.b16 %v610
  %v1209 = vunpack.c.h.b16 %v610
  %v1210 = vunpack.c.l.b16 %v611
  %v1211 = vunpack.c.h.b16 %v611
  %v1212 = vunpack.c.l.b16 %v612
  %v1213 = vunpack.c.h.b16 %v612
  %v1214 = vunpack.c.l.b16 %v613
  %v1215 = vunpack.c.h.b16 %v613
  %v1216 = vunpack.c.l.b16 %v614
  %v1217 = vunpack.c.h.b16 %v614
  %v1218 = vunpack.c.l.b16 %v615
  %v1219 = vunpack.c.h.b16 %v615
  %v1220 = vunpack.c.l.b16 %v616
  %v1221 = vunpack.c.h.b16 %v616
  %v1222 = vunpack.c.l.b16 %v617
  %v1223 = vunpack.c.h.b16 %v617
  %v1224 = vunpack.c.l.b16 %v618
  %v1225 = vunpack.c.h.b16 %v618
  %v1226 = vunpack.c.l.b16 %v619
  %v1227 = vunpack.c.h.b16 %v619
  %v1228 = vunpack.c.l.b16 %v620
  %v1229 = vunpack.c.h.b16 %v620
  %v1230 = vunpack.c.l.b16 %v621
  %v1231 = vunpack.c.h.b16 %v621
  %v1232 = vpack.c.b16 %v844, %v840
  %v1233 = vpack.c.b16 %v845, %v841
  %v1234 = vpack.c.b16 %v846, %v842
  %v1235 = vpack.c.b16 %v847, %v843
  %v1236 = vpack.c.b16 %v852, %v848
  %v1237 = vpack.c.b16 %v853, %v849
  %v1238 = vpack.c.b16 %v854, %v850
  %v1239 = vpack.c.b16 %v855, %v851
  %v1240 = vpack.c.b16 %v860, %v856
  %v1241 = vpack.c.b16 %v861, %v857
  %v1242 = vpack.c.b16 %v862, %v858
  %v1243 = vpack.c.b16 %v863, %v859
  %v1244 = vpack.c.b16 %v868, %v864
  %v1245 = vpack.c.b16 %v869, %v865
  %v1246 = vpack.c.b16 %v870, %v866
  %v1247 = vpack.c.b16 %v871, %v867
  %v1248 = vpack.c.b16 %v876, %v872
  %v1249 = vpack.c.b16 %v877, %v873
  %v1250 = vpack.c.b16 %v878, %v874
  %v1251 = vpack.c.b16 %v879, %v875
  %v1252 = vpack.c.b16 %v884, %v880
  %v1253 = vpack.c.b16 %v885, %v881
  %v1254 = vpack.c.b16 %v886, %v882
  %v1255 = vpack.c.b16 %v887, %v883
  %v1256 = vpack.c.b16 %v892, %v888
  %v1257 = vpack.c.b16 %v893, %v889
  %v1258 = vpack.c.b16 %v894, %v890
  %v1259 = vpack.c.b16 %v895, %v891
  %v1260 = vpack.c.b16 %v900, %v896
  %v1261 = vpack.c.b16 %v901, %v897
  %v1262 = vpack.c.b16 %v902, %v898
  %v1263 = vpack.c.b16 %v903, %v899
  %v1264 = vpack.c.b16 %v908, %v904
  %v1265 = vpack.c.b16 %v909, %v905
  %v1266 = vpack.c.b16 %v910, %v906
  %v1267 = vpack.c.b16 %v911, %v907
  %v1268 = vpack.c.b16 %v916, %v912
  %v1269 = vpack.c.b16 %v917, %v913
  %v1270 = vpack.c.b16 %v918, %v914
  %v1271 = vpack.c.b16 %v919, %v915
  %v1272 = vpack.c.b16 %v924, %v920
  %v1273 = vpack.c.b16 %v925, %v921
  %v1274 = vpack.c.b16 %v926, %v922
  %v1275 = vpack.c.b16 %v927, %v923
  %v1276 = vpack.c.b16 %v932, %v928
  %v1277 = vpack.c.b16 %v933, %v929
  %v1278 = vpack.c.b16 %v934, %v930
  %v1279 = vpack.c.b16 %v935, %v931
  %v1280 = vpack.c.b16 %v940, %v936
  %v1281 = vpack.c.b16 %v941, %v937
  %v1282 = vpack.c.b16 %v942, %v938
  %v1283 = vpack.c.b16 %v943, %v939
  %v1284 = vpack.c.b16 %v948, %v944
  %v1285 = vpack.c.b16 %v949, %v945
  %v1286 = vpack.c.b16 %v950, %v946
  %v1287 = vpack.c.b16 %v951, %v947
  %v1288 = vpack.c.b16 %v956, %v952
  %v1289 = vpack.c.b16 %v957, %v953
  %v1290 = vpack.c.b16 %v958, %v954
  %v1291 = vpack.c.b16 %v959, %v955
  %v1292 = vpack.c.b16 %v964, %v960
  %v1293 = vpack.c.b16 %v965, %v961
  %v1294 = vpack.c.b16 %v966, %v962
  %v1295 = vpack.c.b16 %v967, %v963
  %v1296 = vpack.c.b16 %v972, %v968
  %v1297 = vpack.c.b16 %v973, %v969
  %v1298 = vpack.c.b16 %v974, %v970
  %v1299 = vpack.c.b16 %v975, %v971
  %v1300 = vpack.c.b16 %v980, %v976
  %v1301 = vpack.c.b16 %v981, %v977
  %v1302 = vpack.c.b16 %v982, %v978
  %v1303 = vpack.c.b16 %v983, %v979
  %v1304 = vpack.c.b16 %v988, %v984
  %v1305 = vpack.c.b16 %v989, %v985
  %v1306 = vpack.c.b16 %v990, %v986
  %v1307 = vpack.c.b16 %v991, %v987
  %v1308 = vpack.c.b16 %v996, %v992
  %v1309 = vpack.c.b16 %v997, %v993
  %v1310 = vpack.c.b16 %v998, %v994
  %v1311 = vpack.c.b16 %v999, %v995
  %v1312 = vpack.c.b16 %v1004, %v1000
  %v1313 = vpack.c.b16 %v1005, %v1001
  %v1314 = vpack.c.b16 %v1006, %v1002
  %v1315 = vpack.c.b16 %v1007, %v1003
  %v1316 = vpack.c.b16 %v1012, %v1008
  %v1317 = vpack.c.b16 %v1013, %v1009
  %v1318 = vpack.c.b16 %v1014, %v1010
  %v1319 = vpack.c.b16 %v1015, %v1011
  %v1320 = vpack.c.b16 %v1020, %v1016
  %v1321 = vpack.c.b16 %v1021, %v1017
  %v1322 = vpack.c.b16 %v1022, %v1018
  %v1323 = vpack.c.b16 %v1023, %v1019
  %v1324 = vpack.c.b16 %v1028, %v1024
  %v1325 = vpack.c.b16 %v1029, %v1025
  %v1326 = vpack.c.b16 %v1030, %v1026
  %v1327 = vpack.c.b16 %v1031, %v1027
  %v1328 = vpack.c.b16 %v1036, %v1032
  %v1329 = vpack.c.b16 %v1037, %v1033
  %v1330 = vpack.c.b16 %v1038, %v1034
  %v1331 = vpack.c.b16 %v1039, %v1035
  %v1332 = vpack.c.b16 %v1044, %v1040
  %v1333 = vpack.c.b16 %v1045, %v1041
  %v1334 = vpack.c.b16 %v1046, %v1042
  %v1335 = vpack.c.b16 %v1047, %v1043
  %v1336 = vpack.c.b16 %v1052, %v1048
  %v1337 = vpack.c.b16 %v1053, %v1049
  %v1338 = vpack.c.b16 %v1054, %v1050
  %v1339 = vpack.c.b16 %v1055, %v1051
  %v1340 = vpack.c.b16 %v1060, %v1056
  %v1341 = vpack.c.b16 %v1061, %v1057
  %v1342 = vpack.c.b16 %v1062, %v1058
  %v1343 = vpack.c.b16 %v1063, %v1059
  %v1344 = vpack.c.b16 %v1068, %v1064
  %v1345 = vpack.c.b16 %v1069, %v1065
  %v1346 = vpack.c.b16 %v1070, %v1066
  %v1347 = vpack.c.b16 %v1071, %v1067
  %v1348 = vpack.c.b16 %v1076, %v1072
  %v1349 = vpack.c.b16 %v1077, %v1073
  %v1350 = vpack.c.b16 %v1078, %v1074
  %v1351 = vpack.c.b16 %v1079, %v1075
  %v1352 = vpack.c.b16 %v1084, %v1080
  %v1353 = vpack.c.b16 %v1085, %v1081
  %v1354 = vpack.c.b16 %v1086, %v1082
  %v1355 = vpack.c.b16 %v1087, %v1083
  %v1356 = vpack.c.b16 %v1092, %v1088
  %v1357 = vpack.c.b16 %v1093, %v1089
  %v1358 = vpack.c.b16 %v1094, %v1090
  %v1359 = vpack.c.b16 %v1095, %v1091
  %v1360 = vpack.c.b16 %v1100, %v1096
  %v1361 = vpack.c.b16 %v1101, %v1097
  %v1362 = vpack.c.b16 %v1102, %v1098
  %v1363 = vpack.c.b16 %v1103, %v1099
  %v1364 = vpack.c.b16 %v1108, %v1104
  %v1365 = vpack.c.b16 %v1109, %v1105
  %v1366 = vpack.c.b16 %v1110, %v1106
  %v1367 = vpack.c.b16 %v1111, %v1107
  %v1368 = vpack.c.b16 %v1116, %v1112
  %v1369 = vpack.c.b16 %v1117, %v1113
  %v1370 = vpack.c.b16 %v1118, %v1114
  %v1371 = vpack.c.b16 %v1119, %v1115
  %v1372 = vpack.c.b16 %v1124, %v1120
  %v1373 = vpack.c.b16 %v1125, %v1121
  %v1374 = vpack.c.b16 %v1126, %v1122
  %v1375 = vpack.c.b16 %v1127, %v1123
  %v1376 = vpack.c.b16 %v1132, %v1128
  %v1377 = vpack.c.b16 %v1133, %v1129
  %v1378 = vpack.c.b16 %v1134, %v1130
  %v1379 = vpack.c.b16 %v1135, %v1131
  %v1380 = vpack.c.b16 %v1140, %v1136
  %v1381 = vpack.c.b16 %v1141, %v1137
  %v1382 = vpack.c.b16 %v1142, %v1138
  %v1383 = vpack.c.b16 %v1143, %v1139
  %v1384 = vpack.c.b16 %v1148, %v1144
  %v1385 = vpack.c.b16 %v1149, %v1145
  %v1386 = vpack.c.b16 %v1150, %v1146
  %v1387 = vpack.c.b16 %v1151, %v1147
  %v1388 = vpack.c.b16 %v1156, %v1152
  %v1389 = vpack.c.b16 %v1157, %v1153
  %v1390 = vpack.c.b16 %v1158, %v1154
  %v1391 = vpack.c.b16 %v1159, %v1155
  %v1392 = vpack.c.b16 %v1164, %v1160
  %v1393 = vpack.c.b16 %v1165, %v1161
  %v1394 = vpack.c.b16 %v1166, %v1162
  %v1395 = vpack.c.b16 %v1167, %v1163
  %v1396 = vpack.c.b16 %v1172, %v1168
  %v1397 = vpack.c.b16 %v1173, %v1169
  %v1398 = vpack.c.b16 %v1174, %v1170
  %v1399 = vpack.c.b16 %v1175, %v1171
  %v1400 = vpack.c.b16 %v1180, %v1176
  %v1401 = vpack.c.b16 %v1181, %v1177
  %v1402 = vpack.c.b16 %v1182, %v1178
  %v1403 = vpack.c.b16 %v1183, %v1179
  %v1404 = vpack.c.b16 %v1188, %v1184
  %v1405 = vpack.c.b16 %v1189, %v1185
  %v1406 = vpack.c.b16 %v1190, %v1186
  %v1407 = vpack.c.b16 %v1191, %v1187
  %v1408 = vpack.c.b16 %v1196, %v1192
  %v1409 = vpack.c.b16 %v1197, %v1193
  %v1410 = vpack.c.b16 %v1198, %v1194
  %v1411 = vpack.c.b16 %v1199, %v1195
  %v1412 = vpack.c.b16 %v1204, %v1200
  %v1413 = vpack.c.b16 %v1205, %v1201
  %v1414 = vpack.c.b16 %v1206, %v1202
  %v1415 = vpack.c.b16 %v1207, %v1203
  %v1416 = vpack.c.b16 %v1212, %v1208
  %v1417 = vpack.c.b16 %v1213, %v1209
  %v1418 = vpack.c.b16 %v1214, %v1210
  %v1419 = vpack.c.b16 %v1215, %v1211
  %v1420 = vpack.c.b16 %v1220, %v1216
  %v1421 = vpack.c.b16 %v1221, %v1217
  %v1422 = vpack.c.b16 %v1222, %v1218
  %v1423 = vpack.c.b16 %v1223, %v1219
  %v1424 = vpack.c.b16 %v1228, %v1224
  %v1425 = vpack.c.b16 %v1229, %v1225
  %v1426 = vpack.c.b16 %v1230, %v1226
  %v1427 = vpack.c.b16 %v1231, %v1227
  %vm1624 = vcmask 130048
  %v1626 = vsel %vm1624, %v299, 0
  %v1629 = vsel %vm1624, %v306, 0
  %v1632 = vsel %vm1624, %v313, 0
  %v1635 = vsel %vm1624, %v320, 0
  %v1638 = vsel %vm1624, %v327, 0
  %v1641 = vsel %vm1624, %v334, 0
  %v1644 = vsel %vm1624, %v341, 0
  %v1647 = vsel %vm1624, %v348, 0
  %v1650 = vsel %vm1624, %v355, 0
  %v1653 = vsel %vm1624, %v362, 0
  %v1656 = vsel %vm1624, %v369, 0
  %v1659 = vsel %vm1624, %v376, 0
  %v1662 = vsel %vm1624, %v383, 0
  %v1665 = vsel %vm1624, %v390, 0
  %v1668 = vsel %vm1624, %v397, 0
  %v1671 = vsel %vm1624, %v404, 0
  %v1674 = vsel %vm1624, %v411, 0
  %v1677 = vsel %vm1624, %v418, 0
  %v1680 = vsel %vm1624, %v425, 0
  %1682 = vmatprep.subr.bf16.mxu0 %v1233
  %1683 = vmatpush1.bf16.msra.mxu0 %v1232
  %1684 = vmatprep.subr.bf16.mxu0 %v1237
  %1685 = vmatpush1.bf16.msra.mxu0 %v1236
  %1686 = vmatprep.subr.bf16.mxu0 %v1241
  %1687 = vmatpush1.bf16.msra.mxu0 %v1240
  %1688 = vmatprep.subr.bf16.mxu0 %v1245
  %1689 = vmatpush1.bf16.msra.mxu0 %v1244
  %1690 = vmatprep.subr.bf16.mxu0 %v1249
  %1691 = vmatpush1.bf16.msra.mxu0 %v1248
  %1692 = vmatprep.subr.bf16.mxu0 %v1253
  %1693 = vmatpush1.bf16.msra.mxu0 %v1252
  %1694 = vmatprep.subr.bf16.mxu0 %v1257
  %1695 = vmatpush1.bf16.msra.mxu0 %v1256
  %1696 = vmatprep.subr.bf16.mxu0 %v1261
  %1697 = vmatpush1.bf16.msra.mxu0 %v1260
  %1698 = vmatprep.subr.bf16.mxu0 %v1265
  %1699 = vmatpush1.bf16.msra.mxu0 %v1264
  %1700 = vmatprep.subr.bf16.mxu0 %v1269
  %1701 = vmatpush1.bf16.msra.mxu0 %v1268
  %1702 = vmatprep.subr.bf16.mxu0 %v1273
  %1703 = vmatpush1.bf16.msra.mxu0 %v1272
  %1704 = vmatprep.subr.bf16.mxu0 %v1277
  %1705 = vmatpush1.bf16.msra.mxu0 %v1276
  %1706 = vmatprep.subr.bf16.mxu0 %v1281
  %1707 = vmatpush1.bf16.msra.mxu0 %v1280
  %1708 = vmatprep.subr.bf16.mxu0 %v1285
  %1709 = vmatpush1.bf16.msra.mxu0 %v1284
  %1710 = vmatprep.subr.bf16.mxu0 %v1289
  %1711 = vmatpush1.bf16.msra.mxu0 %v1288
  %1712 = vmatprep.subr.bf16.mxu0 %v1293
  %1713 = vmatpush1.bf16.msra.mxu0 %v1292
  %1714 = vmatprep.mubr.bf16.mxu0 %v294
  %1715 = vmatmul.mubr.bf16.gmra.mrb[0].mxu0 %v293
  %v1716 = vpop.f32.mrb[0].mxu0
  %v1717 = vadd.f32 %v627, %v1716
  %v1718 = vpop.f32.mrb[0].mxu0
  %v1719 = vadd.f32 %v631, %v1718
  %v1720 = vpop.f32.mrb[0].mxu0
  %v1721 = vadd.f32 %v627, %v1720
  %v1722 = vpop.f32.mrb[0].mxu0
  %v1723 = vadd.f32 %v631, %v1722
  %1724 = vmatprep.mubr.bf16.mxu0 %v301
  %1725 = vmatmul.mubr.bf16.gmra.mrb[0].mxu0 %v300
  %v1726 = vpop.f32.mrb[0].mxu0
  %v1727 = vadd.f32 %v627, %v1726
  %v1728 = vpop.f32.mrb[0].mxu0
  %v1729 = vadd.f32 %v631, %v1728
  %v1730 = vpop.f32.mrb[0].mxu0
  %v1731 = vadd.f32 %v627, %v1730
  %v1732 = vpop.f32.mrb[0].mxu0
  %v1733 = vadd.f32 %v631, %v1732
  %1734 = vmatprep.mubr.bf16.mxu0 %v308
  %1735 = vmatmul.mubr.bf16.gmra.mrb[0].mxu0 %v307
  %v1736 = vpop.f32.mrb[0].mxu0
  %v1737 = vadd.f32 %v627, %v1736
  %v1738 = vpop.f32.mrb[0].mxu0
  %v1739 = vadd.f32 %v631, %v1738
  %v1740 = vpop.f32.mrb[0].mxu0
  %v1741 = vadd.f32 %v627, %v1740
  %v1742 = vpop.f32.mrb[0].mxu0
  %v1743 = vadd.f32 %v631, %v1742
  %1744 = vmatprep.mubr.bf16.mxu0 %v315
  %1745 = vmatmul.mubr.bf16.gmra.mrb[0].mxu0 %v314
  %v1746 = vpop.f32.mrb[0].mxu0
  %v1747 = vadd.f32 %v627, %v1746
  %v1748 = vpop.f32.mrb[0].mxu0
  %v1749 = vadd.f32 %v631, %v1748
  %v1750 = vpop.f32.mrb[0].mxu0
  %v1751 = vadd.f32 %v627, %v1750
  %v1752 = vpop.f32.mrb[0].mxu0
  %v1753 = vadd.f32 %v631, %v1752
  %1754 = vmatprep.mubr.bf16.mxu0 %v322
  %1755 = vmatmul.mubr.bf16.gmra.mrb[0].mxu0 %v321
  %v1756 = vpop.f32.mrb[0].mxu0
  %v1757 = vadd.f32 %v627, %v1756
  %v1758 = vpop.f32.mrb[0].mxu0
  %v1759 = vadd.f32 %v631, %v1758
  %v1760 = vpop.f32.mrb[0].mxu0
  %v1761 = vadd.f32 %v627, %v1760
  %v1762 = vpop.f32.mrb[0].mxu0
  %v1763 = vadd.f32 %v631, %v1762
  %1764 = vmatprep.mubr.bf16.mxu0 %v329
  %1765 = vmatmul.mubr.bf16.gmra.mrb[0].mxu0 %v328
  %v1766 = vpop.f32.mrb[0].mxu0
  %v1767 = vadd.f32 %v627, %v1766
  %v1768 = vpop.f32.mrb[0].mxu0
  %v1769 = vadd.f32 %v631, %v1768
  %v1770 = vpop.f32.mrb[0].mxu0
  %v1771 = vadd.f32 %v627, %v1770
  %v1772 = vpop.f32.mrb[0].mxu0
  %v1773 = vadd.f32 %v631, %v1772
  %1774 = vmatprep.mubr.bf16.mxu0 %v336
  %1775 = vmatmul.mubr.bf16.gmra.mrb[0].mxu0 %v335
  %v1776 = vpop.f32.mrb[0].mxu0
  %v1777 = vadd.f32 %v627, %v1776
  %v1778 = vpop.f32.mrb[0].mxu0
  %v1779 = vadd.f32 %v631, %v1778
  %v1780 = vpop.f32.mrb[0].mxu0
  %v1781 = vadd.f32 %v627, %v1780
  %v1782 = vpop.f32.mrb[0].mxu0
  %v1783 = vadd.f32 %v631, %v1782
  %1784 = vmatprep.mubr.bf16.mxu0 %v343
  %1785 = vmatmul.mubr.bf16.gmra.mrb[0].mxu0 %v342
  %v1786 = vpop.f32.mrb[0].mxu0
  %v1787 = vadd.f32 %v627, %v1786
  %v1788 = vpop.f32.mrb[0].mxu0
  %v1789 = vadd.f32 %v631, %v1788
  %v1790 = vpop.f32.mrb[0].mxu0
  %v1791 = vadd.f32 %v627, %v1790
  %v1792 = vpop.f32.mrb[0].mxu0
  %v1793 = vadd.f32 %v631, %v1792
  %1794 = vmatprep.mubr.bf16.mxu0 %v350
  %1795 = vmatmul.mubr.bf16.gmra.mrb[0].mxu0 %v349
  %v1796 = vpop.f32.mrb[0].mxu0
  %v1797 = vadd.f32 %v627, %v1796
  %v1798 = vpop.f32.mrb[0].mxu0
  %v1799 = vadd.f32 %v631, %v1798
  %v1800 = vpop.f32.mrb[0].mxu0
  %v1801 = vadd.f32 %v627, %v1800
  %v1802 = vpop.f32.mrb[0].mxu0
  %v1803 = vadd.f32 %v631, %v1802
  %1804 = vmatprep.mubr.bf16.mxu0 %v357
  %1805 = vmatmul.mubr.bf16.gmra.mrb[0].mxu0 %v356
  %v1806 = vpop.f32.mrb[0].mxu0
  %v1807 = vadd.f32 %v627, %v1806
  %v1808 = vpop.f32.mrb[0].mxu0
  %v1809 = vadd.f32 %v631, %v1808
  %v1810 = vpop.f32.mrb[0].mxu0
  %v1811 = vadd.f32 %v627, %v1810
  %v1812 = vpop.f32.mrb[0].mxu0
  %v1813 = vadd.f32 %v631, %v1812
  %1814 = vmatprep.mubr.bf16.mxu0 %v364
  %1815 = vmatmul.mubr.bf16.gmra.mrb[0].mxu0 %v363
  %v1816 = vpop.f32.mrb[0].mxu0
  %v1817 = vadd.f32 %v627, %v1816
  %v1818 = vpop.f32.mrb[0].mxu0
  %v1819 = vadd.f32 %v631, %v1818
  %v1820 = vpop.f32.mrb[0].mxu0
  %v1821 = vadd.f32 %v627, %v1820
  %v1822 = vpop.f32.mrb[0].mxu0
  %v1823 = vadd.f32 %v631, %v1822
  %1824 = vmatprep.mubr.bf16.mxu0 %v371
  %1825 = vmatmul.mubr.bf16.gmra.mrb[0].mxu0 %v370
  %v1826 = vpop.f32.mrb[0].mxu0
  %v1827 = vadd.f32 %v627, %v1826
  %v1828 = vpop.f32.mrb[0].mxu0
  %v1829 = vadd.f32 %v631, %v1828
  %v1830 = vpop.f32.mrb[0].mxu0
  %v1831 = vadd.f32 %v627, %v1830
  %v1832 = vpop.f32.mrb[0].mxu0
  %v1833 = vadd.f32 %v631, %v1832
  %1834 = vmatprep.mubr.bf16.mxu0 %v378
  %1835 = vmatmul.mubr.bf16.gmra.mrb[0].mxu0 %v377
  %v1836 = vpop.f32.mrb[0].mxu0
  %v1837 = vadd.f32 %v627, %v1836
  %v1838 = vpop.f32.mrb[0].mxu0
  %v1839 = vadd.f32 %v631, %v1838
  %v1840 = vpop.f32.mrb[0].mxu0
  %v1841 = vadd.f32 %v627, %v1840
  %v1842 = vpop.f32.mrb[0].mxu0
  %v1843 = vadd.f32 %v631, %v1842
  %1844 = vmatprep.mubr.bf16.mxu0 %v385
  %1845 = vmatmul.mubr.bf16.gmra.mrb[0].mxu0 %v384
  %v1846 = vpop.f32.mrb[0].mxu0
  %v1847 = vadd.f32 %v627, %v1846
  %v1848 = vpop.f32.mrb[0].mxu0
  %v1849 = vadd.f32 %v631, %v1848
  %v1850 = vpop.f32.mrb[0].mxu0
  %v1851 = vadd.f32 %v627, %v1850
  %v1852 = vpop.f32.mrb[0].mxu0
  %v1853 = vadd.f32 %v631, %v1852
  %1854 = vmatprep.mubr.bf16.mxu0 %v392
  %1855 = vmatmul.mubr.bf16.gmra.mrb[0].mxu0 %v391
  %v1856 = vpop.f32.mrb[0].mxu0
  %v1857 = vadd.f32 %v627, %v1856
  %v1858 = vpop.f32.mrb[0].mxu0
  %v1859 = vadd.f32 %v631, %v1858
  %v1860 = vpop.f32.mrb[0].mxu0
  %v1861 = vadd.f32 %v627, %v1860
  %v1862 = vpop.f32.mrb[0].mxu0
  %v1863 = vadd.f32 %v631, %v1862
  %1864 = vmatprep.mubr.bf16.mxu0 %v399
  %1865 = vmatmul.mubr.bf16.gmra.mrb[0].mxu0 %v398
  %v1866 = vpop.f32.mrb[0].mxu0
  %v1867 = vadd.f32 %v627, %v1866
  %v1868 = vpop.f32.mrb[0].mxu0
  %v1869 = vadd.f32 %v631, %v1868
  %v1870 = vpop.f32.mrb[0].mxu0
  %v1871 = vadd.f32 %v627, %v1870
  %v1872 = vpop.f32.mrb[0].mxu0
  %v1873 = vadd.f32 %v631, %v1872
  %1874 = vmatprep.mubr.bf16.mxu0 %v406
  %1875 = vmatmul.mubr.bf16.gmra.mrb[0].mxu0 %v405
  %v1876 = vpop.f32.mrb[0].mxu0
  %v1877 = vadd.f32 %v627, %v1876
  %v1878 = vpop.f32.mrb[0].mxu0
  %v1879 = vadd.f32 %v631, %v1878
  %v1880 = vpop.f32.mrb[0].mxu0
  %v1881 = vadd.f32 %v627, %v1880
  %v1882 = vpop.f32.mrb[0].mxu0
  %v1883 = vadd.f32 %v631, %v1882
  %1884 = vmatprep.mubr.bf16.mxu0 %v413
  %1885 = vmatmul.mubr.bf16.gmra.mrb[0].mxu0 %v412
  %v1886 = vpop.f32.mrb[0].mxu0
  %v1887 = vadd.f32 %v627, %v1886
  %v1888 = vpop.f32.mrb[0].mxu0
  %v1889 = vadd.f32 %v631, %v1888
  %v1890 = vpop.f32.mrb[0].mxu0
  %v1891 = vadd.f32 %v627, %v1890
  %v1892 = vpop.f32.mrb[0].mxu0
  %v1893 = vadd.f32 %v631, %v1892
  %1894 = vmatprep.mubr.bf16.mxu0 %v420
  %1895 = vmatmul.mubr.bf16.gmra.mrb[0].mxu0 %v419
  %v1896 = vpop.f32.mrb[0].mxu0
  %v1897 = vadd.f32 %v627, %v1896
  %v1898 = vpop.f32.mrb[0].mxu0
  %v1899 = vadd.f32 %v631, %v1898
  %v1900 = vpop.f32.mrb[0].mxu0
  %v1901 = vadd.f32 %v627, %v1900
  %v1902 = vpop.f32.mrb[0].mxu0
  %v1903 = vadd.f32 %v631, %v1902
  %1904 = vdwg.mxu0
  %1905 = vmatprep.subr.bf16.mxu0 %v1297
  %1906 = vmatpush1.bf16.msra.mxu0 %v1296
  %1907 = vmatprep.subr.bf16.mxu0 %v1301
  %1908 = vmatpush1.bf16.msra.mxu0 %v1300
  %1909 = vmatprep.subr.bf16.mxu0 %v1305
  %1910 = vmatpush1.bf16.msra.mxu0 %v1304
  %1911 = vmatprep.subr.bf16.mxu0 %v1309
  %1912 = vmatpush1.bf16.msra.mxu0 %v1308
  %1913 = vmatprep.subr.bf16.mxu0 %v1313
  %1914 = vmatpush1.bf16.msra.mxu0 %v1312
  %1915 = vmatprep.subr.bf16.mxu0 %v1317
  %1916 = vmatpush1.bf16.msra.mxu0 %v1316
  %1917 = vmatprep.subr.bf16.mxu0 %v1321
  %1918 = vmatpush1.bf16.msra.mxu0 %v1320
  %1919 = vmatprep.subr.bf16.mxu0 %v1325
  %1920 = vmatpush1.bf16.msra.mxu0 %v1324
  %1921 = vmatprep.subr.bf16.mxu0 %v1329
  %1922 = vmatpush1.bf16.msra.mxu0 %v1328
  %1923 = vmatprep.subr.bf16.mxu0 %v1333
  %1924 = vmatpush1.bf16.msra.mxu0 %v1332
  %1925 = vmatprep.subr.bf16.mxu0 %v1337
  %1926 = vmatpush1.bf16.msra.mxu0 %v1336
  %1927 = vmatprep.subr.bf16.mxu0 %v1341
  %1928 = vmatpush1.bf16.msra.mxu0 %v1340
  %1929 = vmatprep.subr.bf16.mxu0 %v1345
  %1930 = vmatpush1.bf16.msra.mxu0 %v1344
  %1931 = vmatprep.subr.bf16.mxu0 %v1349
  %1932 = vmatpush1.bf16.msra.mxu0 %v1348
  %1933 = vmatprep.subr.bf16.mxu0 %v1353
  %1934 = vmatpush1.bf16.msra.mxu0 %v1352
  %1935 = vmatprep.subr.bf16.mxu0 %v1357
  %1936 = vmatpush1.bf16.msra.mxu0 %v1356
  %1937 = vmatprep.mubr.bf16.mxu0 %v296
  %1938 = vmatmul.mubr.bf16.gmra.mrb[0].mxu0 %v295
  %v1939 = vpop.f32.mrb[0].mxu0
  %v1940 = vadd.f32 %v1717, %v1939
  %v1941 = vpop.f32.mrb[0].mxu0
  %v1942 = vadd.f32 %v1719, %v1941
  %v1943 = vpop.f32.mrb[0].mxu0
  %v1944 = vadd.f32 %v1721, %v1943
  %v1945 = vpop.f32.mrb[0].mxu0
  %v1946 = vadd.f32 %v1723, %v1945
  %1947 = vmatprep.mubr.bf16.mxu0 %v303
  %1948 = vmatmul.mubr.bf16.gmra.mrb[0].mxu0 %v302
  %v1949 = vpop.f32.mrb[0].mxu0
  %v1950 = vadd.f32 %v1727, %v1949
  %v1951 = vpop.f32.mrb[0].mxu0
  %v1952 = vadd.f32 %v1729, %v1951
  %v1953 = vpop.f32.mrb[0].mxu0
  %v1954 = vadd.f32 %v1731, %v1953
  %v1955 = vpop.f32.mrb[0].mxu0
  %v1956 = vadd.f32 %v1733, %v1955
  %1957 = vmatprep.mubr.bf16.mxu0 %v310
  %1958 = vmatmul.mubr.bf16.gmra.mrb[0].mxu0 %v309
  %v1959 = vpop.f32.mrb[0].mxu0
  %v1960 = vadd.f32 %v1737, %v1959
  %v1961 = vpop.f32.mrb[0].mxu0
  %v1962 = vadd.f32 %v1739, %v1961
  %v1963 = vpop.f32.mrb[0].mxu0
  %v1964 = vadd.f32 %v1741, %v1963
  %v1965 = vpop.f32.mrb[0].mxu0
  %v1966 = vadd.f32 %v1743, %v1965
  %1967 = vmatprep.mubr.bf16.mxu0 %v317
  %1968 = vmatmul.mubr.bf16.gmra.mrb[0].mxu0 %v316
  %v1969 = vpop.f32.mrb[0].mxu0
  %v1970 = vadd.f32 %v1747, %v1969
  %v1971 = vpop.f32.mrb[0].mxu0
  %v1972 = vadd.f32 %v1749, %v1971
  %v1973 = vpop.f32.mrb[0].mxu0
  %v1974 = vadd.f32 %v1751, %v1973
  %v1975 = vpop.f32.mrb[0].mxu0
  %v1976 = vadd.f32 %v1753, %v1975
  %1977 = vmatprep.mubr.bf16.mxu0 %v324
  %1978 = vmatmul.mubr.bf16.gmra.mrb[0].mxu0 %v323
  %v1979 = vpop.f32.mrb[0].mxu0
  %v1980 = vadd.f32 %v1757, %v1979
  %v1981 = vpop.f32.mrb[0].mxu0
  %v1982 = vadd.f32 %v1759, %v1981
  %v1983 = vpop.f32.mrb[0].mxu0
  %v1984 = vadd.f32 %v1761, %v1983
  %v1985 = vpop.f32.mrb[0].mxu0
  %v1986 = vadd.f32 %v1763, %v1985
  %1987 = vmatprep.mubr.bf16.mxu0 %v331
  %1988 = vmatmul.mubr.bf16.gmra.mrb[0].mxu0 %v330
  %v1989 = vpop.f32.mrb[0].mxu0
  %v1990 = vadd.f32 %v1767, %v1989
  %v1991 = vpop.f32.mrb[0].mxu0
  %v1992 = vadd.f32 %v1769, %v1991
  %v1993 = vpop.f32.mrb[0].mxu0
  %v1994 = vadd.f32 %v1771, %v1993
  %v1995 = vpop.f32.mrb[0].mxu0
  %v1996 = vadd.f32 %v1773, %v1995
  %1997 = vmatprep.mubr.bf16.mxu0 %v338
  %1998 = vmatmul.mubr.bf16.gmra.mrb[0].mxu0 %v337
  %v1999 = vpop.f32.mrb[0].mxu0
  %v2000 = vadd.f32 %v1777, %v1999
  %v2001 = vpop.f32.mrb[0].mxu0
  %v2002 = vadd.f32 %v1779, %v2001
  %v2003 = vpop.f32.mrb[0].mxu0
  %v2004 = vadd.f32 %v1781, %v2003
  %v2005 = vpop.f32.mrb[0].mxu0
  %v2006 = vadd.f32 %v1783, %v2005
  %2007 = vmatprep.mubr.bf16.mxu0 %v345
  %2008 = vmatmul.mubr.bf16.gmra.mrb[0].mxu0 %v344
  %v2009 = vpop.f32.mrb[0].mxu0
  %v2010 = vadd.f32 %v1787, %v2009
  %v2011 = vpop.f32.mrb[0].mxu0
  %v2012 = vadd.f32 %v1789, %v2011
  %v2013 = vpop.f32.mrb[0].mxu0
  %v2014 = vadd.f32 %v1791, %v2013
  %v2015 = vpop.f32.mrb[0].mxu0
  %v2016 = vadd.f32 %v1793, %v2015
  %2017 = vmatprep.mubr.bf16.mxu0 %v352
  %2018 = vmatmul.mubr.bf16.gmra.mrb[0].mxu0 %v351
  %v2019 = vpop.f32.mrb[0].mxu0
  %v2020 = vadd.f32 %v1797, %v2019
  %v2021 = vpop.f32.mrb[0].mxu0
  %v2022 = vadd.f32 %v1799, %v2021
  %v2023 = vpop.f32.mrb[0].mxu0
  %v2024 = vadd.f32 %v1801, %v2023
  %v2025 = vpop.f32.mrb[0].mxu0
  %v2026 = vadd.f32 %v1803, %v2025
  %2027 = vmatprep.mubr.bf16.mxu0 %v359
  %2028 = vmatmul.mubr.bf16.gmra.mrb[0].mxu0 %v358
  %v2029 = vpop.f32.mrb[0].mxu0
  %v2030 = vadd.f32 %v1807, %v2029
  %v2031 = vpop.f32.mrb[0].mxu0
  %v2032 = vadd.f32 %v1809, %v2031
  %v2033 = vpop.f32.mrb[0].mxu0
  %v2034 = vadd.f32 %v1811, %v2033
  %v2035 = vpop.f32.mrb[0].mxu0
  %v2036 = vadd.f32 %v1813, %v2035
  %2037 = vmatprep.mubr.bf16.mxu0 %v366
  %2038 = vmatmul.mubr.bf16.gmra.mrb[0].mxu0 %v365
  %v2039 = vpop.f32.mrb[0].mxu0
  %v2040 = vadd.f32 %v1817, %v2039
  %v2041 = vpop.f32.mrb[0].mxu0
  %v2042 = vadd.f32 %v1819, %v2041
  %v2043 = vpop.f32.mrb[0].mxu0
  %v2044 = vadd.f32 %v1821, %v2043
  %v2045 = vpop.f32.mrb[0].mxu0
  %v2046 = vadd.f32 %v1823, %v2045
  %2047 = vmatprep.mubr.bf16.mxu0 %v373
  %2048 = vmatmul.mubr.bf16.gmra.mrb[0].mxu0 %v372
  %v2049 = vpop.f32.mrb[0].mxu0
  %v2050 = vadd.f32 %v1827, %v2049
  %v2051 = vpop.f32.mrb[0].mxu0
  %v2052 = vadd.f32 %v1829, %v2051
  %v2053 = vpop.f32.mrb[0].mxu0
  %v2054 = vadd.f32 %v1831, %v2053
  %v2055 = vpop.f32.mrb[0].mxu0
  %v2056 = vadd.f32 %v1833, %v2055
  %2057 = vmatprep.mubr.bf16.mxu0 %v380
  %2058 = vmatmul.mubr.bf16.gmra.mrb[0].mxu0 %v379
  %v2059 = vpop.f32.mrb[0].mxu0
  %v2060 = vadd.f32 %v1837, %v2059
  %v2061 = vpop.f32.mrb[0].mxu0
  %v2062 = vadd.f32 %v1839, %v2061
  %v2063 = vpop.f32.mrb[0].mxu0
  %v2064 = vadd.f32 %v1841, %v2063
  %v2065 = vpop.f32.mrb[0].mxu0
  %v2066 = vadd.f32 %v1843, %v2065
  %2067 = vmatprep.mubr.bf16.mxu0 %v387
  %2068 = vmatmul.mubr.bf16.gmra.mrb[0].mxu0 %v386
  %v2069 = vpop.f32.mrb[0].mxu0
  %v2070 = vadd.f32 %v1847, %v2069
  %v2071 = vpop.f32.mrb[0].mxu0
  %v2072 = vadd.f32 %v1849, %v2071
  %v2073 = vpop.f32.mrb[0].mxu0
  %v2074 = vadd.f32 %v1851, %v2073
  %v2075 = vpop.f32.mrb[0].mxu0
  %v2076 = vadd.f32 %v1853, %v2075
  %2077 = vmatprep.mubr.bf16.mxu0 %v394
  %2078 = vmatmul.mubr.bf16.gmra.mrb[0].mxu0 %v393
  %v2079 = vpop.f32.mrb[0].mxu0
  %v2080 = vadd.f32 %v1857, %v2079
  %v2081 = vpop.f32.mrb[0].mxu0
  %v2082 = vadd.f32 %v1859, %v2081
  %v2083 = vpop.f32.mrb[0].mxu0
  %v2084 = vadd.f32 %v1861, %v2083
  %v2085 = vpop.f32.mrb[0].mxu0
  %v2086 = vadd.f32 %v1863, %v2085
  %2087 = vmatprep.mubr.bf16.mxu0 %v401
  %2088 = vmatmul.mubr.bf16.gmra.mrb[0].mxu0 %v400
  %v2089 = vpop.f32.mrb[0].mxu0
  %v2090 = vadd.f32 %v1867, %v2089
  %v2091 = vpop.f32.mrb[0].mxu0
  %v2092 = vadd.f32 %v1869, %v2091
  %v2093 = vpop.f32.mrb[0].mxu0
  %v2094 = vadd.f32 %v1871, %v2093
  %v2095 = vpop.f32.mrb[0].mxu0
  %v2096 = vadd.f32 %v1873, %v2095
  %2097 = vmatprep.mubr.bf16.mxu0 %v408
  %2098 = vmatmul.mubr.bf16.gmra.mrb[0].mxu0 %v407
  %v2099 = vpop.f32.mrb[0].mxu0
  %v2100 = vadd.f32 %v1877, %v2099
  %v2101 = vpop.f32.mrb[0].mxu0
  %v2102 = vadd.f32 %v1879, %v2101
  %v2103 = vpop.f32.mrb[0].mxu0
  %v2104 = vadd.f32 %v1881, %v2103
  %v2105 = vpop.f32.mrb[0].mxu0
  %v2106 = vadd.f32 %v1883, %v2105
  %2107 = vmatprep.mubr.bf16.mxu0 %v415
  %2108 = vmatmul.mubr.bf16.gmra.mrb[0].mxu0 %v414
  %v2109 = vpop.f32.mrb[0].mxu0
  %v2110 = vadd.f32 %v1887, %v2109
  %v2111 = vpop.f32.mrb[0].mxu0
  %v2112 = vadd.f32 %v1889, %v2111
  %v2113 = vpop.f32.mrb[0].mxu0
  %v2114 = vadd.f32 %v1891, %v2113
  %v2115 = vpop.f32.mrb[0].mxu0
  %v2116 = vadd.f32 %v1893, %v2115
  %2117 = vmatprep.mubr.bf16.mxu0 %v422
  %2118 = vmatmul.mubr.bf16.gmra.mrb[0].mxu0 %v421
  %v2119 = vpop.f32.mrb[0].mxu0
  %v2120 = vadd.f32 %v1897, %v2119
  %v2121 = vpop.f32.mrb[0].mxu0
  %v2122 = vadd.f32 %v1899, %v2121
  %v2123 = vpop.f32.mrb[0].mxu0
  %v2124 = vadd.f32 %v1901, %v2123
  %v2125 = vpop.f32.mrb[0].mxu0
  %v2126 = vadd.f32 %v1903, %v2125
  %2127 = vdwg.mxu0
  %2128 = vmatprep.subr.bf16.mxu0 %v1361
  %2129 = vmatpush1.bf16.msra.mxu0 %v1360
  %2130 = vmatprep.subr.bf16.mxu0 %v1365
  %2131 = vmatpush1.bf16.msra.mxu0 %v1364
  %2132 = vmatprep.subr.bf16.mxu0 %v1369
  %2133 = vmatpush1.bf16.msra.mxu0 %v1368
  %2134 = vmatprep.subr.bf16.mxu0 %v1373
  %2135 = vmatpush1.bf16.msra.mxu0 %v1372
  %2136 = vmatprep.subr.bf16.mxu0 %v1377
  %2137 = vmatpush1.bf16.msra.mxu0 %v1376
  %2138 = vmatprep.subr.bf16.mxu0 %v1381
  %2139 = vmatpush1.bf16.msra.mxu0 %v1380
  %2140 = vmatprep.subr.bf16.mxu0 %v1385
  %2141 = vmatpush1.bf16.msra.mxu0 %v1384
  %2142 = vmatprep.subr.bf16.mxu0 %v1389
  %2143 = vmatpush1.bf16.msra.mxu0 %v1388
  %2144 = vmatprep.subr.bf16.mxu0 %v1393
  %2145 = vmatpush1.bf16.msra.mxu0 %v1392
  %2146 = vmatprep.subr.bf16.mxu0 %v1397
  %2147 = vmatpush1.bf16.msra.mxu0 %v1396
  %2148 = vmatprep.subr.bf16.mxu0 %v1401
  %2149 = vmatpush1.bf16.msra.mxu0 %v1400
  %2150 = vmatprep.subr.bf16.mxu0 %v1405
  %2151 = vmatpush1.bf16.msra.mxu0 %v1404
  %2152 = vmatprep.subr.bf16.mxu0 %v1409
  %2153 = vmatpush1.bf16.msra.mxu0 %v1408
  %2154 = vmatprep.subr.bf16.mxu0 %v1413
  %2155 = vmatpush1.bf16.msra.mxu0 %v1412
  %2156 = vmatprep.subr.bf16.mxu0 %v1417
  %2157 = vmatpush1.bf16.msra.mxu0 %v1416
  %2158 = vmatprep.subr.bf16.mxu0 %v1421
  %2159 = vmatpush1.bf16.msra.mxu0 %v1420
  %2160 = vmatprep.mubr.bf16.mxu0 %v298
  %2161 = vmatmul.mubr.bf16.gmra.mrb[0].mxu0 %v297
  %v2162 = vpop.f32.mrb[0].mxu0
  %v2163 = vadd.f32 %v1940, %v2162
  %v2164 = vpop.f32.mrb[0].mxu0
  %v2165 = vadd.f32 %v1942, %v2164
  %v2166 = vpop.f32.mrb[0].mxu0
  %v2167 = vadd.f32 %v1944, %v2166
  %v2168 = vpop.f32.mrb[0].mxu0
  %v2169 = vadd.f32 %v1946, %v2168
  %2170 = vmatprep.mubr.bf16.mxu0 %v305
  %2171 = vmatmul.mubr.bf16.gmra.mrb[0].mxu0 %v304
  %v2172 = vpop.f32.mrb[0].mxu0
  %v2173 = vadd.f32 %v1950, %v2172
  %v2174 = vpop.f32.mrb[0].mxu0
  %v2175 = vadd.f32 %v1952, %v2174
  %v2176 = vpop.f32.mrb[0].mxu0
  %v2177 = vadd.f32 %v1954, %v2176
  %v2178 = vpop.f32.mrb[0].mxu0
  %v2179 = vadd.f32 %v1956, %v2178
  %2180 = vmatprep.mubr.bf16.mxu0 %v312
  %2181 = vmatmul.mubr.bf16.gmra.mrb[0].mxu0 %v311
  %v2182 = vpop.f32.mrb[0].mxu0
  %v2183 = vadd.f32 %v1960, %v2182
  %v2184 = vpop.f32.mrb[0].mxu0
  %v2185 = vadd.f32 %v1962, %v2184
  %v2186 = vpop.f32.mrb[0].mxu0
  %v2187 = vadd.f32 %v1964, %v2186
  %v2188 = vpop.f32.mrb[0].mxu0
  %v2189 = vadd.f32 %v1966, %v2188
  %2190 = vmatprep.mubr.bf16.mxu0 %v319
  %2191 = vmatmul.mubr.bf16.gmra.mrb[0].mxu0 %v318
  %v2192 = vpop.f32.mrb[0].mxu0
  %v2193 = vadd.f32 %v1970, %v2192
  %v2194 = vpop.f32.mrb[0].mxu0
  %v2195 = vadd.f32 %v1972, %v2194
  %v2196 = vpop.f32.mrb[0].mxu0
  %v2197 = vadd.f32 %v1974, %v2196
  %v2198 = vpop.f32.mrb[0].mxu0
  %v2199 = vadd.f32 %v1976, %v2198
  %2200 = vmatprep.mubr.bf16.mxu0 %v326
  %2201 = vmatmul.mubr.bf16.gmra.mrb[0].mxu0 %v325
  %v2202 = vpop.f32.mrb[0].mxu0
  %v2203 = vadd.f32 %v1980, %v2202
  %v2204 = vpop.f32.mrb[0].mxu0
  %v2205 = vadd.f32 %v1982, %v2204
  %v2206 = vpop.f32.mrb[0].mxu0
  %v2207 = vadd.f32 %v1984, %v2206
  %v2208 = vpop.f32.mrb[0].mxu0
  %v2209 = vadd.f32 %v1986, %v2208
  %2210 = vmatprep.mubr.bf16.mxu0 %v333
  %2211 = vmatmul.mubr.bf16.gmra.mrb[0].mxu0 %v332
  %v2212 = vpop.f32.mrb[0].mxu0
  %v2213 = vadd.f32 %v1990, %v2212
  %v2214 = vpop.f32.mrb[0].mxu0
  %v2215 = vadd.f32 %v1992, %v2214
  %v2216 = vpop.f32.mrb[0].mxu0
  %v2217 = vadd.f32 %v1994, %v2216
  %v2218 = vpop.f32.mrb[0].mxu0
  %v2219 = vadd.f32 %v1996, %v2218
  %2220 = vmatprep.mubr.bf16.mxu0 %v340
  %2221 = vmatmul.mubr.bf16.gmra.mrb[0].mxu0 %v339
  %v2222 = vpop.f32.mrb[0].mxu0
  %v2223 = vadd.f32 %v2000, %v2222
  %v2224 = vpop.f32.mrb[0].mxu0
  %v2225 = vadd.f32 %v2002, %v2224
  %v2226 = vpop.f32.mrb[0].mxu0
  %v2227 = vadd.f32 %v2004, %v2226
  %v2228 = vpop.f32.mrb[0].mxu0
  %v2229 = vadd.f32 %v2006, %v2228
  %2230 = vmatprep.mubr.bf16.mxu0 %v347
  %2231 = vmatmul.mubr.bf16.gmra.mrb[0].mxu0 %v346
  %v2232 = vpop.f32.mrb[0].mxu0
  %v2233 = vadd.f32 %v2010, %v2232
  %v2234 = vpop.f32.mrb[0].mxu0
  %v2235 = vadd.f32 %v2012, %v2234
  %v2236 = vpop.f32.mrb[0].mxu0
  %v2237 = vadd.f32 %v2014, %v2236
  %v2238 = vpop.f32.mrb[0].mxu0
  %v2239 = vadd.f32 %v2016, %v2238
  %2240 = vmatprep.mubr.bf16.mxu0 %v354
  %2241 = vmatmul.mubr.bf16.gmra.mrb[0].mxu0 %v353
  %v2242 = vpop.f32.mrb[0].mxu0
  %v2243 = vadd.f32 %v2020, %v2242
  %v2244 = vpop.f32.mrb[0].mxu0
  %v2245 = vadd.f32 %v2022, %v2244
  %v2246 = vpop.f32.mrb[0].mxu0
  %v2247 = vadd.f32 %v2024, %v2246
  %v2248 = vpop.f32.mrb[0].mxu0
  %v2249 = vadd.f32 %v2026, %v2248
  %2250 = vmatprep.mubr.bf16.mxu0 %v361
  %2251 = vmatmul.mubr.bf16.gmra.mrb[0].mxu0 %v360
  %v2252 = vpop.f32.mrb[0].mxu0
  %v2253 = vadd.f32 %v2030, %v2252
  %v2254 = vpop.f32.mrb[0].mxu0
  %v2255 = vadd.f32 %v2032, %v2254
  %v2256 = vpop.f32.mrb[0].mxu0
  %v2257 = vadd.f32 %v2034, %v2256
  %v2258 = vpop.f32.mrb[0].mxu0
  %v2259 = vadd.f32 %v2036, %v2258
  %2260 = vmatprep.mubr.bf16.mxu0 %v368
  %2261 = vmatmul.mubr.bf16.gmra.mrb[0].mxu0 %v367
  %v2262 = vpop.f32.mrb[0].mxu0
  %v2263 = vadd.f32 %v2040, %v2262
  %v2264 = vpop.f32.mrb[0].mxu0
  %v2265 = vadd.f32 %v2042, %v2264
  %v2266 = vpop.f32.mrb[0].mxu0
  %v2267 = vadd.f32 %v2044, %v2266
  %v2268 = vpop.f32.mrb[0].mxu0
  %v2269 = vadd.f32 %v2046, %v2268
  %2270 = vmatprep.mubr.bf16.mxu0 %v375
  %2271 = vmatmul.mubr.bf16.gmra.mrb[0].mxu0 %v374
  %v2272 = vpop.f32.mrb[0].mxu0
  %v2273 = vadd.f32 %v2050, %v2272
  %v2274 = vpop.f32.mrb[0].mxu0
  %v2275 = vadd.f32 %v2052, %v2274
  %v2276 = vpop.f32.mrb[0].mxu0
  %v2277 = vadd.f32 %v2054, %v2276
  %v2278 = vpop.f32.mrb[0].mxu0
  %v2279 = vadd.f32 %v2056, %v2278
  %2280 = vmatprep.mubr.bf16.mxu0 %v382
  %2281 = vmatmul.mubr.bf16.gmra.mrb[0].mxu0 %v381
  %v2282 = vpop.f32.mrb[0].mxu0
  %v2283 = vadd.f32 %v2060, %v2282
  %v2284 = vpop.f32.mrb[0].mxu0
  %v2285 = vadd.f32 %v2062, %v2284
  %v2286 = vpop.f32.mrb[0].mxu0
  %v2287 = vadd.f32 %v2064, %v2286
  %v2288 = vpop.f32.mrb[0].mxu0
  %v2289 = vadd.f32 %v2066, %v2288
  %2290 = vmatprep.mubr.bf16.mxu0 %v389
  %2291 = vmatmul.mubr.bf16.gmra.mrb[0].mxu0 %v388
  %v2292 = vpop.f32.mrb[0].mxu0
  %v2293 = vadd.f32 %v2070, %v2292
  %v2294 = vpop.f32.mrb[0].mxu0
  %v2295 = vadd.f32 %v2072, %v2294
  %v2296 = vpop.f32.mrb[0].mxu0
  %v2297 = vadd.f32 %v2074, %v2296
  %v2298 = vpop.f32.mrb[0].mxu0
  %v2299 = vadd.f32 %v2076, %v2298
  %2300 = vmatprep.mubr.bf16.mxu0 %v396
  %2301 = vmatmul.mubr.bf16.gmra.mrb[0].mxu0 %v395
  %v2302 = vpop.f32.mrb[0].mxu0
  %v2303 = vadd.f32 %v2080, %v2302
  %v2304 = vpop.f32.mrb[0].mxu0
  %v2305 = vadd.f32 %v2082, %v2304
  %v2306 = vpop.f32.mrb[0].mxu0
  %v2307 = vadd.f32 %v2084, %v2306
  %v2308 = vpop.f32.mrb[0].mxu0
  %v2309 = vadd.f32 %v2086, %v2308
  %2310 = vmatprep.mubr.bf16.mxu0 %v403
  %2311 = vmatmul.mubr.bf16.gmra.mrb[0].mxu0 %v402
  %v2312 = vpop.f32.mrb[0].mxu0
  %v2313 = vadd.f32 %v2090, %v2312
  %v2314 = vpop.f32.mrb[0].mxu0
  %v2315 = vadd.f32 %v2092, %v2314
  %v2316 = vpop.f32.mrb[0].mxu0
  %v2317 = vadd.f32 %v2094, %v2316
  %v2318 = vpop.f32.mrb[0].mxu0
  %v2319 = vadd.f32 %v2096, %v2318
  %2320 = vmatprep.mubr.bf16.mxu0 %v410
  %2321 = vmatmul.mubr.bf16.gmra.mrb[0].mxu0 %v409
  %v2322 = vpop.f32.mrb[0].mxu0
  %v2323 = vadd.f32 %v2100, %v2322
  %v2324 = vpop.f32.mrb[0].mxu0
  %v2325 = vadd.f32 %v2102, %v2324
  %v2326 = vpop.f32.mrb[0].mxu0
  %v2327 = vadd.f32 %v2104, %v2326
  %v2328 = vpop.f32.mrb[0].mxu0
  %v2329 = vadd.f32 %v2106, %v2328
  %2330 = vmatprep.mubr.bf16.mxu0 %v417
  %2331 = vmatmul.mubr.bf16.gmra.mrb[0].mxu0 %v416
  %v2332 = vpop.f32.mrb[0].mxu0
  %v2333 = vadd.f32 %v2110, %v2332
  %v2334 = vpop.f32.mrb[0].mxu0
  %v2335 = vadd.f32 %v2112, %v2334
  %v2336 = vpop.f32.mrb[0].mxu0
  %v2337 = vadd.f32 %v2114, %v2336
  %v2338 = vpop.f32.mrb[0].mxu0
  %v2339 = vadd.f32 %v2116, %v2338
  %2340 = vmatprep.mubr.bf16.mxu0 %v424
  %2341 = vmatmul.mubr.bf16.gmra.mrb[0].mxu0 %v423
  %v2342 = vpop.f32.mrb[0].mxu0
  %v2343 = vadd.f32 %v2120, %v2342
  %v2344 = vpop.f32.mrb[0].mxu0
  %v2345 = vadd.f32 %v2122, %v2344
  %v2346 = vpop.f32.mrb[0].mxu0
  %v2347 = vadd.f32 %v2124, %v2346
  %v2348 = vpop.f32.mrb[0].mxu0
  %v2349 = vadd.f32 %v2126, %v2348
  %2350 = vdwg.mxu0
  %2351 = vmatprep.subr.bf16.mxu0 %v1425
  %2352 = vmatpush1.bf16.msra.mxu0 %v1424
  %2353 = vmatprep.subr.bf16.mxu0 0
  %2354 = vmatpush1.bf16.msra.mxu0 0
  %2355 = vmatprep.subr.bf16.mxu0 0
  %2356 = vmatpush1.bf16.msra.mxu0 0
  %2357 = vmatprep.subr.bf16.mxu0 0
  %2358 = vmatpush1.bf16.msra.mxu0 0
  %2359 = vmatprep.subr.bf16.mxu0 0
  %2360 = vmatpush1.bf16.msra.mxu0 0
  %2361 = vmatprep.subr.bf16.mxu0 0
  %2362 = vmatpush1.bf16.msra.mxu0 0
  %2363 = vmatprep.subr.bf16.mxu0 0
  %2364 = vmatpush1.bf16.msra.mxu0 0
  %2365 = vmatprep.subr.bf16.mxu0 0
  %2366 = vmatpush1.bf16.msra.mxu0 0
  %2367 = vmatprep.subr.bf16.mxu0 0
  %2368 = vmatpush1.bf16.msra.mxu0 0
  %2369 = vmatprep.subr.bf16.mxu0 0
  %2370 = vmatpush1.bf16.msra.mxu0 0
  %2371 = vmatprep.subr.bf16.mxu0 0
  %2372 = vmatpush1.bf16.msra.mxu0 0
  %2373 = vmatprep.subr.bf16.mxu0 0
  %2374 = vmatpush1.bf16.msra.mxu0 0
  %2375 = vmatprep.subr.bf16.mxu0 0
  %2376 = vmatpush1.bf16.msra.mxu0 0
  %2377 = vmatprep.subr.bf16.mxu0 0
  %2378 = vmatpush1.bf16.msra.mxu0 0
  %2379 = vmatprep.subr.bf16.mxu0 0
  %2380 = vmatpush1.bf16.msra.mxu0 0
  %2381 = vmatprep.subr.bf16.mxu0 0
  %2382 = vmatpush1.bf16.msra.mxu0 0
  %2383 = vmatprep.mubr.bf16.mxu0 0
  %2384 = vmatmul.mubr.bf16.gmra.mrb[0].mxu0 %v1626
  %v2385 = vpop.f32.mrb[0].mxu0
  %v2386 = vadd.f32 %v2163, %v2385
  %v2387 = vpop.f32.mrb[0].mxu0
  %v2388 = vadd.f32 %v2165, %v2387
  %v2389 = vpop.f32.mrb[0].mxu0
  %v2390 = vadd.f32 %v2167, %v2389
  %v2391 = vpop.f32.mrb[0].mxu0
  %v2392 = vadd.f32 %v2169, %v2391
  %2393 = vmatprep.mubr.bf16.mxu0 0
  %2394 = vmatmul.mubr.bf16.gmra.mrb[0].mxu0 %v1629
  %v2395 = vpop.f32.mrb[0].mxu0
  %v2396 = vadd.f32 %v2173, %v2395
  %v2397 = vpop.f32.mrb[0].mxu0
  %v2398 = vadd.f32 %v2175, %v2397
  %v2399 = vpop.f32.mrb[0].mxu0
  %v2400 = vadd.f32 %v2177, %v2399
  %v2401 = vpop.f32.mrb[0].mxu0
  %v2402 = vadd.f32 %v2179, %v2401
  %2403 = vmatprep.mubr.bf16.mxu0 0
  %2404 = vmatmul.mubr.bf16.gmra.mrb[0].mxu0 %v1632
  %v2405 = vpop.f32.mrb[0].mxu0
  %v2406 = vadd.f32 %v2183, %v2405
  %v2407 = vpop.f32.mrb[0].mxu0
  %v2408 = vadd.f32 %v2185, %v2407
  %v2409 = vpop.f32.mrb[0].mxu0
  %v2410 = vadd.f32 %v2187, %v2409
  %v2411 = vpop.f32.mrb[0].mxu0
  %v2412 = vadd.f32 %v2189, %v2411
  %2413 = vmatprep.mubr.bf16.mxu0 0
  %2414 = vmatmul.mubr.bf16.gmra.mrb[0].mxu0 %v1635
  %v2415 = vpop.f32.mrb[0].mxu0
  %v2416 = vadd.f32 %v2193, %v2415
  %v2417 = vpop.f32.mrb[0].mxu0
  %v2418 = vadd.f32 %v2195, %v2417
  %v2419 = vpop.f32.mrb[0].mxu0
  %v2420 = vadd.f32 %v2197, %v2419
  %v2421 = vpop.f32.mrb[0].mxu0
  %v2422 = vadd.f32 %v2199, %v2421
  %2423 = vmatprep.mubr.bf16.mxu0 0
  %2424 = vmatmul.mubr.bf16.gmra.mrb[0].mxu0 %v1638
  %v2425 = vpop.f32.mrb[0].mxu0
  %v2426 = vadd.f32 %v2203, %v2425
  %v2427 = vpop.f32.mrb[0].mxu0
  %v2428 = vadd.f32 %v2205, %v2427
  %v2429 = vpop.f32.mrb[0].mxu0
  %v2430 = vadd.f32 %v2207, %v2429
  %v2431 = vpop.f32.mrb[0].mxu0
  %v2432 = vadd.f32 %v2209, %v2431
  %2433 = vmatprep.mubr.bf16.mxu0 0
  %2434 = vmatmul.mubr.bf16.gmra.mrb[0].mxu0 %v1641
  %v2435 = vpop.f32.mrb[0].mxu0
  %v2436 = vadd.f32 %v2213, %v2435
  %v2437 = vpop.f32.mrb[0].mxu0
  %v2438 = vadd.f32 %v2215, %v2437
  %v2439 = vpop.f32.mrb[0].mxu0
  %v2440 = vadd.f32 %v2217, %v2439
  %v2441 = vpop.f32.mrb[0].mxu0
  %v2442 = vadd.f32 %v2219, %v2441
  %2443 = vmatprep.mubr.bf16.mxu0 0
  %2444 = vmatmul.mubr.bf16.gmra.mrb[0].mxu0 %v1644
  %v2445 = vpop.f32.mrb[0].mxu0
  %v2446 = vadd.f32 %v2223, %v2445
  %v2447 = vpop.f32.mrb[0].mxu0
  %v2448 = vadd.f32 %v2225, %v2447
  %v2449 = vpop.f32.mrb[0].mxu0
  %v2450 = vadd.f32 %v2227, %v2449
  %v2451 = vpop.f32.mrb[0].mxu0
  %v2452 = vadd.f32 %v2229, %v2451
  %2453 = vmatprep.mubr.bf16.mxu0 0
  %2454 = vmatmul.mubr.bf16.gmra.mrb[0].mxu0 %v1647
  %v2455 = vpop.f32.mrb[0].mxu0
  %v2456 = vadd.f32 %v2233, %v2455
  %v2457 = vpop.f32.mrb[0].mxu0
  %v2458 = vadd.f32 %v2235, %v2457
  %v2459 = vpop.f32.mrb[0].mxu0
  %v2460 = vadd.f32 %v2237, %v2459
  %v2461 = vpop.f32.mrb[0].mxu0
  %v2462 = vadd.f32 %v2239, %v2461
  %2463 = vmatprep.mubr.bf16.mxu0 0
  %2464 = vmatmul.mubr.bf16.gmra.mrb[0].mxu0 %v1650
  %v2465 = vpop.f32.mrb[0].mxu0
  %v2466 = vadd.f32 %v2243, %v2465
  %v2467 = vpop.f32.mrb[0].mxu0
  %v2468 = vadd.f32 %v2245, %v2467
  %v2469 = vpop.f32.mrb[0].mxu0
  %v2470 = vadd.f32 %v2247, %v2469
  %v2471 = vpop.f32.mrb[0].mxu0
  %v2472 = vadd.f32 %v2249, %v2471
  %2473 = vmatprep.mubr.bf16.mxu0 0
  %2474 = vmatmul.mubr.bf16.gmra.mrb[0].mxu0 %v1653
  %v2475 = vpop.f32.mrb[0].mxu0
  %v2476 = vadd.f32 %v2253, %v2475
  %v2477 = vpop.f32.mrb[0].mxu0
  %v2478 = vadd.f32 %v2255, %v2477
  %v2479 = vpop.f32.mrb[0].mxu0
  %v2480 = vadd.f32 %v2257, %v2479
  %v2481 = vpop.f32.mrb[0].mxu0
  %v2482 = vadd.f32 %v2259, %v2481
  %2483 = vmatprep.mubr.bf16.mxu0 0
  %2484 = vmatmul.mubr.bf16.gmra.mrb[0].mxu0 %v1656
  %v2485 = vpop.f32.mrb[0].mxu0
  %v2486 = vadd.f32 %v2263, %v2485
  %v2487 = vpop.f32.mrb[0].mxu0
  %v2488 = vadd.f32 %v2265, %v2487
  %v2489 = vpop.f32.mrb[0].mxu0
  %v2490 = vadd.f32 %v2267, %v2489
  %v2491 = vpop.f32.mrb[0].mxu0
  %v2492 = vadd.f32 %v2269, %v2491
  %2493 = vmatprep.mubr.bf16.mxu0 0
  %2494 = vmatmul.mubr.bf16.gmra.mrb[0].mxu0 %v1659
  %v2495 = vpop.f32.mrb[0].mxu0
  %v2496 = vadd.f32 %v2273, %v2495
  %v2497 = vpop.f32.mrb[0].mxu0
  %v2498 = vadd.f32 %v2275, %v2497
  %v2499 = vpop.f32.mrb[0].mxu0
  %v2500 = vadd.f32 %v2277, %v2499
  %v2501 = vpop.f32.mrb[0].mxu0
  %v2502 = vadd.f32 %v2279, %v2501
  %2503 = vmatprep.mubr.bf16.mxu0 0
  %2504 = vmatmul.mubr.bf16.gmra.mrb[0].mxu0 %v1662
  %v2505 = vpop.f32.mrb[0].mxu0
  %v2506 = vadd.f32 %v2283, %v2505
  %v2507 = vpop.f32.mrb[0].mxu0
  %v2508 = vadd.f32 %v2285, %v2507
  %v2509 = vpop.f32.mrb[0].mxu0
  %v2510 = vadd.f32 %v2287, %v2509
  %v2511 = vpop.f32.mrb[0].mxu0
  %v2512 = vadd.f32 %v2289, %v2511
  %2513 = vmatprep.mubr.bf16.mxu0 0
  %2514 = vmatmul.mubr.bf16.gmra.mrb[0].mxu0 %v1665
  %v2515 = vpop.f32.mrb[0].mxu0
  %v2516 = vadd.f32 %v2293, %v2515
  %v2517 = vpop.f32.mrb[0].mxu0
  %v2518 = vadd.f32 %v2295, %v2517
  %v2519 = vpop.f32.mrb[0].mxu0
  %v2520 = vadd.f32 %v2297, %v2519
  %v2521 = vpop.f32.mrb[0].mxu0
  %v2522 = vadd.f32 %v2299, %v2521
  %2523 = vmatprep.mubr.bf16.mxu0 0
  %2524 = vmatmul.mubr.bf16.gmra.mrb[0].mxu0 %v1668
  %v2525 = vpop.f32.mrb[0].mxu0
  %v2526 = vadd.f32 %v2303, %v2525
  %v2527 = vpop.f32.mrb[0].mxu0
  %v2528 = vadd.f32 %v2305, %v2527
  %v2529 = vpop.f32.mrb[0].mxu0
  %v2530 = vadd.f32 %v2307, %v2529
  %v2531 = vpop.f32.mrb[0].mxu0
  %v2532 = vadd.f32 %v2309, %v2531
  %2533 = vmatprep.mubr.bf16.mxu0 0
  %2534 = vmatmul.mubr.bf16.gmra.mrb[0].mxu0 %v1671
  %v2535 = vpop.f32.mrb[0].mxu0
  %v2536 = vadd.f32 %v2313, %v2535
  %v2537 = vpop.f32.mrb[0].mxu0
  %v2538 = vadd.f32 %v2315, %v2537
  %v2539 = vpop.f32.mrb[0].mxu0
  %v2540 = vadd.f32 %v2317, %v2539
  %v2541 = vpop.f32.mrb[0].mxu0
  %v2542 = vadd.f32 %v2319, %v2541
  %2543 = vmatprep.mubr.bf16.mxu0 0
  %2544 = vmatmul.mubr.bf16.gmra.mrb[0].mxu0 %v1674
  %v2545 = vpop.f32.mrb[0].mxu0
  %v2546 = vadd.f32 %v2323, %v2545
  %v2547 = vpop.f32.mrb[0].mxu0
  %v2548 = vadd.f32 %v2325, %v2547
  %v2549 = vpop.f32.mrb[0].mxu0
  %v2550 = vadd.f32 %v2327, %v2549
  %v2551 = vpop.f32.mrb[0].mxu0
  %v2552 = vadd.f32 %v2329, %v2551
  %2553 = vmatprep.mubr.bf16.mxu0 0
  %2554 = vmatmul.mubr.bf16.gmra.mrb[0].mxu0 %v1677
  %v2555 = vpop.f32.mrb[0].mxu0
  %v2556 = vadd.f32 %v2333, %v2555
  %v2557 = vpop.f32.mrb[0].mxu0
  %v2558 = vadd.f32 %v2335, %v2557
  %v2559 = vpop.f32.mrb[0].mxu0
  %v2560 = vadd.f32 %v2337, %v2559
  %v2561 = vpop.f32.mrb[0].mxu0
  %v2562 = vadd.f32 %v2339, %v2561
  %2563 = vmatprep.mubr.bf16.mxu0 0
  %2564 = vmatmul.mubr.bf16.gmra.mrb[0].mxu0 %v1680
  %v2565 = vpop.f32.mrb[0].mxu0
  %v2566 = vadd.f32 %v2343, %v2565
  %v2567 = vpop.f32.mrb[0].mxu0
  %v2568 = vadd.f32 %v2345, %v2567
  %v2569 = vpop.f32.mrb[0].mxu0
  %v2570 = vadd.f32 %v2347, %v2569
  %v2571 = vpop.f32.mrb[0].mxu0
  %v2572 = vadd.f32 %v2349, %v2571
  %2573 = vdwg.mxu0
  %2574 = vmatprep.subr.bf16.mxu0 %v1235
  %2575 = vmatpush1.bf16.msra.mxu0 %v1234
  %2576 = vmatprep.subr.bf16.mxu0 %v1239
  %2577 = vmatpush1.bf16.msra.mxu0 %v1238
  %2578 = vmatprep.subr.bf16.mxu0 %v1243
  %2579 = vmatpush1.bf16.msra.mxu0 %v1242
  %2580 = vmatprep.subr.bf16.mxu0 %v1247
  %2581 = vmatpush1.bf16.msra.mxu0 %v1246
  %2582 = vmatprep.subr.bf16.mxu0 %v1251
  %2583 = vmatpush1.bf16.msra.mxu0 %v1250
  %2584 = vmatprep.subr.bf16.mxu0 %v1255
  %2585 = vmatpush1.bf16.msra.mxu0 %v1254
  %2586 = vmatprep.subr.bf16.mxu0 %v1259
  %2587 = vmatpush1.bf16.msra.mxu0 %v1258
  %2588 = vmatprep.subr.bf16.mxu0 %v1263
  %2589 = vmatpush1.bf16.msra.mxu0 %v1262
  %2590 = vmatprep.subr.bf16.mxu0 %v1267
  %2591 = vmatpush1.bf16.msra.mxu0 %v1266
  %2592 = vmatprep.subr.bf16.mxu0 %v1271
  %2593 = vmatpush1.bf16.msra.mxu0 %v1270
  %2594 = vmatprep.subr.bf16.mxu0 %v1275
  %2595 = vmatpush1.bf16.msra.mxu0 %v1274
  %2596 = vmatprep.subr.bf16.mxu0 %v1279
  %2597 = vmatpush1.bf16.msra.mxu0 %v1278
  %2598 = vmatprep.subr.bf16.mxu0 %v1283
  %2599 = vmatpush1.bf16.msra.mxu0 %v1282
  %2600 = vmatprep.subr.bf16.mxu0 %v1287
  %2601 = vmatpush1.bf16.msra.mxu0 %v1286
  %2602 = vmatprep.subr.bf16.mxu0 %v1291
  %2603 = vmatpush1.bf16.msra.mxu0 %v1290
  %2604 = vmatprep.subr.bf16.mxu0 %v1295
  %2605 = vmatpush1.bf16.msra.mxu0 %v1294
  %2606 = vmatprep.mubr.bf16.mxu0 %v294
  %2607 = vmatmul.mubr.bf16.gmra.mrb[0].mxu0 %v293
  %v2608 = vpop.f32.mrb[0].mxu0
  %v2609 = vadd.f32 %v635, %v2608
  %v2610 = vpop.f32.mrb[0].mxu0
  %v2611 = vadd.f32 %v639, %v2610
  %v2612 = vpop.f32.mrb[0].mxu0
  %v2613 = vadd.f32 %v635, %v2612
  %v2614 = vpop.f32.mrb[0].mxu0
  %v2615 = vadd.f32 %v639, %v2614
  %2616 = vmatprep.mubr.bf16.mxu0 %v301
  %2617 = vmatmul.mubr.bf16.gmra.mrb[0].mxu0 %v300
  %v2618 = vpop.f32.mrb[0].mxu0
  %v2619 = vadd.f32 %v635, %v2618
  %v2620 = vpop.f32.mrb[0].mxu0
  %v2621 = vadd.f32 %v639, %v2620
  %v2622 = vpop.f32.mrb[0].mxu0
  %v2623 = vadd.f32 %v635, %v2622
  %v2624 = vpop.f32.mrb[0].mxu0
  %v2625 = vadd.f32 %v639, %v2624
  %2626 = vmatprep.mubr.bf16.mxu0 %v308
  %2627 = vmatmul.mubr.bf16.gmra.mrb[0].mxu0 %v307
  %v2628 = vpop.f32.mrb[0].mxu0
  %v2629 = vadd.f32 %v635, %v2628
  %v2630 = vpop.f32.mrb[0].mxu0
  %v2631 = vadd.f32 %v639, %v2630
  %v2632 = vpop.f32.mrb[0].mxu0
  %v2633 = vadd.f32 %v635, %v2632
  %v2634 = vpop.f32.mrb[0].mxu0
  %v2635 = vadd.f32 %v639, %v2634
  %2636 = vmatprep.mubr.bf16.mxu0 %v315
  %2637 = vmatmul.mubr.bf16.gmra.mrb[0].mxu0 %v314
  %v2638 = vpop.f32.mrb[0].mxu0
  %v2639 = vadd.f32 %v635, %v2638
  %v2640 = vpop.f32.mrb[0].mxu0
  %v2641 = vadd.f32 %v639, %v2640
  %v2642 = vpop.f32.mrb[0].mxu0
  %v2643 = vadd.f32 %v635, %v2642
  %v2644 = vpop.f32.mrb[0].mxu0
  %v2645 = vadd.f32 %v639, %v2644
  %2646 = vmatprep.mubr.bf16.mxu0 %v322
  %2647 = vmatmul.mubr.bf16.gmra.mrb[0].mxu0 %v321
  %v2648 = vpop.f32.mrb[0].mxu0
  %v2649 = vadd.f32 %v635, %v2648
  %v2650 = vpop.f32.mrb[0].mxu0
  %v2651 = vadd.f32 %v639, %v2650
  %v2652 = vpop.f32.mrb[0].mxu0
  %v2653 = vadd.f32 %v635, %v2652
  %v2654 = vpop.f32.mrb[0].mxu0
  %v2655 = vadd.f32 %v639, %v2654
  %2656 = vmatprep.mubr.bf16.mxu0 %v329
  %2657 = vmatmul.mubr.bf16.gmra.mrb[0].mxu0 %v328
  %v2658 = vpop.f32.mrb[0].mxu0
  %v2659 = vadd.f32 %v635, %v2658
  %v2660 = vpop.f32.mrb[0].mxu0
  %v2661 = vadd.f32 %v639, %v2660
  %v2662 = vpop.f32.mrb[0].mxu0
  %v2663 = vadd.f32 %v635, %v2662
  %v2664 = vpop.f32.mrb[0].mxu0
  %v2665 = vadd.f32 %v639, %v2664
  %2666 = vmatprep.mubr.bf16.mxu0 %v336
  %2667 = vmatmul.mubr.bf16.gmra.mrb[0].mxu0 %v335
  %v2668 = vpop.f32.mrb[0].mxu0
  %v2669 = vadd.f32 %v635, %v2668
  %v2670 = vpop.f32.mrb[0].mxu0
  %v2671 = vadd.f32 %v639, %v2670
  %v2672 = vpop.f32.mrb[0].mxu0
  %v2673 = vadd.f32 %v635, %v2672
  %v2674 = vpop.f32.mrb[0].mxu0
  %v2675 = vadd.f32 %v639, %v2674
  %2676 = vmatprep.mubr.bf16.mxu0 %v343
  %2677 = vmatmul.mubr.bf16.gmra.mrb[0].mxu0 %v342
  %v2678 = vpop.f32.mrb[0].mxu0
  %v2679 = vadd.f32 %v635, %v2678
  %v2680 = vpop.f32.mrb[0].mxu0
  %v2681 = vadd.f32 %v639, %v2680
  %v2682 = vpop.f32.mrb[0].mxu0
  %v2683 = vadd.f32 %v635, %v2682
  %v2684 = vpop.f32.mrb[0].mxu0
  %v2685 = vadd.f32 %v639, %v2684
  %2686 = vmatprep.mubr.bf16.mxu0 %v350
  %2687 = vmatmul.mubr.bf16.gmra.mrb[0].mxu0 %v349
  %v2688 = vpop.f32.mrb[0].mxu0
  %v2689 = vadd.f32 %v635, %v2688
  %v2690 = vpop.f32.mrb[0].mxu0
  %v2691 = vadd.f32 %v639, %v2690
  %v2692 = vpop.f32.mrb[0].mxu0
  %v2693 = vadd.f32 %v635, %v2692
  %v2694 = vpop.f32.mrb[0].mxu0
  %v2695 = vadd.f32 %v639, %v2694
  %2696 = vmatprep.mubr.bf16.mxu0 %v357
  %2697 = vmatmul.mubr.bf16.gmra.mrb[0].mxu0 %v356
  %v2698 = vpop.f32.mrb[0].mxu0
  %v2699 = vadd.f32 %v635, %v2698
  %v2700 = vpop.f32.mrb[0].mxu0
  %v2701 = vadd.f32 %v639, %v2700
  %v2702 = vpop.f32.mrb[0].mxu0
  %v2703 = vadd.f32 %v635, %v2702
  %v2704 = vpop.f32.mrb[0].mxu0
  %v2705 = vadd.f32 %v639, %v2704
  %2706 = vmatprep.mubr.bf16.mxu0 %v364
  %2707 = vmatmul.mubr.bf16.gmra.mrb[0].mxu0 %v363
  %v2708 = vpop.f32.mrb[0].mxu0
  %v2709 = vadd.f32 %v635, %v2708
  %v2710 = vpop.f32.mrb[0].mxu0
  %v2711 = vadd.f32 %v639, %v2710
  %v2712 = vpop.f32.mrb[0].mxu0
  %v2713 = vadd.f32 %v635, %v2712
  %v2714 = vpop.f32.mrb[0].mxu0
  %v2715 = vadd.f32 %v639, %v2714
  %2716 = vmatprep.mubr.bf16.mxu0 %v371
  %2717 = vmatmul.mubr.bf16.gmra.mrb[0].mxu0 %v370
  %v2718 = vpop.f32.mrb[0].mxu0
  %v2719 = vadd.f32 %v635, %v2718
  %v2720 = vpop.f32.mrb[0].mxu0
  %v2721 = vadd.f32 %v639, %v2720
  %v2722 = vpop.f32.mrb[0].mxu0
  %v2723 = vadd.f32 %v635, %v2722
  %v2724 = vpop.f32.mrb[0].mxu0
  %v2725 = vadd.f32 %v639, %v2724
  %2726 = vmatprep.mubr.bf16.mxu0 %v378
  %2727 = vmatmul.mubr.bf16.gmra.mrb[0].mxu0 %v377
  %v2728 = vpop.f32.mrb[0].mxu0
  %v2729 = vadd.f32 %v635, %v2728
  %v2730 = vpop.f32.mrb[0].mxu0
  %v2731 = vadd.f32 %v639, %v2730
  %v2732 = vpop.f32.mrb[0].mxu0
  %v2733 = vadd.f32 %v635, %v2732
  %v2734 = vpop.f32.mrb[0].mxu0
  %v2735 = vadd.f32 %v639, %v2734
  %2736 = vmatprep.mubr.bf16.mxu0 %v385
  %2737 = vmatmul.mubr.bf16.gmra.mrb[0].mxu0 %v384
  %v2738 = vpop.f32.mrb[0].mxu0
  %v2739 = vadd.f32 %v635, %v2738
  %v2740 = vpop.f32.mrb[0].mxu0
  %v2741 = vadd.f32 %v639, %v2740
  %v2742 = vpop.f32.mrb[0].mxu0
  %v2743 = vadd.f32 %v635, %v2742
  %v2744 = vpop.f32.mrb[0].mxu0
  %v2745 = vadd.f32 %v639, %v2744
  %2746 = vmatprep.mubr.bf16.mxu0 %v392
  %2747 = vmatmul.mubr.bf16.gmra.mrb[0].mxu0 %v391
  %v2748 = vpop.f32.mrb[0].mxu0
  %v2749 = vadd.f32 %v635, %v2748
  %v2750 = vpop.f32.mrb[0].mxu0
  %v2751 = vadd.f32 %v639, %v2750
  %v2752 = vpop.f32.mrb[0].mxu0
  %v2753 = vadd.f32 %v635, %v2752
  %v2754 = vpop.f32.mrb[0].mxu0
  %v2755 = vadd.f32 %v639, %v2754
  %2756 = vmatprep.mubr.bf16.mxu0 %v399
  %2757 = vmatmul.mubr.bf16.gmra.mrb[0].mxu0 %v398
  %v2758 = vpop.f32.mrb[0].mxu0
  %v2759 = vadd.f32 %v635, %v2758
  %v2760 = vpop.f32.mrb[0].mxu0
  %v2761 = vadd.f32 %v639, %v2760
  %v2762 = vpop.f32.mrb[0].mxu0
  %v2763 = vadd.f32 %v635, %v2762
  %v2764 = vpop.f32.mrb[0].mxu0
  %v2765 = vadd.f32 %v639, %v2764
  %2766 = vmatprep.mubr.bf16.mxu0 %v406
  %2767 = vmatmul.mubr.bf16.gmra.mrb[0].mxu0 %v405
  %v2768 = vpop.f32.mrb[0].mxu0
  %v2769 = vadd.f32 %v635, %v2768
  %v2770 = vpop.f32.mrb[0].mxu0
  %v2771 = vadd.f32 %v639, %v2770
  %v2772 = vpop.f32.mrb[0].mxu0
  %v2773 = vadd.f32 %v635, %v2772
  %v2774 = vpop.f32.mrb[0].mxu0
  %v2775 = vadd.f32 %v639, %v2774
  %2776 = vmatprep.mubr.bf16.mxu0 %v413
  %2777 = vmatmul.mubr.bf16.gmra.mrb[0].mxu0 %v412
  %v2778 = vpop.f32.mrb[0].mxu0
  %v2779 = vadd.f32 %v635, %v2778
  %v2780 = vpop.f32.mrb[0].mxu0
  %v2781 = vadd.f32 %v639, %v2780
  %v2782 = vpop.f32.mrb[0].mxu0
  %v2783 = vadd.f32 %v635, %v2782
  %v2784 = vpop.f32.mrb[0].mxu0
  %v2785 = vadd.f32 %v639, %v2784
  %2786 = vmatprep.mubr.bf16.mxu0 %v420
  %2787 = vmatmul.mubr.bf16.gmra.mrb[0].mxu0 %v419
  %v2788 = vpop.f32.mrb[0].mxu0
  %v2789 = vadd.f32 %v635, %v2788
  %v2790 = vpop.f32.mrb[0].mxu0
  %v2791 = vadd.f32 %v639, %v2790
  %v2792 = vpop.f32.mrb[0].mxu0
  %v2793 = vadd.f32 %v635, %v2792
  %v2794 = vpop.f32.mrb[0].mxu0
  %v2795 = vadd.f32 %v639, %v2794
  %2796 = vdwg.mxu0
  %2797 = vmatprep.subr.bf16.mxu0 %v1299
  %2798 = vmatpush1.bf16.msra.mxu0 %v1298
  %2799 = vmatprep.subr.bf16.mxu0 %v1303
  %2800 = vmatpush1.bf16.msra.mxu0 %v1302
  %2801 = vmatprep.subr.bf16.mxu0 %v1307
  %2802 = vmatpush1.bf16.msra.mxu0 %v1306
  %2803 = vmatprep.subr.bf16.mxu0 %v1311
  %2804 = vmatpush1.bf16.msra.mxu0 %v1310
  %2805 = vmatprep.subr.bf16.mxu0 %v1315
  %2806 = vmatpush1.bf16.msra.mxu0 %v1314
  %2807 = vmatprep.subr.bf16.mxu0 %v1319
  %2808 = vmatpush1.bf16.msra.mxu0 %v1318
  %2809 = vmatprep.subr.bf16.mxu0 %v1323
  %2810 = vmatpush1.bf16.msra.mxu0 %v1322
  %2811 = vmatprep.subr.bf16.mxu0 %v1327
  %2812 = vmatpush1.bf16.msra.mxu0 %v1326
  %2813 = vmatprep.subr.bf16.mxu0 %v1331
  %2814 = vmatpush1.bf16.msra.mxu0 %v1330
  %2815 = vmatprep.subr.bf16.mxu0 %v1335
  %2816 = vmatpush1.bf16.msra.mxu0 %v1334
  %2817 = vmatprep.subr.bf16.mxu0 %v1339
  %2818 = vmatpush1.bf16.msra.mxu0 %v1338
  %2819 = vmatprep.subr.bf16.mxu0 %v1343
  %2820 = vmatpush1.bf16.msra.mxu0 %v1342
  %2821 = vmatprep.subr.bf16.mxu0 %v1347
  %2822 = vmatpush1.bf16.msra.mxu0 %v1346
  %2823 = vmatprep.subr.bf16.mxu0 %v1351
  %2824 = vmatpush1.bf16.msra.mxu0 %v1350
  %2825 = vmatprep.subr.bf16.mxu0 %v1355
  %2826 = vmatpush1.bf16.msra.mxu0 %v1354
  %2827 = vmatprep.subr.bf16.mxu0 %v1359
  %2828 = vmatpush1.bf16.msra.mxu0 %v1358
  %2829 = vmatprep.mubr.bf16.mxu0 %v296
  %2830 = vmatmul.mubr.bf16.gmra.mrb[0].mxu0 %v295
  %v2831 = vpop.f32.mrb[0].mxu0
  %v2832 = vadd.f32 %v2609, %v2831
  %v2833 = vpop.f32.mrb[0].mxu0
  %v2834 = vadd.f32 %v2611, %v2833
  %v2835 = vpop.f32.mrb[0].mxu0
  %v2836 = vadd.f32 %v2613, %v2835
  %v2837 = vpop.f32.mrb[0].mxu0
  %v2838 = vadd.f32 %v2615, %v2837
  %2839 = vmatprep.mubr.bf16.mxu0 %v303
  %2840 = vmatmul.mubr.bf16.gmra.mrb[0].mxu0 %v302
  %v2841 = vpop.f32.mrb[0].mxu0
  %v2842 = vadd.f32 %v2619, %v2841
  %v2843 = vpop.f32.mrb[0].mxu0
  %v2844 = vadd.f32 %v2621, %v2843
  %v2845 = vpop.f32.mrb[0].mxu0
  %v2846 = vadd.f32 %v2623, %v2845
  %v2847 = vpop.f32.mrb[0].mxu0
  %v2848 = vadd.f32 %v2625, %v2847
  %2849 = vmatprep.mubr.bf16.mxu0 %v310
  %2850 = vmatmul.mubr.bf16.gmra.mrb[0].mxu0 %v309
  %v2851 = vpop.f32.mrb[0].mxu0
  %v2852 = vadd.f32 %v2629, %v2851
  %v2853 = vpop.f32.mrb[0].mxu0
  %v2854 = vadd.f32 %v2631, %v2853
  %v2855 = vpop.f32.mrb[0].mxu0
  %v2856 = vadd.f32 %v2633, %v2855
  %v2857 = vpop.f32.mrb[0].mxu0
  %v2858 = vadd.f32 %v2635, %v2857
  %2859 = vmatprep.mubr.bf16.mxu0 %v317
  %2860 = vmatmul.mubr.bf16.gmra.mrb[0].mxu0 %v316
  %v2861 = vpop.f32.mrb[0].mxu0
  %v2862 = vadd.f32 %v2639, %v2861
  %v2863 = vpop.f32.mrb[0].mxu0
  %v2864 = vadd.f32 %v2641, %v2863
  %v2865 = vpop.f32.mrb[0].mxu0
  %v2866 = vadd.f32 %v2643, %v2865
  %v2867 = vpop.f32.mrb[0].mxu0
  %v2868 = vadd.f32 %v2645, %v2867
  %2869 = vmatprep.mubr.bf16.mxu0 %v324
  %2870 = vmatmul.mubr.bf16.gmra.mrb[0].mxu0 %v323
  %v2871 = vpop.f32.mrb[0].mxu0
  %v2872 = vadd.f32 %v2649, %v2871
  %v2873 = vpop.f32.mrb[0].mxu0
  %v2874 = vadd.f32 %v2651, %v2873
  %v2875 = vpop.f32.mrb[0].mxu0
  %v2876 = vadd.f32 %v2653, %v2875
  %v2877 = vpop.f32.mrb[0].mxu0
  %v2878 = vadd.f32 %v2655, %v2877
  %2879 = vmatprep.mubr.bf16.mxu0 %v331
  %2880 = vmatmul.mubr.bf16.gmra.mrb[0].mxu0 %v330
  %v2881 = vpop.f32.mrb[0].mxu0
  %v2882 = vadd.f32 %v2659, %v2881
  %v2883 = vpop.f32.mrb[0].mxu0
  %v2884 = vadd.f32 %v2661, %v2883
  %v2885 = vpop.f32.mrb[0].mxu0
  %v2886 = vadd.f32 %v2663, %v2885
  %v2887 = vpop.f32.mrb[0].mxu0
  %v2888 = vadd.f32 %v2665, %v2887
  %2889 = vmatprep.mubr.bf16.mxu0 %v338
  %2890 = vmatmul.mubr.bf16.gmra.mrb[0].mxu0 %v337
  %v2891 = vpop.f32.mrb[0].mxu0
  %v2892 = vadd.f32 %v2669, %v2891
  %v2893 = vpop.f32.mrb[0].mxu0
  %v2894 = vadd.f32 %v2671, %v2893
  %v2895 = vpop.f32.mrb[0].mxu0
  %v2896 = vadd.f32 %v2673, %v2895
  %v2897 = vpop.f32.mrb[0].mxu0
  %v2898 = vadd.f32 %v2675, %v2897
  %2899 = vmatprep.mubr.bf16.mxu0 %v345
  %2900 = vmatmul.mubr.bf16.gmra.mrb[0].mxu0 %v344
  %v2901 = vpop.f32.mrb[0].mxu0
  %v2902 = vadd.f32 %v2679, %v2901
  %v2903 = vpop.f32.mrb[0].mxu0
  %v2904 = vadd.f32 %v2681, %v2903
  %v2905 = vpop.f32.mrb[0].mxu0
  %v2906 = vadd.f32 %v2683, %v2905
  %v2907 = vpop.f32.mrb[0].mxu0
  %v2908 = vadd.f32 %v2685, %v2907
  %2909 = vmatprep.mubr.bf16.mxu0 %v352
  %2910 = vmatmul.mubr.bf16.gmra.mrb[0].mxu0 %v351
  %v2911 = vpop.f32.mrb[0].mxu0
  %v2912 = vadd.f32 %v2689, %v2911
  %v2913 = vpop.f32.mrb[0].mxu0
  %v2914 = vadd.f32 %v2691, %v2913
  %v2915 = vpop.f32.mrb[0].mxu0
  %v2916 = vadd.f32 %v2693, %v2915
  %v2917 = vpop.f32.mrb[0].mxu0
  %v2918 = vadd.f32 %v2695, %v2917
  %2919 = vmatprep.mubr.bf16.mxu0 %v359
  %2920 = vmatmul.mubr.bf16.gmra.mrb[0].mxu0 %v358
  %v2921 = vpop.f32.mrb[0].mxu0
  %v2922 = vadd.f32 %v2699, %v2921
  %v2923 = vpop.f32.mrb[0].mxu0
  %v2924 = vadd.f32 %v2701, %v2923
  %v2925 = vpop.f32.mrb[0].mxu0
  %v2926 = vadd.f32 %v2703, %v2925
  %v2927 = vpop.f32.mrb[0].mxu0
  %v2928 = vadd.f32 %v2705, %v2927
  %2929 = vmatprep.mubr.bf16.mxu0 %v366
  %2930 = vmatmul.mubr.bf16.gmra.mrb[0].mxu0 %v365
  %v2931 = vpop.f32.mrb[0].mxu0
  %v2932 = vadd.f32 %v2709, %v2931
  %v2933 = vpop.f32.mrb[0].mxu0
  %v2934 = vadd.f32 %v2711, %v2933
  %v2935 = vpop.f32.mrb[0].mxu0
  %v2936 = vadd.f32 %v2713, %v2935
  %v2937 = vpop.f32.mrb[0].mxu0
  %v2938 = vadd.f32 %v2715, %v2937
  %2939 = vmatprep.mubr.bf16.mxu0 %v373
  %2940 = vmatmul.mubr.bf16.gmra.mrb[0].mxu0 %v372
  %v2941 = vpop.f32.mrb[0].mxu0
  %v2942 = vadd.f32 %v2719, %v2941
  %v2943 = vpop.f32.mrb[0].mxu0
  %v2944 = vadd.f32 %v2721, %v2943
  %v2945 = vpop.f32.mrb[0].mxu0
  %v2946 = vadd.f32 %v2723, %v2945
  %v2947 = vpop.f32.mrb[0].mxu0
  %v2948 = vadd.f32 %v2725, %v2947
  %2949 = vmatprep.mubr.bf16.mxu0 %v380
  %2950 = vmatmul.mubr.bf16.gmra.mrb[0].mxu0 %v379
  %v2951 = vpop.f32.mrb[0].mxu0
  %v2952 = vadd.f32 %v2729, %v2951
  %v2953 = vpop.f32.mrb[0].mxu0
  %v2954 = vadd.f32 %v2731, %v2953
  %v2955 = vpop.f32.mrb[0].mxu0
  %v2956 = vadd.f32 %v2733, %v2955
  %v2957 = vpop.f32.mrb[0].mxu0
  %v2958 = vadd.f32 %v2735, %v2957
  %2959 = vmatprep.mubr.bf16.mxu0 %v387
  %2960 = vmatmul.mubr.bf16.gmra.mrb[0].mxu0 %v386
  %v2961 = vpop.f32.mrb[0].mxu0
  %v2962 = vadd.f32 %v2739, %v2961
  %v2963 = vpop.f32.mrb[0].mxu0
  %v2964 = vadd.f32 %v2741, %v2963
  %v2965 = vpop.f32.mrb[0].mxu0
  %v2966 = vadd.f32 %v2743, %v2965
  %v2967 = vpop.f32.mrb[0].mxu0
  %v2968 = vadd.f32 %v2745, %v2967
  %2969 = vmatprep.mubr.bf16.mxu0 %v394
  %2970 = vmatmul.mubr.bf16.gmra.mrb[0].mxu0 %v393
  %v2971 = vpop.f32.mrb[0].mxu0
  %v2972 = vadd.f32 %v2749, %v2971
  %v2973 = vpop.f32.mrb[0].mxu0
  %v2974 = vadd.f32 %v2751, %v2973
  %v2975 = vpop.f32.mrb[0].mxu0
  %v2976 = vadd.f32 %v2753, %v2975
  %v2977 = vpop.f32.mrb[0].mxu0
  %v2978 = vadd.f32 %v2755, %v2977
  %2979 = vmatprep.mubr.bf16.mxu0 %v401
  %2980 = vmatmul.mubr.bf16.gmra.mrb[0].mxu0 %v400
  %v2981 = vpop.f32.mrb[0].mxu0
  %v2982 = vadd.f32 %v2759, %v2981
  %v2983 = vpop.f32.mrb[0].mxu0
  %v2984 = vadd.f32 %v2761, %v2983
  %v2985 = vpop.f32.mrb[0].mxu0
  %v2986 = vadd.f32 %v2763, %v2985
  %v2987 = vpop.f32.mrb[0].mxu0
  %v2988 = vadd.f32 %v2765, %v2987
  %2989 = vmatprep.mubr.bf16.mxu0 %v408
  %2990 = vmatmul.mubr.bf16.gmra.mrb[0].mxu0 %v407
  %v2991 = vpop.f32.mrb[0].mxu0
  %v2992 = vadd.f32 %v2769, %v2991
  %v2993 = vpop.f32.mrb[0].mxu0
  %v2994 = vadd.f32 %v2771, %v2993
  %v2995 = vpop.f32.mrb[0].mxu0
  %v2996 = vadd.f32 %v2773, %v2995
  %v2997 = vpop.f32.mrb[0].mxu0
  %v2998 = vadd.f32 %v2775, %v2997
  %2999 = vmatprep.mubr.bf16.mxu0 %v415
  %3000 = vmatmul.mubr.bf16.gmra.mrb[0].mxu0 %v414
  %v3001 = vpop.f32.mrb[0].mxu0
  %v3002 = vadd.f32 %v2779, %v3001
  %v3003 = vpop.f32.mrb[0].mxu0
  %v3004 = vadd.f32 %v2781, %v3003
  %v3005 = vpop.f32.mrb[0].mxu0
  %v3006 = vadd.f32 %v2783, %v3005
  %v3007 = vpop.f32.mrb[0].mxu0
  %v3008 = vadd.f32 %v2785, %v3007
  %3009 = vmatprep.mubr.bf16.mxu0 %v422
  %3010 = vmatmul.mubr.bf16.gmra.mrb[0].mxu0 %v421
  %v3011 = vpop.f32.mrb[0].mxu0
  %v3012 = vadd.f32 %v2789, %v3011
  %v3013 = vpop.f32.mrb[0].mxu0
  %v3014 = vadd.f32 %v2791, %v3013
  %v3015 = vpop.f32.mrb[0].mxu0
  %v3016 = vadd.f32 %v2793, %v3015
  %v3017 = vpop.f32.mrb[0].mxu0
  %v3018 = vadd.f32 %v2795, %v3017
  %3019 = vdwg.mxu0
  %3020 = vmatprep.subr.bf16.mxu0 %v1363
  %3021 = vmatpush1.bf16.msra.mxu0 %v1362
  %3022 = vmatprep.subr.bf16.mxu0 %v1367
  %3023 = vmatpush1.bf16.msra.mxu0 %v1366
  %3024 = vmatprep.subr.bf16.mxu0 %v1371
  %3025 = vmatpush1.bf16.msra.mxu0 %v1370
  %3026 = vmatprep.subr.bf16.mxu0 %v1375
  %3027 = vmatpush1.bf16.msra.mxu0 %v1374
  %3028 = vmatprep.subr.bf16.mxu0 %v1379
  %3029 = vmatpush1.bf16.msra.mxu0 %v1378
  %3030 = vmatprep.subr.bf16.mxu0 %v1383
  %3031 = vmatpush1.bf16.msra.mxu0 %v1382
  %3032 = vmatprep.subr.bf16.mxu0 %v1387
  %3033 = vmatpush1.bf16.msra.mxu0 %v1386
  %3034 = vmatprep.subr.bf16.mxu0 %v1391
  %3035 = vmatpush1.bf16.msra.mxu0 %v1390
  %3036 = vmatprep.subr.bf16.mxu0 %v1395
  %3037 = vmatpush1.bf16.msra.mxu0 %v1394
  %3038 = vmatprep.subr.bf16.mxu0 %v1399
  %3039 = vmatpush1.bf16.msra.mxu0 %v1398
  %3040 = vmatprep.subr.bf16.mxu0 %v1403
  %3041 = vmatpush1.bf16.msra.mxu0 %v1402
  %3042 = vmatprep.subr.bf16.mxu0 %v1407
  %3043 = vmatpush1.bf16.msra.mxu0 %v1406
  %3044 = vmatprep.subr.bf16.mxu0 %v1411
  %3045 = vmatpush1.bf16.msra.mxu0 %v1410
  %3046 = vmatprep.subr.bf16.mxu0 %v1415
  %3047 = vmatpush1.bf16.msra.mxu0 %v1414
  %3048 = vmatprep.subr.bf16.mxu0 %v1419
  %3049 = vmatpush1.bf16.msra.mxu0 %v1418
  %3050 = vmatprep.subr.bf16.mxu0 %v1423
  %3051 = vmatpush1.bf16.msra.mxu0 %v1422
  %3052 = vmatprep.mubr.bf16.mxu0 %v298
  %3053 = vmatmul.mubr.bf16.gmra.mrb[0].mxu0 %v297
  %v3054 = vpop.f32.mrb[0].mxu0
  %v3055 = vadd.f32 %v2832, %v3054
  %v3056 = vpop.f32.mrb[0].mxu0
  %v3057 = vadd.f32 %v2834, %v3056
  %v3058 = vpop.f32.mrb[0].mxu0
  %v3059 = vadd.f32 %v2836, %v3058
  %v3060 = vpop.f32.mrb[0].mxu0
  %v3061 = vadd.f32 %v2838, %v3060
  %3062 = vmatprep.mubr.bf16.mxu0 %v305
  %3063 = vmatmul.mubr.bf16.gmra.mrb[0].mxu0 %v304
  %v3064 = vpop.f32.mrb[0].mxu0
  %v3065 = vadd.f32 %v2842, %v3064
  %v3066 = vpop.f32.mrb[0].mxu0
  %v3067 = vadd.f32 %v2844, %v3066
  %v3068 = vpop.f32.mrb[0].mxu0
  %v3069 = vadd.f32 %v2846, %v3068
  %v3070 = vpop.f32.mrb[0].mxu0
  %v3071 = vadd.f32 %v2848, %v3070
  %3072 = vmatprep.mubr.bf16.mxu0 %v312
  %3073 = vmatmul.mubr.bf16.gmra.mrb[0].mxu0 %v311
  %v3074 = vpop.f32.mrb[0].mxu0
  %v3075 = vadd.f32 %v2852, %v3074
  %v3076 = vpop.f32.mrb[0].mxu0
  %v3077 = vadd.f32 %v2854, %v3076
  %v3078 = vpop.f32.mrb[0].mxu0
  %v3079 = vadd.f32 %v2856, %v3078
  %v3080 = vpop.f32.mrb[0].mxu0
  %v3081 = vadd.f32 %v2858, %v3080
  %3082 = vmatprep.mubr.bf16.mxu0 %v319
  %3083 = vmatmul.mubr.bf16.gmra.mrb[0].mxu0 %v318
  %v3084 = vpop.f32.mrb[0].mxu0
  %v3085 = vadd.f32 %v2862, %v3084
  %v3086 = vpop.f32.mrb[0].mxu0
  %v3087 = vadd.f32 %v2864, %v3086
  %v3088 = vpop.f32.mrb[0].mxu0
  %v3089 = vadd.f32 %v2866, %v3088
  %v3090 = vpop.f32.mrb[0].mxu0
  %v3091 = vadd.f32 %v2868, %v3090
  %3092 = vmatprep.mubr.bf16.mxu0 %v326
  %3093 = vmatmul.mubr.bf16.gmra.mrb[0].mxu0 %v325
  %v3094 = vpop.f32.mrb[0].mxu0
  %v3095 = vadd.f32 %v2872, %v3094
  %v3096 = vpop.f32.mrb[0].mxu0
  %v3097 = vadd.f32 %v2874, %v3096
  %v3098 = vpop.f32.mrb[0].mxu0
  %v3099 = vadd.f32 %v2876, %v3098
  %v3100 = vpop.f32.mrb[0].mxu0
  %v3101 = vadd.f32 %v2878, %v3100
  %3102 = vmatprep.mubr.bf16.mxu0 %v333
  %3103 = vmatmul.mubr.bf16.gmra.mrb[0].mxu0 %v332
  %v3104 = vpop.f32.mrb[0].mxu0
  %v3105 = vadd.f32 %v2882, %v3104
  %v3106 = vpop.f32.mrb[0].mxu0
  %v3107 = vadd.f32 %v2884, %v3106
  %v3108 = vpop.f32.mrb[0].mxu0
  %v3109 = vadd.f32 %v2886, %v3108
  %v3110 = vpop.f32.mrb[0].mxu0
  %v3111 = vadd.f32 %v2888, %v3110
  %3112 = vmatprep.mubr.bf16.mxu0 %v340
  %3113 = vmatmul.mubr.bf16.gmra.mrb[0].mxu0 %v339
  %v3114 = vpop.f32.mrb[0].mxu0
  %v3115 = vadd.f32 %v2892, %v3114
  %v3116 = vpop.f32.mrb[0].mxu0
  %v3117 = vadd.f32 %v2894, %v3116
  %v3118 = vpop.f32.mrb[0].mxu0
  %v3119 = vadd.f32 %v2896, %v3118
  %v3120 = vpop.f32.mrb[0].mxu0
  %v3121 = vadd.f32 %v2898, %v3120
  %3122 = vmatprep.mubr.bf16.mxu0 %v347
  %3123 = vmatmul.mubr.bf16.gmra.mrb[0].mxu0 %v346
  %v3124 = vpop.f32.mrb[0].mxu0
  %v3125 = vadd.f32 %v2902, %v3124
  %v3126 = vpop.f32.mrb[0].mxu0
  %v3127 = vadd.f32 %v2904, %v3126
  %v3128 = vpop.f32.mrb[0].mxu0
  %v3129 = vadd.f32 %v2906, %v3128
  %v3130 = vpop.f32.mrb[0].mxu0
  %v3131 = vadd.f32 %v2908, %v3130
  %3132 = vmatprep.mubr.bf16.mxu0 %v354
  %3133 = vmatmul.mubr.bf16.gmra.mrb[0].mxu0 %v353
  %v3134 = vpop.f32.mrb[0].mxu0
  %v3135 = vadd.f32 %v2912, %v3134
  %v3136 = vpop.f32.mrb[0].mxu0
  %v3137 = vadd.f32 %v2914, %v3136
  %v3138 = vpop.f32.mrb[0].mxu0
  %v3139 = vadd.f32 %v2916, %v3138
  %v3140 = vpop.f32.mrb[0].mxu0
  %v3141 = vadd.f32 %v2918, %v3140
  %3142 = vmatprep.mubr.bf16.mxu0 %v361
  %3143 = vmatmul.mubr.bf16.gmra.mrb[0].mxu0 %v360
  %v3144 = vpop.f32.mrb[0].mxu0
  %v3145 = vadd.f32 %v2922, %v3144
  %v3146 = vpop.f32.mrb[0].mxu0
  %v3147 = vadd.f32 %v2924, %v3146
  %v3148 = vpop.f32.mrb[0].mxu0
  %v3149 = vadd.f32 %v2926, %v3148
  %v3150 = vpop.f32.mrb[0].mxu0
  %v3151 = vadd.f32 %v2928, %v3150
  %3152 = vmatprep.mubr.bf16.mxu0 %v368
  %3153 = vmatmul.mubr.bf16.gmra.mrb[0].mxu0 %v367
  %v3154 = vpop.f32.mrb[0].mxu0
  %v3155 = vadd.f32 %v2932, %v3154
  %v3156 = vpop.f32.mrb[0].mxu0
  %v3157 = vadd.f32 %v2934, %v3156
  %v3158 = vpop.f32.mrb[0].mxu0
  %v3159 = vadd.f32 %v2936, %v3158
  %v3160 = vpop.f32.mrb[0].mxu0
  %v3161 = vadd.f32 %v2938, %v3160
  %3162 = vmatprep.mubr.bf16.mxu0 %v375
  %3163 = vmatmul.mubr.bf16.gmra.mrb[0].mxu0 %v374
  %v3164 = vpop.f32.mrb[0].mxu0
  %v3165 = vadd.f32 %v2942, %v3164
  %v3166 = vpop.f32.mrb[0].mxu0
  %v3167 = vadd.f32 %v2944, %v3166
  %v3168 = vpop.f32.mrb[0].mxu0
  %v3169 = vadd.f32 %v2946, %v3168
  %v3170 = vpop.f32.mrb[0].mxu0
  %v3171 = vadd.f32 %v2948, %v3170
  %3172 = vmatprep.mubr.bf16.mxu0 %v382
  %3173 = vmatmul.mubr.bf16.gmra.mrb[0].mxu0 %v381
  %v3174 = vpop.f32.mrb[0].mxu0
  %v3175 = vadd.f32 %v2952, %v3174
  %v3176 = vpop.f32.mrb[0].mxu0
  %v3177 = vadd.f32 %v2954, %v3176
  %v3178 = vpop.f32.mrb[0].mxu0
  %v3179 = vadd.f32 %v2956, %v3178
  %v3180 = vpop.f32.mrb[0].mxu0
  %v3181 = vadd.f32 %v2958, %v3180
  %3182 = vmatprep.mubr.bf16.mxu0 %v389
  %3183 = vmatmul.mubr.bf16.gmra.mrb[0].mxu0 %v388
  %v3184 = vpop.f32.mrb[0].mxu0
  %v3185 = vadd.f32 %v2962, %v3184
  %v3186 = vpop.f32.mrb[0].mxu0
  %v3187 = vadd.f32 %v2964, %v3186
  %v3188 = vpop.f32.mrb[0].mxu0
  %v3189 = vadd.f32 %v2966, %v3188
  %v3190 = vpop.f32.mrb[0].mxu0
  %v3191 = vadd.f32 %v2968, %v3190
  %3192 = vmatprep.mubr.bf16.mxu0 %v396
  %3193 = vmatmul.mubr.bf16.gmra.mrb[0].mxu0 %v395
  %v3194 = vpop.f32.mrb[0].mxu0
  %v3195 = vadd.f32 %v2972, %v3194
  %v3196 = vpop.f32.mrb[0].mxu0
  %v3197 = vadd.f32 %v2974, %v3196
  %v3198 = vpop.f32.mrb[0].mxu0
  %v3199 = vadd.f32 %v2976, %v3198
  %v3200 = vpop.f32.mrb[0].mxu0
  %v3201 = vadd.f32 %v2978, %v3200
  %3202 = vmatprep.mubr.bf16.mxu0 %v403
  %3203 = vmatmul.mubr.bf16.gmra.mrb[0].mxu0 %v402
  %v3204 = vpop.f32.mrb[0].mxu0
  %v3205 = vadd.f32 %v2982, %v3204
  %v3206 = vpop.f32.mrb[0].mxu0
  %v3207 = vadd.f32 %v2984, %v3206
  %v3208 = vpop.f32.mrb[0].mxu0
  %v3209 = vadd.f32 %v2986, %v3208
  %v3210 = vpop.f32.mrb[0].mxu0
  %v3211 = vadd.f32 %v2988, %v3210
  %3212 = vmatprep.mubr.bf16.mxu0 %v410
  %3213 = vmatmul.mubr.bf16.gmra.mrb[0].mxu0 %v409
  %v3214 = vpop.f32.mrb[0].mxu0
  %v3215 = vadd.f32 %v2992, %v3214
  %v3216 = vpop.f32.mrb[0].mxu0
  %v3217 = vadd.f32 %v2994, %v3216
  %v3218 = vpop.f32.mrb[0].mxu0
  %v3219 = vadd.f32 %v2996, %v3218
  %v3220 = vpop.f32.mrb[0].mxu0
  %v3221 = vadd.f32 %v2998, %v3220
  %3222 = vmatprep.mubr.bf16.mxu0 %v417
  %3223 = vmatmul.mubr.bf16.gmra.mrb[0].mxu0 %v416
  %v3224 = vpop.f32.mrb[0].mxu0
  %v3225 = vadd.f32 %v3002, %v3224
  %v3226 = vpop.f32.mrb[0].mxu0
  %v3227 = vadd.f32 %v3004, %v3226
  %v3228 = vpop.f32.mrb[0].mxu0
  %v3229 = vadd.f32 %v3006, %v3228
  %v3230 = vpop.f32.mrb[0].mxu0
  %v3231 = vadd.f32 %v3008, %v3230
  %3232 = vmatprep.mubr.bf16.mxu0 %v424
  %3233 = vmatmul.mubr.bf16.gmra.mrb[0].mxu0 %v423
  %v3234 = vpop.f32.mrb[0].mxu0
  %v3235 = vadd.f32 %v3012, %v3234
  %v3236 = vpop.f32.mrb[0].mxu0
  %v3237 = vadd.f32 %v3014, %v3236
  %v3238 = vpop.f32.mrb[0].mxu0
  %v3239 = vadd.f32 %v3016, %v3238
  %v3240 = vpop.f32.mrb[0].mxu0
  %v3241 = vadd.f32 %v3018, %v3240
  %3242 = vdwg.mxu0
  %3243 = vmatprep.subr.bf16.mxu0 %v1427
  %3244 = vmatpush1.bf16.msra.mxu0 %v1426
  %3245 = vmatprep.subr.bf16.mxu0 0
  %3246 = vmatpush1.bf16.msra.mxu0 0
  %3247 = vmatprep.subr.bf16.mxu0 0
  %3248 = vmatpush1.bf16.msra.mxu0 0
  %3249 = vmatprep.subr.bf16.mxu0 0
  %3250 = vmatpush1.bf16.msra.mxu0 0
  %3251 = vmatprep.subr.bf16.mxu0 0
  %3252 = vmatpush1.bf16.msra.mxu0 0
  %3253 = vmatprep.subr.bf16.mxu0 0
  %3254 = vmatpush1.bf16.msra.mxu0 0
  %3255 = vmatprep.subr.bf16.mxu0 0
  %3256 = vmatpush1.bf16.msra.mxu0 0
  %3257 = vmatprep.subr.bf16.mxu0 0
  %3258 = vmatpush1.bf16.msra.mxu0 0
  %3259 = vmatprep.subr.bf16.mxu0 0
  %3260 = vmatpush1.bf16.msra.mxu0 0
  %3261 = vmatprep.subr.bf16.mxu0 0
  %3262 = vmatpush1.bf16.msra.mxu0 0
  %3263 = vmatprep.subr.bf16.mxu0 0
  %3264 = vmatpush1.bf16.msra.mxu0 0
  %3265 = vmatprep.subr.bf16.mxu0 0
  %3266 = vmatpush1.bf16.msra.mxu0 0
  %3267 = vmatprep.subr.bf16.mxu0 0
  %3268 = vmatpush1.bf16.msra.mxu0 0
  %3269 = vmatprep.subr.bf16.mxu0 0
  %3270 = vmatpush1.bf16.msra.mxu0 0
  %3271 = vmatprep.subr.bf16.mxu0 0
  %3272 = vmatpush1.bf16.msra.mxu0 0
  %3273 = vmatprep.subr.bf16.mxu0 0
  %3274 = vmatpush1.bf16.msra.mxu0 0
  %3275 = vmatprep.mubr.bf16.mxu0 0
  %3276 = vmatmul.mubr.bf16.gmra.mrb[0].mxu0 %v1626
  %v3277 = vpop.f32.mrb[0].mxu0
  %v3278 = vadd.f32 %v3055, %v3277
  %v3279 = vpop.f32.mrb[0].mxu0
  %v3280 = vadd.f32 %v3057, %v3279
  %v3281 = vpop.f32.mrb[0].mxu0
  %v3282 = vadd.f32 %v3059, %v3281
  %v3283 = vpop.f32.mrb[0].mxu0
  %v3284 = vadd.f32 %v3061, %v3283
  %3285 = vmatprep.mubr.bf16.mxu0 0
  %3286 = vmatmul.mubr.bf16.gmra.mrb[0].mxu0 %v1629
  %v3287 = vpop.f32.mrb[0].mxu0
  %v3288 = vadd.f32 %v3065, %v3287
  %v3289 = vpop.f32.mrb[0].mxu0
  %v3290 = vadd.f32 %v3067, %v3289
  %v3291 = vpop.f32.mrb[0].mxu0
  %v3292 = vadd.f32 %v3069, %v3291
  %v3293 = vpop.f32.mrb[0].mxu0
  %v3294 = vadd.f32 %v3071, %v3293
  %3295 = vmatprep.mubr.bf16.mxu0 0
  %3296 = vmatmul.mubr.bf16.gmra.mrb[0].mxu0 %v1632
  %v3297 = vpop.f32.mrb[0].mxu0
  %v3298 = vadd.f32 %v3075, %v3297
  %v3299 = vpop.f32.mrb[0].mxu0
  %v3300 = vadd.f32 %v3077, %v3299
  %v3301 = vpop.f32.mrb[0].mxu0
  %v3302 = vadd.f32 %v3079, %v3301
  %v3303 = vpop.f32.mrb[0].mxu0
  %v3304 = vadd.f32 %v3081, %v3303
  %3305 = vmatprep.mubr.bf16.mxu0 0
  %3306 = vmatmul.mubr.bf16.gmra.mrb[0].mxu0 %v1635
  %v3307 = vpop.f32.mrb[0].mxu0
  %v3308 = vadd.f32 %v3085, %v3307
  %v3309 = vpop.f32.mrb[0].mxu0
  %v3310 = vadd.f32 %v3087, %v3309
  %v3311 = vpop.f32.mrb[0].mxu0
  %v3312 = vadd.f32 %v3089, %v3311
  %v3313 = vpop.f32.mrb[0].mxu0
  %v3314 = vadd.f32 %v3091, %v3313
  %3315 = vmatprep.mubr.bf16.mxu0 0
  %3316 = vmatmul.mubr.bf16.gmra.mrb[0].mxu0 %v1638
  %v3317 = vpop.f32.mrb[0].mxu0
  %v3318 = vadd.f32 %v3095, %v3317
  %v3319 = vpop.f32.mrb[0].mxu0
  %v3320 = vadd.f32 %v3097, %v3319
  %v3321 = vpop.f32.mrb[0].mxu0
  %v3322 = vadd.f32 %v3099, %v3321
  %v3323 = vpop.f32.mrb[0].mxu0
  %v3324 = vadd.f32 %v3101, %v3323
  %3325 = vmatprep.mubr.bf16.mxu0 0
  %3326 = vmatmul.mubr.bf16.gmra.mrb[0].mxu0 %v1641
  %v3327 = vpop.f32.mrb[0].mxu0
  %v3328 = vadd.f32 %v3105, %v3327
  %v3329 = vpop.f32.mrb[0].mxu0
  %v3330 = vadd.f32 %v3107, %v3329
  %v3331 = vpop.f32.mrb[0].mxu0
  %v3332 = vadd.f32 %v3109, %v3331
  %v3333 = vpop.f32.mrb[0].mxu0
  %v3334 = vadd.f32 %v3111, %v3333
  %3335 = vmatprep.mubr.bf16.mxu0 0
  %3336 = vmatmul.mubr.bf16.gmra.mrb[0].mxu0 %v1644
  %v3337 = vpop.f32.mrb[0].mxu0
  %v3338 = vadd.f32 %v3115, %v3337
  %v3339 = vpop.f32.mrb[0].mxu0
  %v3340 = vadd.f32 %v3117, %v3339
  %v3341 = vpop.f32.mrb[0].mxu0
  %v3342 = vadd.f32 %v3119, %v3341
  %v3343 = vpop.f32.mrb[0].mxu0
  %v3344 = vadd.f32 %v3121, %v3343
  %3345 = vmatprep.mubr.bf16.mxu0 0
  %3346 = vmatmul.mubr.bf16.gmra.mrb[0].mxu0 %v1647
  %v3347 = vpop.f32.mrb[0].mxu0
  %v3348 = vadd.f32 %v3125, %v3347
  %v3349 = vpop.f32.mrb[0].mxu0
  %v3350 = vadd.f32 %v3127, %v3349
  %v3351 = vpop.f32.mrb[0].mxu0
  %v3352 = vadd.f32 %v3129, %v3351
  %v3353 = vpop.f32.mrb[0].mxu0
  %v3354 = vadd.f32 %v3131, %v3353
  %3355 = vmatprep.mubr.bf16.mxu0 0
  %3356 = vmatmul.mubr.bf16.gmra.mrb[0].mxu0 %v1650
  %v3357 = vpop.f32.mrb[0].mxu0
  %v3358 = vadd.f32 %v3135, %v3357
  %v3359 = vpop.f32.mrb[0].mxu0
  %v3360 = vadd.f32 %v3137, %v3359
  %v3361 = vpop.f32.mrb[0].mxu0
  %v3362 = vadd.f32 %v3139, %v3361
  %v3363 = vpop.f32.mrb[0].mxu0
  %v3364 = vadd.f32 %v3141, %v3363
  %3365 = vmatprep.mubr.bf16.mxu0 0
  %3366 = vmatmul.mubr.bf16.gmra.mrb[0].mxu0 %v1653
  %v3367 = vpop.f32.mrb[0].mxu0
  %v3368 = vadd.f32 %v3145, %v3367
  %v3369 = vpop.f32.mrb[0].mxu0
  %v3370 = vadd.f32 %v3147, %v3369
  %v3371 = vpop.f32.mrb[0].mxu0
  %v3372 = vadd.f32 %v3149, %v3371
  %v3373 = vpop.f32.mrb[0].mxu0
  %v3374 = vadd.f32 %v3151, %v3373
  %3375 = vmatprep.mubr.bf16.mxu0 0
  %3376 = vmatmul.mubr.bf16.gmra.mrb[0].mxu0 %v1656
  %v3377 = vpop.f32.mrb[0].mxu0
  %v3378 = vadd.f32 %v3155, %v3377
  %v3379 = vpop.f32.mrb[0].mxu0
  %v3380 = vadd.f32 %v3157, %v3379
  %v3381 = vpop.f32.mrb[0].mxu0
  %v3382 = vadd.f32 %v3159, %v3381
  %v3383 = vpop.f32.mrb[0].mxu0
  %v3384 = vadd.f32 %v3161, %v3383
  %3385 = vmatprep.mubr.bf16.mxu0 0
  %3386 = vmatmul.mubr.bf16.gmra.mrb[0].mxu0 %v1659
  %v3387 = vpop.f32.mrb[0].mxu0
  %v3388 = vadd.f32 %v3165, %v3387
  %v3389 = vpop.f32.mrb[0].mxu0
  %v3390 = vadd.f32 %v3167, %v3389
  %v3391 = vpop.f32.mrb[0].mxu0
  %v3392 = vadd.f32 %v3169, %v3391
  %v3393 = vpop.f32.mrb[0].mxu0
  %v3394 = vadd.f32 %v3171, %v3393
  %3395 = vmatprep.mubr.bf16.mxu0 0
  %3396 = vmatmul.mubr.bf16.gmra.mrb[0].mxu0 %v1662
  %v3397 = vpop.f32.mrb[0].mxu0
  %v3398 = vadd.f32 %v3175, %v3397
  %v3399 = vpop.f32.mrb[0].mxu0
  %v3400 = vadd.f32 %v3177, %v3399
  %v3401 = vpop.f32.mrb[0].mxu0
  %v3402 = vadd.f32 %v3179, %v3401
  %v3403 = vpop.f32.mrb[0].mxu0
  %v3404 = vadd.f32 %v3181, %v3403
  %3405 = vmatprep.mubr.bf16.mxu0 0
  %3406 = vmatmul.mubr.bf16.gmra.mrb[0].mxu0 %v1665
  %v3407 = vpop.f32.mrb[0].mxu0
  %v3408 = vadd.f32 %v3185, %v3407
  %v3409 = vpop.f32.mrb[0].mxu0
  %v3410 = vadd.f32 %v3187, %v3409
  %v3411 = vpop.f32.mrb[0].mxu0
  %v3412 = vadd.f32 %v3189, %v3411
  %v3413 = vpop.f32.mrb[0].mxu0
  %v3414 = vadd.f32 %v3191, %v3413
  %3415 = vmatprep.mubr.bf16.mxu0 0
  %3416 = vmatmul.mubr.bf16.gmra.mrb[0].mxu0 %v1668
  %v3417 = vpop.f32.mrb[0].mxu0
  %v3418 = vadd.f32 %v3195, %v3417
  %v3419 = vpop.f32.mrb[0].mxu0
  %v3420 = vadd.f32 %v3197, %v3419
  %v3421 = vpop.f32.mrb[0].mxu0
  %v3422 = vadd.f32 %v3199, %v3421
  %v3423 = vpop.f32.mrb[0].mxu0
  %v3424 = vadd.f32 %v3201, %v3423
  %3425 = vmatprep.mubr.bf16.mxu0 0
  %3426 = vmatmul.mubr.bf16.gmra.mrb[0].mxu0 %v1671
  %v3427 = vpop.f32.mrb[0].mxu0
  %v3428 = vadd.f32 %v3205, %v3427
  %v3429 = vpop.f32.mrb[0].mxu0
  %v3430 = vadd.f32 %v3207, %v3429
  %v3431 = vpop.f32.mrb[0].mxu0
  %v3432 = vadd.f32 %v3209, %v3431
  %v3433 = vpop.f32.mrb[0].mxu0
  %v3434 = vadd.f32 %v3211, %v3433
  %3435 = vmatprep.mubr.bf16.mxu0 0
  %3436 = vmatmul.mubr.bf16.gmra.mrb[0].mxu0 %v1674
  %v3437 = vpop.f32.mrb[0].mxu0
  %v3438 = vadd.f32 %v3215, %v3437
  %v3439 = vpop.f32.mrb[0].mxu0
  %v3440 = vadd.f32 %v3217, %v3439
  %v3441 = vpop.f32.mrb[0].mxu0
  %v3442 = vadd.f32 %v3219, %v3441
  %v3443 = vpop.f32.mrb[0].mxu0
  %v3444 = vadd.f32 %v3221, %v3443
  %3445 = vmatprep.mubr.bf16.mxu0 0
  %3446 = vmatmul.mubr.bf16.gmra.mrb[0].mxu0 %v1677
  %v3447 = vpop.f32.mrb[0].mxu0
  %v3448 = vadd.f32 %v3225, %v3447
  %v3449 = vpop.f32.mrb[0].mxu0
  %v3450 = vadd.f32 %v3227, %v3449
  %v3451 = vpop.f32.mrb[0].mxu0
  %v3452 = vadd.f32 %v3229, %v3451
  %v3453 = vpop.f32.mrb[0].mxu0
  %v3454 = vadd.f32 %v3231, %v3453
  %3455 = vmatprep.mubr.bf16.mxu0 0
  %3456 = vmatmul.mubr.bf16.gmra.mrb[0].mxu0 %v1680
  %v3457 = vpop.f32.mrb[0].mxu0
  %v3458 = vadd.f32 %v3235, %v3457
  %v3459 = vpop.f32.mrb[0].mxu0
  %v3460 = vadd.f32 %v3237, %v3459
  %v3461 = vpop.f32.mrb[0].mxu0
  %v3462 = vadd.f32 %v3239, %v3461
  %v3463 = vpop.f32.mrb[0].mxu0
  %v3464 = vadd.f32 %v3241, %v3463
  %3465 = vdwg.mxu0
  %v3466 = vmax.f32 %v2386, 0.0
  %v3467 = vmax.f32 %v2388, 0.0
  %v3468 = vmax.f32 %v3278, 0.0
  %v3469 = vmax.f32 %v3280, 0.0
  %v3470 = vmax.f32 %v2390, 0.0
  %v3471 = vmax.f32 %v2392, 0.0
  %v3472 = vmax.f32 %v3282, 0.0
  %v3473 = vmax.f32 %v3284, 0.0
  %v3474 = vmax.f32 %v2396, 0.0
  %v3475 = vmax.f32 %v2398, 0.0
  %v3476 = vmax.f32 %v3288, 0.0
  %v3477 = vmax.f32 %v3290, 0.0
  %v3478 = vmax.f32 %v2400, 0.0
  %v3479 = vmax.f32 %v2402, 0.0
  %v3480 = vmax.f32 %v3292, 0.0
  %v3481 = vmax.f32 %v3294, 0.0
  %v3482 = vmax.f32 %v2406, 0.0
  %v3483 = vmax.f32 %v2408, 0.0
  %v3484 = vmax.f32 %v3298, 0.0
  %v3485 = vmax.f32 %v3300, 0.0
  %v3486 = vmax.f32 %v2410, 0.0
  %v3487 = vmax.f32 %v2412, 0.0
  %v3488 = vmax.f32 %v3302, 0.0
  %v3489 = vmax.f32 %v3304, 0.0
  %v3490 = vmax.f32 %v2416, 0.0
  %v3491 = vmax.f32 %v2418, 0.0
  %v3492 = vmax.f32 %v3308, 0.0
  %v3493 = vmax.f32 %v3310, 0.0
  %v3494 = vmax.f32 %v2420, 0.0
  %v3495 = vmax.f32 %v2422, 0.0
  %v3496 = vmax.f32 %v3312, 0.0
  %v3497 = vmax.f32 %v3314, 0.0
  %v3498 = vmax.f32 %v2426, 0.0
  %v3499 = vmax.f32 %v2428, 0.0
  %v3500 = vmax.f32 %v3318, 0.0
  %v3501 = vmax.f32 %v3320, 0.0
  %v3502 = vmax.f32 %v2430, 0.0
  %v3503 = vmax.f32 %v2432, 0.0
  %v3504 = vmax.f32 %v3322, 0.0
  %v3505 = vmax.f32 %v3324, 0.0
  %v3506 = vmax.f32 %v2436, 0.0
  %v3507 = vmax.f32 %v2438, 0.0
  %v3508 = vmax.f32 %v3328, 0.0
  %v3509 = vmax.f32 %v3330, 0.0
  %v3510 = vmax.f32 %v2440, 0.0
  %v3511 = vmax.f32 %v2442, 0.0
  %v3512 = vmax.f32 %v3332, 0.0
  %v3513 = vmax.f32 %v3334, 0.0
  %v3514 = vmax.f32 %v2446, 0.0
  %v3515 = vmax.f32 %v2448, 0.0
  %v3516 = vmax.f32 %v3338, 0.0
  %v3517 = vmax.f32 %v3340, 0.0
  %v3518 = vmax.f32 %v2450, 0.0
  %v3519 = vmax.f32 %v2452, 0.0
  %v3520 = vmax.f32 %v3342, 0.0
  %v3521 = vmax.f32 %v3344, 0.0
  %v3522 = vmax.f32 %v2456, 0.0
  %v3523 = vmax.f32 %v2458, 0.0
  %v3524 = vmax.f32 %v3348, 0.0
  %v3525 = vmax.f32 %v3350, 0.0
  %v3526 = vmax.f32 %v2460, 0.0
  %v3527 = vmax.f32 %v2462, 0.0
  %v3528 = vmax.f32 %v3352, 0.0
  %v3529 = vmax.f32 %v3354, 0.0
  %v3530 = vmax.f32 %v2466, 0.0
  %v3531 = vmax.f32 %v2468, 0.0
  %v3532 = vmax.f32 %v3358, 0.0
  %v3533 = vmax.f32 %v3360, 0.0
  %v3534 = vmax.f32 %v2470, 0.0
  %v3535 = vmax.f32 %v2472, 0.0
  %v3536 = vmax.f32 %v3362, 0.0
  %v3537 = vmax.f32 %v3364, 0.0
  %v3538 = vmax.f32 %v2476, 0.0
  %v3539 = vmax.f32 %v2478, 0.0
  %v3540 = vmax.f32 %v3368, 0.0
  %v3541 = vmax.f32 %v3370, 0.0
  %v3542 = vmax.f32 %v2480, 0.0
  %v3543 = vmax.f32 %v2482, 0.0
  %v3544 = vmax.f32 %v3372, 0.0
  %v3545 = vmax.f32 %v3374, 0.0
  %v3546 = vmax.f32 %v2486, 0.0
  %v3547 = vmax.f32 %v2488, 0.0
  %v3548 = vmax.f32 %v3378, 0.0
  %v3549 = vmax.f32 %v3380, 0.0
  %v3550 = vmax.f32 %v2490, 0.0
  %v3551 = vmax.f32 %v2492, 0.0
  %v3552 = vmax.f32 %v3382, 0.0
  %v3553 = vmax.f32 %v3384, 0.0
  %v3554 = vmax.f32 %v2496, 0.0
  %v3555 = vmax.f32 %v2498, 0.0
  %v3556 = vmax.f32 %v3388, 0.0
  %v3557 = vmax.f32 %v3390, 0.0
  %v3558 = vmax.f32 %v2500, 0.0
  %v3559 = vmax.f32 %v2502, 0.0
  %v3560 = vmax.f32 %v3392, 0.0
  %v3561 = vmax.f32 %v3394, 0.0
  %v3562 = vmax.f32 %v2506, 0.0
  %v3563 = vmax.f32 %v2508, 0.0
  %v3564 = vmax.f32 %v3398, 0.0
  %v3565 = vmax.f32 %v3400, 0.0
  %v3566 = vmax.f32 %v2510, 0.0
  %v3567 = vmax.f32 %v2512, 0.0
  %v3568 = vmax.f32 %v3402, 0.0
  %v3569 = vmax.f32 %v3404, 0.0
  %v3570 = vmax.f32 %v2516, 0.0
  %v3571 = vmax.f32 %v2518, 0.0
  %v3572 = vmax.f32 %v3408, 0.0
  %v3573 = vmax.f32 %v3410, 0.0
  %v3574 = vmax.f32 %v2520, 0.0
  %v3575 = vmax.f32 %v2522, 0.0
  %v3576 = vmax.f32 %v3412, 0.0
  %v3577 = vmax.f32 %v3414, 0.0
  %v3578 = vmax.f32 %v2526, 0.0
  %v3579 = vmax.f32 %v2528, 0.0
  %v3580 = vmax.f32 %v3418, 0.0
  %v3581 = vmax.f32 %v3420, 0.0
  %v3582 = vmax.f32 %v2530, 0.0
  %v3583 = vmax.f32 %v2532, 0.0
  %v3584 = vmax.f32 %v3422, 0.0
  %v3585 = vmax.f32 %v3424, 0.0
  %v3586 = vmax.f32 %v2536, 0.0
  %v3587 = vmax.f32 %v2538, 0.0
  %v3588 = vmax.f32 %v3428, 0.0
  %v3589 = vmax.f32 %v3430, 0.0
  %v3590 = vmax.f32 %v2540, 0.0
  %v3591 = vmax.f32 %v2542, 0.0
  %v3592 = vmax.f32 %v3432, 0.0
  %v3593 = vmax.f32 %v3434, 0.0
  %v3594 = vmax.f32 %v2546, 0.0
  %v3595 = vmax.f32 %v2548, 0.0
  %v3596 = vmax.f32 %v3438, 0.0
  %v3597 = vmax.f32 %v3440, 0.0
  %v3598 = vmax.f32 %v2550, 0.0
  %v3599 = vmax.f32 %v2552, 0.0
  %v3600 = vmax.f32 %v3442, 0.0
  %v3601 = vmax.f32 %v3444, 0.0
  %v3602 = vmax.f32 %v2556, 0.0
  %v3603 = vmax.f32 %v2558, 0.0
  %v3604 = vmax.f32 %v3448, 0.0
  %v3605 = vmax.f32 %v3450, 0.0
  %v3606 = vmax.f32 %v2560, 0.0
  %v3607 = vmax.f32 %v2562, 0.0
  %v3608 = vmax.f32 %v3452, 0.0
  %v3609 = vmax.f32 %v3454, 0.0
  %v3610 = vmax.f32 %v2566, 0.0
  %v3611 = vmax.f32 %v2568, 0.0
  %v3612 = vmax.f32 %v3458, 0.0
  %v3613 = vmax.f32 %v3460, 0.0
  %v3614 = vmax.f32 %v2570, 0.0
  %v3615 = vmax.f32 %v2572, 0.0
  %v3616 = vmax.f32 %v3462, 0.0
  %v3617 = vmax.f32 %v3464, 0.0
  %v3618 = vpack.c.bf16 %v3470, %v3466
  %v3619 = vpack.c.bf16 %v3471, %v3467
  %v3620 = vpack.c.bf16 %v3472, %v3468
  %v3621 = vpack.c.bf16 %v3473, %v3469
  %v3622 = vpack.c.bf16 %v3478, %v3474
  %v3623 = vpack.c.bf16 %v3479, %v3475
  %v3624 = vpack.c.bf16 %v3480, %v3476
  %v3625 = vpack.c.bf16 %v3481, %v3477
  %v3626 = vpack.c.bf16 %v3486, %v3482
  %v3627 = vpack.c.bf16 %v3487, %v3483
  %v3628 = vpack.c.bf16 %v3488, %v3484
  %v3629 = vpack.c.bf16 %v3489, %v3485
  %v3630 = vpack.c.bf16 %v3494, %v3490
  %v3631 = vpack.c.bf16 %v3495, %v3491
  %v3632 = vpack.c.bf16 %v3496, %v3492
  %v3633 = vpack.c.bf16 %v3497, %v3493
  %v3634 = vpack.c.bf16 %v3502, %v3498
  %v3635 = vpack.c.bf16 %v3503, %v3499
  %v3636 = vpack.c.bf16 %v3504, %v3500
  %v3637 = vpack.c.bf16 %v3505, %v3501
  %v3638 = vpack.c.bf16 %v3510, %v3506
  %v3639 = vpack.c.bf16 %v3511, %v3507
  %v3640 = vpack.c.bf16 %v3512, %v3508
  %v3641 = vpack.c.bf16 %v3513, %v3509
  %v3642 = vpack.c.bf16 %v3518, %v3514
  %v3643 = vpack.c.bf16 %v3519, %v3515
  %v3644 = vpack.c.bf16 %v3520, %v3516
  %v3645 = vpack.c.bf16 %v3521, %v3517
  %v3646 = vpack.c.bf16 %v3526, %v3522
  %v3647 = vpack.c.bf16 %v3527, %v3523
  %v3648 = vpack.c.bf16 %v3528, %v3524
  %v3649 = vpack.c.bf16 %v3529, %v3525
  %v3650 = vpack.c.bf16 %v3534, %v3530
  %v3651 = vpack.c.bf16 %v3535, %v3531
  %v3652 = vpack.c.bf16 %v3536, %v3532
  %v3653 = vpack.c.bf16 %v3537, %v3533
  %v3654 = vpack.c.bf16 %v3542, %v3538
  %v3655 = vpack.c.bf16 %v3543, %v3539
  %v3656 = vpack.c.bf16 %v3544, %v3540
  %v3657 = vpack.c.bf16 %v3545, %v3541
  %v3658 = vpack.c.bf16 %v3550, %v3546
  %v3659 = vpack.c.bf16 %v3551, %v3547
  %v3660 = vpack.c.bf16 %v3552, %v3548
  %v3661 = vpack.c.bf16 %v3553, %v3549
  %v3662 = vpack.c.bf16 %v3558, %v3554
  %v3663 = vpack.c.bf16 %v3559, %v3555
  %v3664 = vpack.c.bf16 %v3560, %v3556
  %v3665 = vpack.c.bf16 %v3561, %v3557
  %v3666 = vpack.c.bf16 %v3566, %v3562
  %v3667 = vpack.c.bf16 %v3567, %v3563
  %v3668 = vpack.c.bf16 %v3568, %v3564
  %v3669 = vpack.c.bf16 %v3569, %v3565
  %v3670 = vpack.c.bf16 %v3574, %v3570
  %v3671 = vpack.c.bf16 %v3575, %v3571
  %v3672 = vpack.c.bf16 %v3576, %v3572
  %v3673 = vpack.c.bf16 %v3577, %v3573
  %v3674 = vpack.c.bf16 %v3582, %v3578
  %v3675 = vpack.c.bf16 %v3583, %v3579
  %v3676 = vpack.c.bf16 %v3584, %v3580
  %v3677 = vpack.c.bf16 %v3585, %v3581
  %v3678 = vpack.c.bf16 %v3590, %v3586
  %v3679 = vpack.c.bf16 %v3591, %v3587
  %v3680 = vpack.c.bf16 %v3592, %v3588
  %v3681 = vpack.c.bf16 %v3593, %v3589
  %v3682 = vpack.c.bf16 %v3598, %v3594
  %v3683 = vpack.c.bf16 %v3599, %v3595
  %v3684 = vpack.c.bf16 %v3600, %v3596
  %v3685 = vpack.c.bf16 %v3601, %v3597
  %v3686 = vpack.c.bf16 %v3606, %v3602
  %v3687 = vpack.c.bf16 %v3607, %v3603
  %v3688 = vpack.c.bf16 %v3608, %v3604
  %v3689 = vpack.c.bf16 %v3609, %v3605
  %v3690 = vpack.c.bf16 %v3614, %v3610
  %v3691 = vpack.c.bf16 %v3615, %v3611
  %v3692 = vpack.c.bf16 %v3616, %v3612
  %v3693 = vpack.c.bf16 %v3617, %v3613
  %v3694 = vld [vmem:[%s3] sm:$0xff]
  %v3695 = vld [vmem:[%s3 + $0x8] sm:$0xff]
  %v3696 = vld [vmem:[%s3 + $0x10] sm:$0xff]
  %v3697 = vld [vmem:[%s3 + $0x18] sm:$0xff]
  %v3698 = vld [vmem:[%s3 + $0x20] sm:$0xff]
  %v3699 = vld [vmem:[%s3 + $0x28] sm:$0xff]
  %v3700 = vld [vmem:[%s3 + $0x30] sm:$0xff]
  %v3701 = vld [vmem:[%s3 + $0x38] sm:$0xff]
  %v3702 = vld [vmem:[%s3 + $0x40] sm:$0xff]
  %v3703 = vld [vmem:[%s3 + $0x48] sm:$0xff]
  %v3704 = vld [vmem:[%s3 + $0x50] sm:$0xff]
  %v3705 = vld [vmem:[%s3 + $0x58] sm:$0xff]
  %v3706 = vld [vmem:[%s3 + $0x60] sm:$0xff]
  %v3707 = vld [vmem:[%s3 + $0x68] sm:$0xff]
  %v3708 = vld [vmem:[%s3 + $0x70] sm:$0xff]
  %v3709 = vld [vmem:[%s3 + $0x78] sm:$0xff]
  %v3710 = vld [vmem:[%s3 + $0x80] sm:$0xff]
  %v3711 = vld [vmem:[%s3 + $0x88] sm:$0xff]
  %v3712 = vld [vmem:[%s3 + $0x90] sm:$0xff]
  %v3713 = vld [vmem:[%s3 + $0x98] sm:$0xff]
  %v3714 = vld [vmem:[%s3 + $0xa0] sm:$0xff]
  %v3715 = vld [vmem:[%s3 + $0xa8] sm:$0xff]
  %v3716 = vld [vmem:[%s3 + $0xb0] sm:$0xff]
  %v3717 = vld [vmem:[%s3 + $0xb8] sm:$0xff]
  %v3718 = vld [vmem:[%s3 + $0xc0] sm:$0xff]
  %v3719 = vld [vmem:[%s3 + $0xc8] sm:$0xff]
  %v3720 = vld [vmem:[%s3 + $0xd0] sm:$0xff]
  %v3721 = vld [vmem:[%s3 + $0xd8] sm:$0xff]
  %v3722 = vld [vmem:[%s3 + $0xe0] sm:$0xff]
  %v3723 = vld [vmem:[%s3 + $0xe8] sm:$0xff]
  %v3724 = vld [vmem:[%s3 + $0xf0] sm:$0xff]
  %v3725 = vld [vmem:[%s3 + $0xf8] sm:$0xff]
  %v3726 = vld [vmem:[%s3 + $0x100] sm:$0xff]
  %v3727 = vld [vmem:[%s3 + $0x108] sm:$0xff]
  %v3728 = vld [vmem:[%s3 + $0x110] sm:$0xff]
  %v3729 = vld [vmem:[%s3 + $0x118] sm:$0xff]
  %v3730 = vld [vmem:[%s3 + $0x120] sm:$0xff]
  %v3731 = vld [vmem:[%s3 + $0x128] sm:$0xff]
  %v3732 = vld [vmem:[%s3 + $0x130] sm:$0xff]
  %v3733 = vld [vmem:[%s3 + $0x138] sm:$0xff]
  %v3734 = vld [vmem:[%s3 + $0x140] sm:$0xff]
  %v3735 = vld [vmem:[%s3 + $0x148] sm:$0xff]
  %v3736 = vld [vmem:[%s3 + $0x150] sm:$0xff]
  %v3737 = vld [vmem:[%s3 + $0x158] sm:$0xff]
  %v3738 = vld [vmem:[%s3 + $0x160] sm:$0xff]
  %v3739 = vld [vmem:[%s3 + $0x168] sm:$0xff]
  %v3740 = vld [vmem:[%s3 + $0x170] sm:$0xff]
  %v3741 = vld [vmem:[%s3 + $0x178] sm:$0xff]
  %v3742 = vld [vmem:[%s3 + $0x180] sm:$0xff]
  %v3743 = vld [vmem:[%s3 + $0x188] sm:$0xff]
  %v3744 = vld [vmem:[%s3 + $0x190] sm:$0xff]
  %v3745 = vld [vmem:[%s3 + $0x198] sm:$0xff]
  %v3746 = vld [vmem:[%s3 + $0x1a0] sm:$0xff]
  %v3747 = vld [vmem:[%s3 + $0x1a8] sm:$0xff]
  %v3748 = vld [vmem:[%s3 + $0x1b0] sm:$0xff]
  %v3749 = vld [vmem:[%s3 + $0x1b8] sm:$0xff]
  %v3750 = vld [vmem:[%s3 + $0x1c0] sm:$0xff]
  %v3751 = vld [vmem:[%s3 + $0x1c8] sm:$0xff]
  %v3752 = vld [vmem:[%s3 + $0x1d0] sm:$0xff]
  %v3753 = vld [vmem:[%s3 + $0x1d8] sm:$0xff]
  %v3754 = vld [vmem:[%s3 + $0x1e0] sm:$0xff]
  %v3755 = vld [vmem:[%s3 + $0x1e8] sm:$0xff]
  %v3756 = vld [vmem:[%s3 + $0x1f0] sm:$0xff]
  %v3757 = vld [vmem:[%s3 + $0x1f8] sm:$0xff]
  %v3758 = vld [vmem:[%s3 + $0x200] sm:$0xff]
  %v3759 = vld [vmem:[%s3 + $0x208] sm:$0xff]
  %v3760 = vld [vmem:[%s3 + $0x210] sm:$0xff]
  %v3761 = vld [vmem:[%s3 + $0x218] sm:$0xff]
  %v3762 = vld [vmem:[%s3 + $0x220] sm:$0xff]
  %v3763 = vld [vmem:[%s3 + $0x228] sm:$0xff]
  %v3764 = vld [vmem:[%s3 + $0x230] sm:$0xff]
  %v3765 = vld [vmem:[%s3 + $0x238] sm:$0xff]
  %v3766 = vld [vmem:[%s3 + $0x240] sm:$0xff]
  %v3767 = vld [vmem:[%s3 + $0x248] sm:$0xff]
  %v3768 = vld [vmem:[%s3 + $0x250] sm:$0xff]
  %v3769 = vld [vmem:[%s3 + $0x258] sm:$0xff]
  %v3770 = vld [vmem:[%s3 + $0x260] sm:$0xff]
  %v3771 = vld [vmem:[%s3 + $0x268] sm:$0xff]
  %v3772 = vld [vmem:[%s3 + $0x270] sm:$0xff]
  %v3773 = vld [vmem:[%s3 + $0x278] sm:$0xff]
  %v3774 = vld [vmem:[%s3 + $0x280] sm:$0xff]
  %v3775 = vld [vmem:[%s3 + $0x288] sm:$0xff]
  %v3776 = vld [vmem:[%s3 + $0x290] sm:$0xff]
  %v3777 = vld [vmem:[%s3 + $0x298] sm:$0xff]
  %v3778 = vld [vmem:[%s3 + $0x2a0] sm:$0xff]
  %v3779 = vld [vmem:[%s3 + $0x2a8] sm:$0xff]
  %v3780 = vld [vmem:[%s3 + $0x2b0] sm:$0xff]
  %v3781 = vld [vmem:[%s3 + $0x2b8] sm:$0xff]
  %v3782 = vld [vmem:[%s3 + $0x2c0] sm:$0xff]
  %v3783 = vld [vmem:[%s3 + $0x2c8] sm:$0xff]
  %v3784 = vld [vmem:[%s3 + $0x2d0] sm:$0xff]
  %v3785 = vld [vmem:[%s3 + $0x2d8] sm:$0xff]
  %v3786 = vld [vmem:[%s3 + $0x2e0] sm:$0xff]
  %v3787 = vld [vmem:[%s3 + $0x2e8] sm:$0xff]
  %v3788 = vld [vmem:[%s3 + $0x2f0] sm:$0xff]
  %v3789 = vld [vmem:[%s3 + $0x2f8] sm:$0xff]
  %v3790 = vld [vmem:[%s3 + $0x300] sm:$0xff]
  %v3791 = vld [vmem:[%s3 + $0x308] sm:$0xff]
  %v3792 = vld [vmem:[%s3 + $0x310] sm:$0xff]
  %v3793 = vld [vmem:[%s3 + $0x318] sm:$0xff]
  %v3794 = vld [vmem:[%s3 + $0x320] sm:$0xff]
  %v3795 = vld [vmem:[%s3 + $0x328] sm:$0xff]
  %v3796 = vld [vmem:[%s3 + $0x330] sm:$0xff]
  %v3797 = vld [vmem:[%s3 + $0x338] sm:$0xff]
  %v3798 = vld [vmem:[%s3 + $0x340] sm:$0xff]
  %v3799 = vld [vmem:[%s3 + $0x348] sm:$0xff]
  %v3800 = vld [vmem:[%s3 + $0x350] sm:$0xff]
  %v3801 = vld [vmem:[%s3 + $0x358] sm:$0xff]
  %v3802 = vld [vmem:[%s3 + $0x360] sm:$0xff]
  %v3803 = vld [vmem:[%s3 + $0x368] sm:$0xff]
  %v3804 = vld [vmem:[%s3 + $0x370] sm:$0xff]
  %v3805 = vld [vmem:[%s3 + $0x378] sm:$0xff]
  %v3806 = vld [vmem:[%s3 + $0x380] sm:$0xff]
  %v3807 = vld [vmem:[%s3 + $0x388] sm:$0xff]
  %v3808 = vld [vmem:[%s3 + $0x390] sm:$0xff]
  %v3809 = vld [vmem:[%s3 + $0x398] sm:$0xff]
  %v3810 = vld [vmem:[%s3 + $0x3a0] sm:$0xff]
  %v3811 = vld [vmem:[%s3 + $0x3a8] sm:$0xff]
  %v3812 = vld [vmem:[%s3 + $0x3b0] sm:$0xff]
  %v3813 = vld [vmem:[%s3 + $0x3b8] sm:$0xff]
  %v3814 = vld [vmem:[%s3 + $0x3c0] sm:$0xff]
  %v3815 = vld [vmem:[%s3 + $0x3c8] sm:$0xff]
  %v3816 = vld [vmem:[%s3 + $0x3d0] sm:$0xff]
  %v3817 = vld [vmem:[%s3 + $0x3d8] sm:$0xff]
  %v3818 = vld [vmem:[%s3 + $0x3e0] sm:$0xff]
  %v3819 = vld [vmem:[%s3 + $0x3e8] sm:$0xff]
  %v3820 = vld [vmem:[%s3 + $0x3f0] sm:$0xff]
  %v3821 = vld [vmem:[%s3 + $0x3f8] sm:$0xff]
  %v3822 = vld [vmem:[%s4] sm:$0xf]
  %v3824 = vlaneseq
  %v3825 = vshrl.u32 %v3824, 7
  %v3826 = vsub.s32 0, %v3825
  %v3827 = vrot.slane %v3822, %v3826
  %v3828 = vlaneseq
  %v3829 = vshrl.u32 %v3828, 7
  %v3830 = vsub.s32 1, %v3829
  %v3831 = vrot.slane %v3822, %v3830
  %v3832 = vlaneseq
  %v3833 = vshrl.u32 %v3832, 7
  %v3834 = vsub.s32 2, %v3833
  %v3835 = vrot.slane %v3822, %v3834
  %v3836 = vlaneseq
  %v3837 = vshrl.u32 %v3836, 7
  %v3838 = vsub.s32 3, %v3837
  %v3839 = vrot.slane %v3822, %v3838
  %v3972 = vunpack.c.l.b16 %v3694
  %v3973 = vunpack.c.h.b16 %v3694
  %v3974 = vunpack.c.l.b16 %v3695
  %v3975 = vunpack.c.h.b16 %v3695
  %v3976 = vunpack.c.l.b16 %v3696
  %v3977 = vunpack.c.h.b16 %v3696
  %v3978 = vunpack.c.l.b16 %v3697
  %v3979 = vunpack.c.h.b16 %v3697
  %v3980 = vunpack.c.l.b16 %v3698
  %v3981 = vunpack.c.h.b16 %v3698
  %v3982 = vunpack.c.l.b16 %v3699
  %v3983 = vunpack.c.h.b16 %v3699
  %v3984 = vunpack.c.l.b16 %v3700
  %v3985 = vunpack.c.h.b16 %v3700
  %v3986 = vunpack.c.l.b16 %v3701
  %v3987 = vunpack.c.h.b16 %v3701
  %v3988 = vunpack.c.l.b16 %v3702
  %v3989 = vunpack.c.h.b16 %v3702
  %v3990 = vunpack.c.l.b16 %v3703
  %v3991 = vunpack.c.h.b16 %v3703
  %v3992 = vunpack.c.l.b16 %v3704
  %v3993 = vunpack.c.h.b16 %v3704
  %v3994 = vunpack.c.l.b16 %v3705
  %v3995 = vunpack.c.h.b16 %v3705
  %v3996 = vunpack.c.l.b16 %v3706
  %v3997 = vunpack.c.h.b16 %v3706
  %v3998 = vunpack.c.l.b16 %v3707
  %v3999 = vunpack.c.h.b16 %v3707
  %v4000 = vunpack.c.l.b16 %v3708
  %v4001 = vunpack.c.h.b16 %v3708
  %v4002 = vunpack.c.l.b16 %v3709
  %v4003 = vunpack.c.h.b16 %v3709
  %v4004 = vunpack.c.l.b16 %v3710
  %v4005 = vunpack.c.h.b16 %v3710
  %v4006 = vunpack.c.l.b16 %v3711
  %v4007 = vunpack.c.h.b16 %v3711
  %v4008 = vunpack.c.l.b16 %v3712
  %v4009 = vunpack.c.h.b16 %v3712
  %v4010 = vunpack.c.l.b16 %v3713
  %v4011 = vunpack.c.h.b16 %v3713
  %v4012 = vunpack.c.l.b16 %v3714
  %v4013 = vunpack.c.h.b16 %v3714
  %v4014 = vunpack.c.l.b16 %v3715
  %v4015 = vunpack.c.h.b16 %v3715
  %v4016 = vunpack.c.l.b16 %v3716
  %v4017 = vunpack.c.h.b16 %v3716
  %v4018 = vunpack.c.l.b16 %v3717
  %v4019 = vunpack.c.h.b16 %v3717
  %v4020 = vunpack.c.l.b16 %v3718
  %v4021 = vunpack.c.h.b16 %v3718
  %v4022 = vunpack.c.l.b16 %v3719
  %v4023 = vunpack.c.h.b16 %v3719
  %v4024 = vunpack.c.l.b16 %v3720
  %v4025 = vunpack.c.h.b16 %v3720
  %v4026 = vunpack.c.l.b16 %v3721
  %v4027 = vunpack.c.h.b16 %v3721
  %v4028 = vunpack.c.l.b16 %v3722
  %v4029 = vunpack.c.h.b16 %v3722
  %v4030 = vunpack.c.l.b16 %v3723
  %v4031 = vunpack.c.h.b16 %v3723
  %v4032 = vunpack.c.l.b16 %v3724
  %v4033 = vunpack.c.h.b16 %v3724
  %v4034 = vunpack.c.l.b16 %v3725
  %v4035 = vunpack.c.h.b16 %v3725
  %v4036 = vunpack.c.l.b16 %v3726
  %v4037 = vunpack.c.h.b16 %v3726
  %v4038 = vunpack.c.l.b16 %v3727
  %v4039 = vunpack.c.h.b16 %v3727
  %v4040 = vunpack.c.l.b16 %v3728
  %v4041 = vunpack.c.h.b16 %v3728
  %v4042 = vunpack.c.l.b16 %v3729
  %v4043 = vunpack.c.h.b16 %v3729
  %v4044 = vunpack.c.l.b16 %v3730
  %v4045 = vunpack.c.h.b16 %v3730
  %v4046 = vunpack.c.l.b16 %v3731
  %v4047 = vunpack.c.h.b16 %v3731
  %v4048 = vunpack.c.l.b16 %v3732
  %v4049 = vunpack.c.h.b16 %v3732
  %v4050 = vunpack.c.l.b16 %v3733
  %v4051 = vunpack.c.h.b16 %v3733
  %v4052 = vunpack.c.l.b16 %v3734
  %v4053 = vunpack.c.h.b16 %v3734
  %v4054 = vunpack.c.l.b16 %v3735
  %v4055 = vunpack.c.h.b16 %v3735
  %v4056 = vunpack.c.l.b16 %v3736
  %v4057 = vunpack.c.h.b16 %v3736
  %v4058 = vunpack.c.l.b16 %v3737
  %v4059 = vunpack.c.h.b16 %v3737
  %v4060 = vunpack.c.l.b16 %v3738
  %v4061 = vunpack.c.h.b16 %v3738
  %v4062 = vunpack.c.l.b16 %v3739
  %v4063 = vunpack.c.h.b16 %v3739
  %v4064 = vunpack.c.l.b16 %v3740
  %v4065 = vunpack.c.h.b16 %v3740
  %v4066 = vunpack.c.l.b16 %v3741
  %v4067 = vunpack.c.h.b16 %v3741
  %v4068 = vunpack.c.l.b16 %v3742
  %v4069 = vunpack.c.h.b16 %v3742
  %v4070 = vunpack.c.l.b16 %v3743
  %v4071 = vunpack.c.h.b16 %v3743
  %v4072 = vunpack.c.l.b16 %v3744
  %v4073 = vunpack.c.h.b16 %v3744
  %v4074 = vunpack.c.l.b16 %v3745
  %v4075 = vunpack.c.h.b16 %v3745
  %v4076 = vunpack.c.l.b16 %v3746
  %v4077 = vunpack.c.h.b16 %v3746
  %v4078 = vunpack.c.l.b16 %v3747
  %v4079 = vunpack.c.h.b16 %v3747
  %v4080 = vunpack.c.l.b16 %v3748
  %v4081 = vunpack.c.h.b16 %v3748
  %v4082 = vunpack.c.l.b16 %v3749
  %v4083 = vunpack.c.h.b16 %v3749
  %v4084 = vunpack.c.l.b16 %v3750
  %v4085 = vunpack.c.h.b16 %v3750
  %v4086 = vunpack.c.l.b16 %v3751
  %v4087 = vunpack.c.h.b16 %v3751
  %v4088 = vunpack.c.l.b16 %v3752
  %v4089 = vunpack.c.h.b16 %v3752
  %v4090 = vunpack.c.l.b16 %v3753
  %v4091 = vunpack.c.h.b16 %v3753
  %v4092 = vunpack.c.l.b16 %v3754
  %v4093 = vunpack.c.h.b16 %v3754
  %v4094 = vunpack.c.l.b16 %v3755
  %v4095 = vunpack.c.h.b16 %v3755
  %v4096 = vunpack.c.l.b16 %v3756
  %v4097 = vunpack.c.h.b16 %v3756
  %v4098 = vunpack.c.l.b16 %v3757
  %v4099 = vunpack.c.h.b16 %v3757
  %v4100 = vunpack.c.l.b16 %v3758
  %v4101 = vunpack.c.h.b16 %v3758
  %v4102 = vunpack.c.l.b16 %v3759
  %v4103 = vunpack.c.h.b16 %v3759
  %v4104 = vunpack.c.l.b16 %v3760
  %v4105 = vunpack.c.h.b16 %v3760
  %v4106 = vunpack.c.l.b16 %v3761
  %v4107 = vunpack.c.h.b16 %v3761
  %v4108 = vunpack.c.l.b16 %v3762
  %v4109 = vunpack.c.h.b16 %v3762
  %v4110 = vunpack.c.l.b16 %v3763
  %v4111 = vunpack.c.h.b16 %v3763
  %v4112 = vunpack.c.l.b16 %v3764
  %v4113 = vunpack.c.h.b16 %v3764
  %v4114 = vunpack.c.l.b16 %v3765
  %v4115 = vunpack.c.h.b16 %v3765
  %v4116 = vunpack.c.l.b16 %v3766
  %v4117 = vunpack.c.h.b16 %v3766
  %v4118 = vunpack.c.l.b16 %v3767
  %v4119 = vunpack.c.h.b16 %v3767
  %v4120 = vunpack.c.l.b16 %v3768
  %v4121 = vunpack.c.h.b16 %v3768
  %v4122 = vunpack.c.l.b16 %v3769
  %v4123 = vunpack.c.h.b16 %v3769
  %v4124 = vunpack.c.l.b16 %v3770
  %v4125 = vunpack.c.h.b16 %v3770
  %v4126 = vunpack.c.l.b16 %v3771
  %v4127 = vunpack.c.h.b16 %v3771
  %v4128 = vunpack.c.l.b16 %v3772
  %v4129 = vunpack.c.h.b16 %v3772
  %v4130 = vunpack.c.l.b16 %v3773
  %v4131 = vunpack.c.h.b16 %v3773
  %v4132 = vunpack.c.l.b16 %v3774
  %v4133 = vunpack.c.h.b16 %v3774
  %v4134 = vunpack.c.l.b16 %v3775
  %v4135 = vunpack.c.h.b16 %v3775
  %v4136 = vunpack.c.l.b16 %v3776
  %v4137 = vunpack.c.h.b16 %v3776
  %v4138 = vunpack.c.l.b16 %v3777
  %v4139 = vunpack.c.h.b16 %v3777
  %v4140 = vunpack.c.l.b16 %v3778
  %v4141 = vunpack.c.h.b16 %v3778
  %v4142 = vunpack.c.l.b16 %v3779
  %v4143 = vunpack.c.h.b16 %v3779
  %v4144 = vunpack.c.l.b16 %v3780
  %v4145 = vunpack.c.h.b16 %v3780
  %v4146 = vunpack.c.l.b16 %v3781
  %v4147 = vunpack.c.h.b16 %v3781
  %v4148 = vunpack.c.l.b16 %v3782
  %v4149 = vunpack.c.h.b16 %v3782
  %v4150 = vunpack.c.l.b16 %v3783
  %v4151 = vunpack.c.h.b16 %v3783
  %v4152 = vunpack.c.l.b16 %v3784
  %v4153 = vunpack.c.h.b16 %v3784
  %v4154 = vunpack.c.l.b16 %v3785
  %v4155 = vunpack.c.h.b16 %v3785
  %v4156 = vunpack.c.l.b16 %v3786
  %v4157 = vunpack.c.h.b16 %v3786
  %v4158 = vunpack.c.l.b16 %v3787
  %v4159 = vunpack.c.h.b16 %v3787
  %v4160 = vunpack.c.l.b16 %v3788
  %v4161 = vunpack.c.h.b16 %v3788
  %v4162 = vunpack.c.l.b16 %v3789
  %v4163 = vunpack.c.h.b16 %v3789
  %v4164 = vunpack.c.l.b16 %v3790
  %v4165 = vunpack.c.h.b16 %v3790
  %v4166 = vunpack.c.l.b16 %v3791
  %v4167 = vunpack.c.h.b16 %v3791
  %v4168 = vunpack.c.l.b16 %v3792
  %v4169 = vunpack.c.h.b16 %v3792
  %v4170 = vunpack.c.l.b16 %v3793
  %v4171 = vunpack.c.h.b16 %v3793
  %v4172 = vunpack.c.l.b16 %v3794
  %v4173 = vunpack.c.h.b16 %v3794
  %v4174 = vunpack.c.l.b16 %v3795
  %v4175 = vunpack.c.h.b16 %v3795
  %v4176 = vunpack.c.l.b16 %v3796
  %v4177 = vunpack.c.h.b16 %v3796
  %v4178 = vunpack.c.l.b16 %v3797
  %v4179 = vunpack.c.h.b16 %v3797
  %v4180 = vunpack.c.l.b16 %v3798
  %v4181 = vunpack.c.h.b16 %v3798
  %v4182 = vunpack.c.l.b16 %v3799
  %v4183 = vunpack.c.h.b16 %v3799
  %v4184 = vunpack.c.l.b16 %v3800
  %v4185 = vunpack.c.h.b16 %v3800
  %v4186 = vunpack.c.l.b16 %v3801
  %v4187 = vunpack.c.h.b16 %v3801
  %v4188 = vunpack.c.l.b16 %v3802
  %v4189 = vunpack.c.h.b16 %v3802
  %v4190 = vunpack.c.l.b16 %v3803
  %v4191 = vunpack.c.h.b16 %v3803
  %v4192 = vunpack.c.l.b16 %v3804
  %v4193 = vunpack.c.h.b16 %v3804
  %v4194 = vunpack.c.l.b16 %v3805
  %v4195 = vunpack.c.h.b16 %v3805
  %v4196 = vunpack.c.l.b16 %v3806
  %v4197 = vunpack.c.h.b16 %v3806
  %v4198 = vunpack.c.l.b16 %v3807
  %v4199 = vunpack.c.h.b16 %v3807
  %v4200 = vunpack.c.l.b16 %v3808
  %v4201 = vunpack.c.h.b16 %v3808
  %v4202 = vunpack.c.l.b16 %v3809
  %v4203 = vunpack.c.h.b16 %v3809
  %v4204 = vunpack.c.l.b16 %v3810
  %v4205 = vunpack.c.h.b16 %v3810
  %v4206 = vunpack.c.l.b16 %v3811
  %v4207 = vunpack.c.h.b16 %v3811
  %v4208 = vunpack.c.l.b16 %v3812
  %v4209 = vunpack.c.h.b16 %v3812
  %v4210 = vunpack.c.l.b16 %v3813
  %v4211 = vunpack.c.h.b16 %v3813
  %v4212 = vunpack.c.l.b16 %v3814
  %v4213 = vunpack.c.h.b16 %v3814
  %v4214 = vunpack.c.l.b16 %v3815
  %v4215 = vunpack.c.h.b16 %v3815
  %v4216 = vunpack.c.l.b16 %v3816
  %v4217 = vunpack.c.h.b16 %v3816
  %v4218 = vunpack.c.l.b16 %v3817
  %v4219 = vunpack.c.h.b16 %v3817
  %v4220 = vunpack.c.l.b16 %v3818
  %v4221 = vunpack.c.h.b16 %v3818
  %v4222 = vunpack.c.l.b16 %v3819
  %v4223 = vunpack.c.h.b16 %v3819
  %v4224 = vunpack.c.l.b16 %v3820
  %v4225 = vunpack.c.h.b16 %v3820
  %v4226 = vunpack.c.l.b16 %v3821
  %v4227 = vunpack.c.h.b16 %v3821
  %v4228 = vpack.c.b16 %v3976, %v3972
  %v4229 = vpack.c.b16 %v3977, %v3973
  %v4230 = vpack.c.b16 %v3978, %v3974
  %v4231 = vpack.c.b16 %v3979, %v3975
  %v4232 = vpack.c.b16 %v3984, %v3980
  %v4233 = vpack.c.b16 %v3985, %v3981
  %v4234 = vpack.c.b16 %v3986, %v3982
  %v4235 = vpack.c.b16 %v3987, %v3983
  %v4236 = vpack.c.b16 %v3992, %v3988
  %v4237 = vpack.c.b16 %v3993, %v3989
  %v4238 = vpack.c.b16 %v3994, %v3990
  %v4239 = vpack.c.b16 %v3995, %v3991
  %v4240 = vpack.c.b16 %v4000, %v3996
  %v4241 = vpack.c.b16 %v4001, %v3997
  %v4242 = vpack.c.b16 %v4002, %v3998
  %v4243 = vpack.c.b16 %v4003, %v3999
  %v4244 = vpack.c.b16 %v4008, %v4004
  %v4245 = vpack.c.b16 %v4009, %v4005
  %v4246 = vpack.c.b16 %v4010, %v4006
  %v4247 = vpack.c.b16 %v4011, %v4007
  %v4248 = vpack.c.b16 %v4016, %v4012
  %v4249 = vpack.c.b16 %v4017, %v4013
  %v4250 = vpack.c.b16 %v4018, %v4014
  %v4251 = vpack.c.b16 %v4019, %v4015
  %v4252 = vpack.c.b16 %v4024, %v4020
  %v4253 = vpack.c.b16 %v4025, %v4021
  %v4254 = vpack.c.b16 %v4026, %v4022
  %v4255 = vpack.c.b16 %v4027, %v4023
  %v4256 = vpack.c.b16 %v4032, %v4028
  %v4257 = vpack.c.b16 %v4033, %v4029
  %v4258 = vpack.c.b16 %v4034, %v4030
  %v4259 = vpack.c.b16 %v4035, %v4031
  %v4260 = vpack.c.b16 %v4040, %v4036
  %v4261 = vpack.c.b16 %v4041, %v4037
  %v4262 = vpack.c.b16 %v4042, %v4038
  %v4263 = vpack.c.b16 %v4043, %v4039
  %v4264 = vpack.c.b16 %v4048, %v4044
  %v4265 = vpack.c.b16 %v4049, %v4045
  %v4266 = vpack.c.b16 %v4050, %v4046
  %v4267 = vpack.c.b16 %v4051, %v4047
  %v4268 = vpack.c.b16 %v4056, %v4052
  %v4269 = vpack.c.b16 %v4057, %v4053
  %v4270 = vpack.c.b16 %v4058, %v4054
  %v4271 = vpack.c.b16 %v4059, %v4055
  %v4272 = vpack.c.b16 %v4064, %v4060
  %v4273 = vpack.c.b16 %v4065, %v4061
  %v4274 = vpack.c.b16 %v4066, %v4062
  %v4275 = vpack.c.b16 %v4067, %v4063
  %v4276 = vpack.c.b16 %v4072, %v4068
  %v4277 = vpack.c.b16 %v4073, %v4069
  %v4278 = vpack.c.b16 %v4074, %v4070
  %v4279 = vpack.c.b16 %v4075, %v4071
  %v4280 = vpack.c.b16 %v4080, %v4076
  %v4281 = vpack.c.b16 %v4081, %v4077
  %v4282 = vpack.c.b16 %v4082, %v4078
  %v4283 = vpack.c.b16 %v4083, %v4079
  %v4284 = vpack.c.b16 %v4088, %v4084
  %v4285 = vpack.c.b16 %v4089, %v4085
  %v4286 = vpack.c.b16 %v4090, %v4086
  %v4287 = vpack.c.b16 %v4091, %v4087
  %v4288 = vpack.c.b16 %v4096, %v4092
  %v4289 = vpack.c.b16 %v4097, %v4093
  %v4290 = vpack.c.b16 %v4098, %v4094
  %v4291 = vpack.c.b16 %v4099, %v4095
  %v4292 = vpack.c.b16 %v4104, %v4100
  %v4293 = vpack.c.b16 %v4105, %v4101
  %v4294 = vpack.c.b16 %v4106, %v4102
  %v4295 = vpack.c.b16 %v4107, %v4103
  %v4296 = vpack.c.b16 %v4112, %v4108
  %v4297 = vpack.c.b16 %v4113, %v4109
  %v4298 = vpack.c.b16 %v4114, %v4110
  %v4299 = vpack.c.b16 %v4115, %v4111
  %v4300 = vpack.c.b16 %v4120, %v4116
  %v4301 = vpack.c.b16 %v4121, %v4117
  %v4302 = vpack.c.b16 %v4122, %v4118
  %v4303 = vpack.c.b16 %v4123, %v4119
  %v4304 = vpack.c.b16 %v4128, %v4124
  %v4305 = vpack.c.b16 %v4129, %v4125
  %v4306 = vpack.c.b16 %v4130, %v4126
  %v4307 = vpack.c.b16 %v4131, %v4127
  %v4308 = vpack.c.b16 %v4136, %v4132
  %v4309 = vpack.c.b16 %v4137, %v4133
  %v4310 = vpack.c.b16 %v4138, %v4134
  %v4311 = vpack.c.b16 %v4139, %v4135
  %v4312 = vpack.c.b16 %v4144, %v4140
  %v4313 = vpack.c.b16 %v4145, %v4141
  %v4314 = vpack.c.b16 %v4146, %v4142
  %v4315 = vpack.c.b16 %v4147, %v4143
  %v4316 = vpack.c.b16 %v4152, %v4148
  %v4317 = vpack.c.b16 %v4153, %v4149
  %v4318 = vpack.c.b16 %v4154, %v4150
  %v4319 = vpack.c.b16 %v4155, %v4151
  %v4320 = vpack.c.b16 %v4160, %v4156
  %v4321 = vpack.c.b16 %v4161, %v4157
  %v4322 = vpack.c.b16 %v4162, %v4158
  %v4323 = vpack.c.b16 %v4163, %v4159
  %v4324 = vpack.c.b16 %v4168, %v4164
  %v4325 = vpack.c.b16 %v4169, %v4165
  %v4326 = vpack.c.b16 %v4170, %v4166
  %v4327 = vpack.c.b16 %v4171, %v4167
  %v4328 = vpack.c.b16 %v4176, %v4172
  %v4329 = vpack.c.b16 %v4177, %v4173
  %v4330 = vpack.c.b16 %v4178, %v4174
  %v4331 = vpack.c.b16 %v4179, %v4175
  %v4332 = vpack.c.b16 %v4184, %v4180
  %v4333 = vpack.c.b16 %v4185, %v4181
  %v4334 = vpack.c.b16 %v4186, %v4182
  %v4335 = vpack.c.b16 %v4187, %v4183
  %v4336 = vpack.c.b16 %v4192, %v4188
  %v4337 = vpack.c.b16 %v4193, %v4189
  %v4338 = vpack.c.b16 %v4194, %v4190
  %v4339 = vpack.c.b16 %v4195, %v4191
  %v4340 = vpack.c.b16 %v4200, %v4196
  %v4341 = vpack.c.b16 %v4201, %v4197
  %v4342 = vpack.c.b16 %v4202, %v4198
  %v4343 = vpack.c.b16 %v4203, %v4199
  %v4344 = vpack.c.b16 %v4208, %v4204
  %v4345 = vpack.c.b16 %v4209, %v4205
  %v4346 = vpack.c.b16 %v4210, %v4206
  %v4347 = vpack.c.b16 %v4211, %v4207
  %v4348 = vpack.c.b16 %v4216, %v4212
  %v4349 = vpack.c.b16 %v4217, %v4213
  %v4350 = vpack.c.b16 %v4218, %v4214
  %v4351 = vpack.c.b16 %v4219, %v4215
  %v4352 = vpack.c.b16 %v4224, %v4220
  %v4353 = vpack.c.b16 %v4225, %v4221
  %v4354 = vpack.c.b16 %v4226, %v4222
  %v4355 = vpack.c.b16 %v4227, %v4223
  %4484 = vmatprep.subr.bf16.mxu0 %v4229
  %4485 = vmatpush1.bf16.msra.mxu0 %v4228
  %4486 = vmatprep.subr.bf16.mxu0 %v4233
  %4487 = vmatpush1.bf16.msra.mxu0 %v4232
  %4488 = vmatprep.subr.bf16.mxu0 %v4237
  %4489 = vmatpush1.bf16.msra.mxu0 %v4236
  %4490 = vmatprep.subr.bf16.mxu0 %v4241
  %4491 = vmatpush1.bf16.msra.mxu0 %v4240
  %4492 = vmatprep.subr.bf16.mxu0 %v4245
  %4493 = vmatpush1.bf16.msra.mxu0 %v4244
  %4494 = vmatprep.subr.bf16.mxu0 %v4249
  %4495 = vmatpush1.bf16.msra.mxu0 %v4248
  %4496 = vmatprep.subr.bf16.mxu0 %v4253
  %4497 = vmatpush1.bf16.msra.mxu0 %v4252
  %4498 = vmatprep.subr.bf16.mxu0 %v4257
  %4499 = vmatpush1.bf16.msra.mxu0 %v4256
  %4500 = vmatprep.subr.bf16.mxu0 %v4261
  %4501 = vmatpush1.bf16.msra.mxu0 %v4260
  %4502 = vmatprep.subr.bf16.mxu0 %v4265
  %4503 = vmatpush1.bf16.msra.mxu0 %v4264
  %4504 = vmatprep.subr.bf16.mxu0 %v4269
  %4505 = vmatpush1.bf16.msra.mxu0 %v4268
  %4506 = vmatprep.subr.bf16.mxu0 %v4273
  %4507 = vmatpush1.bf16.msra.mxu0 %v4272
  %4508 = vmatprep.subr.bf16.mxu0 %v4277
  %4509 = vmatpush1.bf16.msra.mxu0 %v4276
  %4510 = vmatprep.subr.bf16.mxu0 %v4281
  %4511 = vmatpush1.bf16.msra.mxu0 %v4280
  %4512 = vmatprep.subr.bf16.mxu0 %v4285
  %4513 = vmatpush1.bf16.msra.mxu0 %v4284
  %4514 = vmatprep.subr.bf16.mxu0 %v4289
  %4515 = vmatpush1.bf16.msra.mxu0 %v4288
  %4516 = vmatprep.mubr.bf16.mxu0 %v3619
  %4517 = vmatmul.mubr.bf16.gmra.mrb[0].mxu0 %v3618
  %v4518 = vpop.f32.mrb[0].mxu0
  %v4519 = vadd.f32 %v3827, %v4518
  %v4520 = vpop.f32.mrb[0].mxu0
  %v4521 = vadd.f32 %v3831, %v4520
  %v4522 = vpop.f32.mrb[0].mxu0
  %v4523 = vadd.f32 %v3827, %v4522
  %v4524 = vpop.f32.mrb[0].mxu0
  %v4525 = vadd.f32 %v3831, %v4524
  %4526 = vmatprep.mubr.bf16.mxu0 %v3623
  %4527 = vmatmul.mubr.bf16.gmra.mrb[0].mxu0 %v3622
  %v4528 = vpop.f32.mrb[0].mxu0
  %v4529 = vadd.f32 %v3827, %v4528
  %v4530 = vpop.f32.mrb[0].mxu0
  %v4531 = vadd.f32 %v3831, %v4530
  %v4532 = vpop.f32.mrb[0].mxu0
  %v4533 = vadd.f32 %v3827, %v4532
  %v4534 = vpop.f32.mrb[0].mxu0
  %v4535 = vadd.f32 %v3831, %v4534
  %4536 = vmatprep.mubr.bf16.mxu0 %v3627
  %4537 = vmatmul.mubr.bf16.gmra.mrb[0].mxu0 %v3626
  %v4538 = vpop.f32.mrb[0].mxu0
  %v4539 = vadd.f32 %v3827, %v4538
  %v4540 = vpop.f32.mrb[0].mxu0
  %v4541 = vadd.f32 %v3831, %v4540
  %v4542 = vpop.f32.mrb[0].mxu0
  %v4543 = vadd.f32 %v3827, %v4542
  %v4544 = vpop.f32.mrb[0].mxu0
  %v4545 = vadd.f32 %v3831, %v4544
  %4546 = vmatprep.mubr.bf16.mxu0 %v3631
  %4547 = vmatmul.mubr.bf16.gmra.mrb[0].mxu0 %v3630
  %v4548 = vpop.f32.mrb[0].mxu0
  %v4549 = vadd.f32 %v3827, %v4548
  %v4550 = vpop.f32.mrb[0].mxu0
  %v4551 = vadd.f32 %v3831, %v4550
  %v4552 = vpop.f32.mrb[0].mxu0
  %v4553 = vadd.f32 %v3827, %v4552
  %v4554 = vpop.f32.mrb[0].mxu0
  %v4555 = vadd.f32 %v3831, %v4554
  %4556 = vmatprep.mubr.bf16.mxu0 %v3635
  %4557 = vmatmul.mubr.bf16.gmra.mrb[0].mxu0 %v3634
  %v4558 = vpop.f32.mrb[0].mxu0
  %v4559 = vadd.f32 %v3827, %v4558
  %v4560 = vpop.f32.mrb[0].mxu0
  %v4561 = vadd.f32 %v3831, %v4560
  %v4562 = vpop.f32.mrb[0].mxu0
  %v4563 = vadd.f32 %v3827, %v4562
  %v4564 = vpop.f32.mrb[0].mxu0
  %v4565 = vadd.f32 %v3831, %v4564
  %4566 = vmatprep.mubr.bf16.mxu0 %v3639
  %4567 = vmatmul.mubr.bf16.gmra.mrb[0].mxu0 %v3638
  %v4568 = vpop.f32.mrb[0].mxu0
  %v4569 = vadd.f32 %v3827, %v4568
  %v4570 = vpop.f32.mrb[0].mxu0
  %v4571 = vadd.f32 %v3831, %v4570
  %v4572 = vpop.f32.mrb[0].mxu0
  %v4573 = vadd.f32 %v3827, %v4572
  %v4574 = vpop.f32.mrb[0].mxu0
  %v4575 = vadd.f32 %v3831, %v4574
  %4576 = vmatprep.mubr.bf16.mxu0 %v3643
  %4577 = vmatmul.mubr.bf16.gmra.mrb[0].mxu0 %v3642
  %v4578 = vpop.f32.mrb[0].mxu0
  %v4579 = vadd.f32 %v3827, %v4578
  %v4580 = vpop.f32.mrb[0].mxu0
  %v4581 = vadd.f32 %v3831, %v4580
  %v4582 = vpop.f32.mrb[0].mxu0
  %v4583 = vadd.f32 %v3827, %v4582
  %v4584 = vpop.f32.mrb[0].mxu0
  %v4585 = vadd.f32 %v3831, %v4584
  %4586 = vmatprep.mubr.bf16.mxu0 %v3647
  %4587 = vmatmul.mubr.bf16.gmra.mrb[0].mxu0 %v3646
  %v4588 = vpop.f32.mrb[0].mxu0
  %v4589 = vadd.f32 %v3827, %v4588
  %v4590 = vpop.f32.mrb[0].mxu0
  %v4591 = vadd.f32 %v3831, %v4590
  %v4592 = vpop.f32.mrb[0].mxu0
  %v4593 = vadd.f32 %v3827, %v4592
  %v4594 = vpop.f32.mrb[0].mxu0
  %v4595 = vadd.f32 %v3831, %v4594
  %4596 = vmatprep.mubr.bf16.mxu0 %v3651
  %4597 = vmatmul.mubr.bf16.gmra.mrb[0].mxu0 %v3650
  %v4598 = vpop.f32.mrb[0].mxu0
  %v4599 = vadd.f32 %v3827, %v4598
  %v4600 = vpop.f32.mrb[0].mxu0
  %v4601 = vadd.f32 %v3831, %v4600
  %v4602 = vpop.f32.mrb[0].mxu0
  %v4603 = vadd.f32 %v3827, %v4602
  %v4604 = vpop.f32.mrb[0].mxu0
  %v4605 = vadd.f32 %v3831, %v4604
  %4606 = vmatprep.mubr.bf16.mxu0 %v3655
  %4607 = vmatmul.mubr.bf16.gmra.mrb[0].mxu0 %v3654
  %v4608 = vpop.f32.mrb[0].mxu0
  %v4609 = vadd.f32 %v3827, %v4608
  %v4610 = vpop.f32.mrb[0].mxu0
  %v4611 = vadd.f32 %v3831, %v4610
  %v4612 = vpop.f32.mrb[0].mxu0
  %v4613 = vadd.f32 %v3827, %v4612
  %v4614 = vpop.f32.mrb[0].mxu0
  %v4615 = vadd.f32 %v3831, %v4614
  %4616 = vmatprep.mubr.bf16.mxu0 %v3659
  %4617 = vmatmul.mubr.bf16.gmra.mrb[0].mxu0 %v3658
  %v4618 = vpop.f32.mrb[0].mxu0
  %v4619 = vadd.f32 %v3827, %v4618
  %v4620 = vpop.f32.mrb[0].mxu0
  %v4621 = vadd.f32 %v3831, %v4620
  %v4622 = vpop.f32.mrb[0].mxu0
  %v4623 = vadd.f32 %v3827, %v4622
  %v4624 = vpop.f32.mrb[0].mxu0
  %v4625 = vadd.f32 %v3831, %v4624
  %4626 = vmatprep.mubr.bf16.mxu0 %v3663
  %4627 = vmatmul.mubr.bf16.gmra.mrb[0].mxu0 %v3662
  %v4628 = vpop.f32.mrb[0].mxu0
  %v4629 = vadd.f32 %v3827, %v4628
  %v4630 = vpop.f32.mrb[0].mxu0
  %v4631 = vadd.f32 %v3831, %v4630
  %v4632 = vpop.f32.mrb[0].mxu0
  %v4633 = vadd.f32 %v3827, %v4632
  %v4634 = vpop.f32.mrb[0].mxu0
  %v4635 = vadd.f32 %v3831, %v4634
  %4636 = vmatprep.mubr.bf16.mxu0 %v3667
  %4637 = vmatmul.mubr.bf16.gmra.mrb[0].mxu0 %v3666
  %v4638 = vpop.f32.mrb[0].mxu0
  %v4639 = vadd.f32 %v3827, %v4638
  %v4640 = vpop.f32.mrb[0].mxu0
  %v4641 = vadd.f32 %v3831, %v4640
  %v4642 = vpop.f32.mrb[0].mxu0
  %v4643 = vadd.f32 %v3827, %v4642
  %v4644 = vpop.f32.mrb[0].mxu0
  %v4645 = vadd.f32 %v3831, %v4644
  %4646 = vmatprep.mubr.bf16.mxu0 %v3671
  %4647 = vmatmul.mubr.bf16.gmra.mrb[0].mxu0 %v3670
  %v4648 = vpop.f32.mrb[0].mxu0
  %v4649 = vadd.f32 %v3827, %v4648
  %v4650 = vpop.f32.mrb[0].mxu0
  %v4651 = vadd.f32 %v3831, %v4650
  %v4652 = vpop.f32.mrb[0].mxu0
  %v4653 = vadd.f32 %v3827, %v4652
  %v4654 = vpop.f32.mrb[0].mxu0
  %v4655 = vadd.f32 %v3831, %v4654
  %4656 = vmatprep.mubr.bf16.mxu0 %v3675
  %4657 = vmatmul.mubr.bf16.gmra.mrb[0].mxu0 %v3674
  %v4658 = vpop.f32.mrb[0].mxu0
  %v4659 = vadd.f32 %v3827, %v4658
  %v4660 = vpop.f32.mrb[0].mxu0
  %v4661 = vadd.f32 %v3831, %v4660
  %v4662 = vpop.f32.mrb[0].mxu0
  %v4663 = vadd.f32 %v3827, %v4662
  %v4664 = vpop.f32.mrb[0].mxu0
  %v4665 = vadd.f32 %v3831, %v4664
  %4666 = vmatprep.mubr.bf16.mxu0 %v3679
  %4667 = vmatmul.mubr.bf16.gmra.mrb[0].mxu0 %v3678
  %v4668 = vpop.f32.mrb[0].mxu0
  %v4669 = vadd.f32 %v3827, %v4668
  %v4670 = vpop.f32.mrb[0].mxu0
  %v4671 = vadd.f32 %v3831, %v4670
  %v4672 = vpop.f32.mrb[0].mxu0
  %v4673 = vadd.f32 %v3827, %v4672
  %v4674 = vpop.f32.mrb[0].mxu0
  %v4675 = vadd.f32 %v3831, %v4674
  %4676 = vmatprep.mubr.bf16.mxu0 %v3683
  %4677 = vmatmul.mubr.bf16.gmra.mrb[0].mxu0 %v3682
  %v4678 = vpop.f32.mrb[0].mxu0
  %v4679 = vadd.f32 %v3827, %v4678
  %v4680 = vpop.f32.mrb[0].mxu0
  %v4681 = vadd.f32 %v3831, %v4680
  %v4682 = vpop.f32.mrb[0].mxu0
  %v4683 = vadd.f32 %v3827, %v4682
  %v4684 = vpop.f32.mrb[0].mxu0
  %v4685 = vadd.f32 %v3831, %v4684
  %4686 = vmatprep.mubr.bf16.mxu0 %v3687
  %4687 = vmatmul.mubr.bf16.gmra.mrb[0].mxu0 %v3686
  %v4688 = vpop.f32.mrb[0].mxu0
  %v4689 = vadd.f32 %v3827, %v4688
  %v4690 = vpop.f32.mrb[0].mxu0
  %v4691 = vadd.f32 %v3831, %v4690
  %v4692 = vpop.f32.mrb[0].mxu0
  %v4693 = vadd.f32 %v3827, %v4692
  %v4694 = vpop.f32.mrb[0].mxu0
  %v4695 = vadd.f32 %v3831, %v4694
  %4696 = vmatprep.mubr.bf16.mxu0 %v3691
  %4697 = vmatmul.mubr.bf16.gmra.mrb[0].mxu0 %v3690
  %v4698 = vpop.f32.mrb[0].mxu0
  %v4699 = vadd.f32 %v3827, %v4698
  %v4700 = vpop.f32.mrb[0].mxu0
  %v4701 = vadd.f32 %v3831, %v4700
  %v4702 = vpop.f32.mrb[0].mxu0
  %v4703 = vadd.f32 %v3827, %v4702
  %v4704 = vpop.f32.mrb[0].mxu0
  %v4705 = vadd.f32 %v3831, %v4704
  %4706 = vdwg.mxu0
  %4707 = vmatprep.subr.bf16.mxu0 %v4293
  %4708 = vmatpush1.bf16.msra.mxu0 %v4292
  %4709 = vmatprep.subr.bf16.mxu0 %v4297
  %4710 = vmatpush1.bf16.msra.mxu0 %v4296
  %4711 = vmatprep.subr.bf16.mxu0 %v4301
  %4712 = vmatpush1.bf16.msra.mxu0 %v4300
  %4713 = vmatprep.subr.bf16.mxu0 %v4305
  %4714 = vmatpush1.bf16.msra.mxu0 %v4304
  %4715 = vmatprep.subr.bf16.mxu0 %v4309
  %4716 = vmatpush1.bf16.msra.mxu0 %v4308
  %4717 = vmatprep.subr.bf16.mxu0 %v4313
  %4718 = vmatpush1.bf16.msra.mxu0 %v4312
  %4719 = vmatprep.subr.bf16.mxu0 %v4317
  %4720 = vmatpush1.bf16.msra.mxu0 %v4316
  %4721 = vmatprep.subr.bf16.mxu0 %v4321
  %4722 = vmatpush1.bf16.msra.mxu0 %v4320
  %4723 = vmatprep.subr.bf16.mxu0 %v4325
  %4724 = vmatpush1.bf16.msra.mxu0 %v4324
  %4725 = vmatprep.subr.bf16.mxu0 %v4329
  %4726 = vmatpush1.bf16.msra.mxu0 %v4328
  %4727 = vmatprep.subr.bf16.mxu0 %v4333
  %4728 = vmatpush1.bf16.msra.mxu0 %v4332
  %4729 = vmatprep.subr.bf16.mxu0 %v4337
  %4730 = vmatpush1.bf16.msra.mxu0 %v4336
  %4731 = vmatprep.subr.bf16.mxu0 %v4341
  %4732 = vmatpush1.bf16.msra.mxu0 %v4340
  %4733 = vmatprep.subr.bf16.mxu0 %v4345
  %4734 = vmatpush1.bf16.msra.mxu0 %v4344
  %4735 = vmatprep.subr.bf16.mxu0 %v4349
  %4736 = vmatpush1.bf16.msra.mxu0 %v4348
  %4737 = vmatprep.subr.bf16.mxu0 %v4353
  %4738 = vmatpush1.bf16.msra.mxu0 %v4352
  %4739 = vmatprep.mubr.bf16.mxu0 %v3621
  %4740 = vmatmul.mubr.bf16.gmra.mrb[0].mxu0 %v3620
  %v4741 = vpop.f32.mrb[0].mxu0
  %v4742 = vadd.f32 %v4519, %v4741
  %v4743 = vpop.f32.mrb[0].mxu0
  %v4744 = vadd.f32 %v4521, %v4743
  %v4745 = vpop.f32.mrb[0].mxu0
  %v4746 = vadd.f32 %v4523, %v4745
  %v4747 = vpop.f32.mrb[0].mxu0
  %v4748 = vadd.f32 %v4525, %v4747
  %4749 = vmatprep.mubr.bf16.mxu0 %v3625
  %4750 = vmatmul.mubr.bf16.gmra.mrb[0].mxu0 %v3624
  %v4751 = vpop.f32.mrb[0].mxu0
  %v4752 = vadd.f32 %v4529, %v4751
  %v4753 = vpop.f32.mrb[0].mxu0
  %v4754 = vadd.f32 %v4531, %v4753
  %v4755 = vpop.f32.mrb[0].mxu0
  %v4756 = vadd.f32 %v4533, %v4755
  %v4757 = vpop.f32.mrb[0].mxu0
  %v4758 = vadd.f32 %v4535, %v4757
  %4759 = vmatprep.mubr.bf16.mxu0 %v3629
  %4760 = vmatmul.mubr.bf16.gmra.mrb[0].mxu0 %v3628
  %v4761 = vpop.f32.mrb[0].mxu0
  %v4762 = vadd.f32 %v4539, %v4761
  %v4763 = vpop.f32.mrb[0].mxu0
  %v4764 = vadd.f32 %v4541, %v4763
  %v4765 = vpop.f32.mrb[0].mxu0
  %v4766 = vadd.f32 %v4543, %v4765
  %v4767 = vpop.f32.mrb[0].mxu0
  %v4768 = vadd.f32 %v4545, %v4767
  %4769 = vmatprep.mubr.bf16.mxu0 %v3633
  %4770 = vmatmul.mubr.bf16.gmra.mrb[0].mxu0 %v3632
  %v4771 = vpop.f32.mrb[0].mxu0
  %v4772 = vadd.f32 %v4549, %v4771
  %v4773 = vpop.f32.mrb[0].mxu0
  %v4774 = vadd.f32 %v4551, %v4773
  %v4775 = vpop.f32.mrb[0].mxu0
  %v4776 = vadd.f32 %v4553, %v4775
  %v4777 = vpop.f32.mrb[0].mxu0
  %v4778 = vadd.f32 %v4555, %v4777
  %4779 = vmatprep.mubr.bf16.mxu0 %v3637
  %4780 = vmatmul.mubr.bf16.gmra.mrb[0].mxu0 %v3636
  %v4781 = vpop.f32.mrb[0].mxu0
  %v4782 = vadd.f32 %v4559, %v4781
  %v4783 = vpop.f32.mrb[0].mxu0
  %v4784 = vadd.f32 %v4561, %v4783
  %v4785 = vpop.f32.mrb[0].mxu0
  %v4786 = vadd.f32 %v4563, %v4785
  %v4787 = vpop.f32.mrb[0].mxu0
  %v4788 = vadd.f32 %v4565, %v4787
  %4789 = vmatprep.mubr.bf16.mxu0 %v3641
  %4790 = vmatmul.mubr.bf16.gmra.mrb[0].mxu0 %v3640
  %v4791 = vpop.f32.mrb[0].mxu0
  %v4792 = vadd.f32 %v4569, %v4791
  %v4793 = vpop.f32.mrb[0].mxu0
  %v4794 = vadd.f32 %v4571, %v4793
  %v4795 = vpop.f32.mrb[0].mxu0
  %v4796 = vadd.f32 %v4573, %v4795
  %v4797 = vpop.f32.mrb[0].mxu0
  %v4798 = vadd.f32 %v4575, %v4797
  %4799 = vmatprep.mubr.bf16.mxu0 %v3645
  %4800 = vmatmul.mubr.bf16.gmra.mrb[0].mxu0 %v3644
  %v4801 = vpop.f32.mrb[0].mxu0
  %v4802 = vadd.f32 %v4579, %v4801
  %v4803 = vpop.f32.mrb[0].mxu0
  %v4804 = vadd.f32 %v4581, %v4803
  %v4805 = vpop.f32.mrb[0].mxu0
  %v4806 = vadd.f32 %v4583, %v4805
  %v4807 = vpop.f32.mrb[0].mxu0
  %v4808 = vadd.f32 %v4585, %v4807
  %4809 = vmatprep.mubr.bf16.mxu0 %v3649
  %4810 = vmatmul.mubr.bf16.gmra.mrb[0].mxu0 %v3648
  %v4811 = vpop.f32.mrb[0].mxu0
  %v4812 = vadd.f32 %v4589, %v4811
  %v4813 = vpop.f32.mrb[0].mxu0
  %v4814 = vadd.f32 %v4591, %v4813
  %v4815 = vpop.f32.mrb[0].mxu0
  %v4816 = vadd.f32 %v4593, %v4815
  %v4817 = vpop.f32.mrb[0].mxu0
  %v4818 = vadd.f32 %v4595, %v4817
  %4819 = vmatprep.mubr.bf16.mxu0 %v3653
  %4820 = vmatmul.mubr.bf16.gmra.mrb[0].mxu0 %v3652
  %v4821 = vpop.f32.mrb[0].mxu0
  %v4822 = vadd.f32 %v4599, %v4821
  %v4823 = vpop.f32.mrb[0].mxu0
  %v4824 = vadd.f32 %v4601, %v4823
  %v4825 = vpop.f32.mrb[0].mxu0
  %v4826 = vadd.f32 %v4603, %v4825
  %v4827 = vpop.f32.mrb[0].mxu0
  %v4828 = vadd.f32 %v4605, %v4827
  %4829 = vmatprep.mubr.bf16.mxu0 %v3657
  %4830 = vmatmul.mubr.bf16.gmra.mrb[0].mxu0 %v3656
  %v4831 = vpop.f32.mrb[0].mxu0
  %v4832 = vadd.f32 %v4609, %v4831
  %v4833 = vpop.f32.mrb[0].mxu0
  %v4834 = vadd.f32 %v4611, %v4833
  %v4835 = vpop.f32.mrb[0].mxu0
  %v4836 = vadd.f32 %v4613, %v4835
  %v4837 = vpop.f32.mrb[0].mxu0
  %v4838 = vadd.f32 %v4615, %v4837
  %4839 = vmatprep.mubr.bf16.mxu0 %v3661
  %4840 = vmatmul.mubr.bf16.gmra.mrb[0].mxu0 %v3660
  %v4841 = vpop.f32.mrb[0].mxu0
  %v4842 = vadd.f32 %v4619, %v4841
  %v4843 = vpop.f32.mrb[0].mxu0
  %v4844 = vadd.f32 %v4621, %v4843
  %v4845 = vpop.f32.mrb[0].mxu0
  %v4846 = vadd.f32 %v4623, %v4845
  %v4847 = vpop.f32.mrb[0].mxu0
  %v4848 = vadd.f32 %v4625, %v4847
  %4849 = vmatprep.mubr.bf16.mxu0 %v3665
  %4850 = vmatmul.mubr.bf16.gmra.mrb[0].mxu0 %v3664
  %v4851 = vpop.f32.mrb[0].mxu0
  %v4852 = vadd.f32 %v4629, %v4851
  %v4853 = vpop.f32.mrb[0].mxu0
  %v4854 = vadd.f32 %v4631, %v4853
  %v4855 = vpop.f32.mrb[0].mxu0
  %v4856 = vadd.f32 %v4633, %v4855
  %v4857 = vpop.f32.mrb[0].mxu0
  %v4858 = vadd.f32 %v4635, %v4857
  %4859 = vmatprep.mubr.bf16.mxu0 %v3669
  %4860 = vmatmul.mubr.bf16.gmra.mrb[0].mxu0 %v3668
  %v4861 = vpop.f32.mrb[0].mxu0
  %v4862 = vadd.f32 %v4639, %v4861
  %v4863 = vpop.f32.mrb[0].mxu0
  %v4864 = vadd.f32 %v4641, %v4863
  %v4865 = vpop.f32.mrb[0].mxu0
  %v4866 = vadd.f32 %v4643, %v4865
  %v4867 = vpop.f32.mrb[0].mxu0
  %v4868 = vadd.f32 %v4645, %v4867
  %4869 = vmatprep.mubr.bf16.mxu0 %v3673
  %4870 = vmatmul.mubr.bf16.gmra.mrb[0].mxu0 %v3672
  %v4871 = vpop.f32.mrb[0].mxu0
  %v4872 = vadd.f32 %v4649, %v4871
  %v4873 = vpop.f32.mrb[0].mxu0
  %v4874 = vadd.f32 %v4651, %v4873
  %v4875 = vpop.f32.mrb[0].mxu0
  %v4876 = vadd.f32 %v4653, %v4875
  %v4877 = vpop.f32.mrb[0].mxu0
  %v4878 = vadd.f32 %v4655, %v4877
  %4879 = vmatprep.mubr.bf16.mxu0 %v3677
  %4880 = vmatmul.mubr.bf16.gmra.mrb[0].mxu0 %v3676
  %v4881 = vpop.f32.mrb[0].mxu0
  %v4882 = vadd.f32 %v4659, %v4881
  %v4883 = vpop.f32.mrb[0].mxu0
  %v4884 = vadd.f32 %v4661, %v4883
  %v4885 = vpop.f32.mrb[0].mxu0
  %v4886 = vadd.f32 %v4663, %v4885
  %v4887 = vpop.f32.mrb[0].mxu0
  %v4888 = vadd.f32 %v4665, %v4887
  %4889 = vmatprep.mubr.bf16.mxu0 %v3681
  %4890 = vmatmul.mubr.bf16.gmra.mrb[0].mxu0 %v3680
  %v4891 = vpop.f32.mrb[0].mxu0
  %v4892 = vadd.f32 %v4669, %v4891
  %v4893 = vpop.f32.mrb[0].mxu0
  %v4894 = vadd.f32 %v4671, %v4893
  %v4895 = vpop.f32.mrb[0].mxu0
  %v4896 = vadd.f32 %v4673, %v4895
  %v4897 = vpop.f32.mrb[0].mxu0
  %v4898 = vadd.f32 %v4675, %v4897
  %4899 = vmatprep.mubr.bf16.mxu0 %v3685
  %4900 = vmatmul.mubr.bf16.gmra.mrb[0].mxu0 %v3684
  %v4901 = vpop.f32.mrb[0].mxu0
  %v4902 = vadd.f32 %v4679, %v4901
  %v4903 = vpop.f32.mrb[0].mxu0
  %v4904 = vadd.f32 %v4681, %v4903
  %v4905 = vpop.f32.mrb[0].mxu0
  %v4906 = vadd.f32 %v4683, %v4905
  %v4907 = vpop.f32.mrb[0].mxu0
  %v4908 = vadd.f32 %v4685, %v4907
  %4909 = vmatprep.mubr.bf16.mxu0 %v3689
  %4910 = vmatmul.mubr.bf16.gmra.mrb[0].mxu0 %v3688
  %v4911 = vpop.f32.mrb[0].mxu0
  %v4912 = vadd.f32 %v4689, %v4911
  %v4913 = vpop.f32.mrb[0].mxu0
  %v4914 = vadd.f32 %v4691, %v4913
  %v4915 = vpop.f32.mrb[0].mxu0
  %v4916 = vadd.f32 %v4693, %v4915
  %v4917 = vpop.f32.mrb[0].mxu0
  %v4918 = vadd.f32 %v4695, %v4917
  %4919 = vmatprep.mubr.bf16.mxu0 %v3693
  %4920 = vmatmul.mubr.bf16.gmra.mrb[0].mxu0 %v3692
  %v4921 = vpop.f32.mrb[0].mxu0
  %v4922 = vadd.f32 %v4699, %v4921
  %v4923 = vpop.f32.mrb[0].mxu0
  %v4924 = vadd.f32 %v4701, %v4923
  %v4925 = vpop.f32.mrb[0].mxu0
  %v4926 = vadd.f32 %v4703, %v4925
  %v4927 = vpop.f32.mrb[0].mxu0
  %v4928 = vadd.f32 %v4705, %v4927
  %4929 = vdwg.mxu0
  %4930 = vmatprep.subr.bf16.mxu0 %v4231
  %4931 = vmatpush1.bf16.msra.mxu0 %v4230
  %4932 = vmatprep.subr.bf16.mxu0 %v4235
  %4933 = vmatpush1.bf16.msra.mxu0 %v4234
  %4934 = vmatprep.subr.bf16.mxu0 %v4239
  %4935 = vmatpush1.bf16.msra.mxu0 %v4238
  %4936 = vmatprep.subr.bf16.mxu0 %v4243
  %4937 = vmatpush1.bf16.msra.mxu0 %v4242
  %4938 = vmatprep.subr.bf16.mxu0 %v4247
  %4939 = vmatpush1.bf16.msra.mxu0 %v4246
  %4940 = vmatprep.subr.bf16.mxu0 %v4251
  %4941 = vmatpush1.bf16.msra.mxu0 %v4250
  %4942 = vmatprep.subr.bf16.mxu0 %v4255
  %4943 = vmatpush1.bf16.msra.mxu0 %v4254
  %4944 = vmatprep.subr.bf16.mxu0 %v4259
  %4945 = vmatpush1.bf16.msra.mxu0 %v4258
  %4946 = vmatprep.subr.bf16.mxu0 %v4263
  %4947 = vmatpush1.bf16.msra.mxu0 %v4262
  %4948 = vmatprep.subr.bf16.mxu0 %v4267
  %4949 = vmatpush1.bf16.msra.mxu0 %v4266
  %4950 = vmatprep.subr.bf16.mxu0 %v4271
  %4951 = vmatpush1.bf16.msra.mxu0 %v4270
  %4952 = vmatprep.subr.bf16.mxu0 %v4275
  %4953 = vmatpush1.bf16.msra.mxu0 %v4274
  %4954 = vmatprep.subr.bf16.mxu0 %v4279
  %4955 = vmatpush1.bf16.msra.mxu0 %v4278
  %4956 = vmatprep.subr.bf16.mxu0 %v4283
  %4957 = vmatpush1.bf16.msra.mxu0 %v4282
  %4958 = vmatprep.subr.bf16.mxu0 %v4287
  %4959 = vmatpush1.bf16.msra.mxu0 %v4286
  %4960 = vmatprep.subr.bf16.mxu0 %v4291
  %4961 = vmatpush1.bf16.msra.mxu0 %v4290
  %4962 = vmatprep.mubr.bf16.mxu0 %v3619
  %4963 = vmatmul.mubr.bf16.gmra.mrb[0].mxu0 %v3618
  %v4964 = vpop.f32.mrb[0].mxu0
  %v4965 = vadd.f32 %v3835, %v4964
  %v4966 = vpop.f32.mrb[0].mxu0
  %v4967 = vadd.f32 %v3839, %v4966
  %v4968 = vpop.f32.mrb[0].mxu0
  %v4969 = vadd.f32 %v3835, %v4968
  %v4970 = vpop.f32.mrb[0].mxu0
  %v4971 = vadd.f32 %v3839, %v4970
  %4972 = vmatprep.mubr.bf16.mxu0 %v3623
  %4973 = vmatmul.mubr.bf16.gmra.mrb[0].mxu0 %v3622
  %v4974 = vpop.f32.mrb[0].mxu0
  %v4975 = vadd.f32 %v3835, %v4974
  %v4976 = vpop.f32.mrb[0].mxu0
  %v4977 = vadd.f32 %v3839, %v4976
  %v4978 = vpop.f32.mrb[0].mxu0
  %v4979 = vadd.f32 %v3835, %v4978
  %v4980 = vpop.f32.mrb[0].mxu0
  %v4981 = vadd.f32 %v3839, %v4980
  %4982 = vmatprep.mubr.bf16.mxu0 %v3627
  %4983 = vmatmul.mubr.bf16.gmra.mrb[0].mxu0 %v3626
  %v4984 = vpop.f32.mrb[0].mxu0
  %v4985 = vadd.f32 %v3835, %v4984
  %v4986 = vpop.f32.mrb[0].mxu0
  %v4987 = vadd.f32 %v3839, %v4986
  %v4988 = vpop.f32.mrb[0].mxu0
  %v4989 = vadd.f32 %v3835, %v4988
  %v4990 = vpop.f32.mrb[0].mxu0
  %v4991 = vadd.f32 %v3839, %v4990
  %4992 = vmatprep.mubr.bf16.mxu0 %v3631
  %4993 = vmatmul.mubr.bf16.gmra.mrb[0].mxu0 %v3630
  %v4994 = vpop.f32.mrb[0].mxu0
  %v4995 = vadd.f32 %v3835, %v4994
  %v4996 = vpop.f32.mrb[0].mxu0
  %v4997 = vadd.f32 %v3839, %v4996
  %v4998 = vpop.f32.mrb[0].mxu0
  %v4999 = vadd.f32 %v3835, %v4998
  %v5000 = vpop.f32.mrb[0].mxu0
  %v5001 = vadd.f32 %v3839, %v5000
  %5002 = vmatprep.mubr.bf16.mxu0 %v3635
  %5003 = vmatmul.mubr.bf16.gmra.mrb[0].mxu0 %v3634
  %v5004 = vpop.f32.mrb[0].mxu0
  %v5005 = vadd.f32 %v3835, %v5004
  %v5006 = vpop.f32.mrb[0].mxu0
  %v5007 = vadd.f32 %v3839, %v5006
  %v5008 = vpop.f32.mrb[0].mxu0
  %v5009 = vadd.f32 %v3835, %v5008
  %v5010 = vpop.f32.mrb[0].mxu0
  %v5011 = vadd.f32 %v3839, %v5010
  %5012 = vmatprep.mubr.bf16.mxu0 %v3639
  %5013 = vmatmul.mubr.bf16.gmra.mrb[0].mxu0 %v3638
  %v5014 = vpop.f32.mrb[0].mxu0
  %v5015 = vadd.f32 %v3835, %v5014
  %v5016 = vpop.f32.mrb[0].mxu0
  %v5017 = vadd.f32 %v3839, %v5016
  %v5018 = vpop.f32.mrb[0].mxu0
  %v5019 = vadd.f32 %v3835, %v5018
  %v5020 = vpop.f32.mrb[0].mxu0
  %v5021 = vadd.f32 %v3839, %v5020
  %5022 = vmatprep.mubr.bf16.mxu0 %v3643
  %5023 = vmatmul.mubr.bf16.gmra.mrb[0].mxu0 %v3642
  %v5024 = vpop.f32.mrb[0].mxu0
  %v5025 = vadd.f32 %v3835, %v5024
  %v5026 = vpop.f32.mrb[0].mxu0
  %v5027 = vadd.f32 %v3839, %v5026
  %v5028 = vpop.f32.mrb[0].mxu0
  %v5029 = vadd.f32 %v3835, %v5028
  %v5030 = vpop.f32.mrb[0].mxu0
  %v5031 = vadd.f32 %v3839, %v5030
  %5032 = vmatprep.mubr.bf16.mxu0 %v3647
  %5033 = vmatmul.mubr.bf16.gmra.mrb[0].mxu0 %v3646
  %v5034 = vpop.f32.mrb[0].mxu0
  %v5035 = vadd.f32 %v3835, %v5034
  %v5036 = vpop.f32.mrb[0].mxu0
  %v5037 = vadd.f32 %v3839, %v5036
  %v5038 = vpop.f32.mrb[0].mxu0
  %v5039 = vadd.f32 %v3835, %v5038
  %v5040 = vpop.f32.mrb[0].mxu0
  %v5041 = vadd.f32 %v3839, %v5040
  %5042 = vmatprep.mubr.bf16.mxu0 %v3651
  %5043 = vmatmul.mubr.bf16.gmra.mrb[0].mxu0 %v3650
  %v5044 = vpop.f32.mrb[0].mxu0
  %v5045 = vadd.f32 %v3835, %v5044
  %v5046 = vpop.f32.mrb[0].mxu0
  %v5047 = vadd.f32 %v3839, %v5046
  %v5048 = vpop.f32.mrb[0].mxu0
  %v5049 = vadd.f32 %v3835, %v5048
  %v5050 = vpop.f32.mrb[0].mxu0
  %v5051 = vadd.f32 %v3839, %v5050
  %5052 = vmatprep.mubr.bf16.mxu0 %v3655
  %5053 = vmatmul.mubr.bf16.gmra.mrb[0].mxu0 %v3654
  %v5054 = vpop.f32.mrb[0].mxu0
  %v5055 = vadd.f32 %v3835, %v5054
  %v5056 = vpop.f32.mrb[0].mxu0
  %v5057 = vadd.f32 %v3839, %v5056
  %v5058 = vpop.f32.mrb[0].mxu0
  %v5059 = vadd.f32 %v3835, %v5058
  %v5060 = vpop.f32.mrb[0].mxu0
  %v5061 = vadd.f32 %v3839, %v5060
  %5062 = vmatprep.mubr.bf16.mxu0 %v3659
  %5063 = vmatmul.mubr.bf16.gmra.mrb[0].mxu0 %v3658
  %v5064 = vpop.f32.mrb[0].mxu0
  %v5065 = vadd.f32 %v3835, %v5064
  %v5066 = vpop.f32.mrb[0].mxu0
  %v5067 = vadd.f32 %v3839, %v5066
  %v5068 = vpop.f32.mrb[0].mxu0
  %v5069 = vadd.f32 %v3835, %v5068
  %v5070 = vpop.f32.mrb[0].mxu0
  %v5071 = vadd.f32 %v3839, %v5070
  %5072 = vmatprep.mubr.bf16.mxu0 %v3663
  %5073 = vmatmul.mubr.bf16.gmra.mrb[0].mxu0 %v3662
  %v5074 = vpop.f32.mrb[0].mxu0
  %v5075 = vadd.f32 %v3835, %v5074
  %v5076 = vpop.f32.mrb[0].mxu0
  %v5077 = vadd.f32 %v3839, %v5076
  %v5078 = vpop.f32.mrb[0].mxu0
  %v5079 = vadd.f32 %v3835, %v5078
  %v5080 = vpop.f32.mrb[0].mxu0
  %v5081 = vadd.f32 %v3839, %v5080
  %5082 = vmatprep.mubr.bf16.mxu0 %v3667
  %5083 = vmatmul.mubr.bf16.gmra.mrb[0].mxu0 %v3666
  %v5084 = vpop.f32.mrb[0].mxu0
  %v5085 = vadd.f32 %v3835, %v5084
  %v5086 = vpop.f32.mrb[0].mxu0
  %v5087 = vadd.f32 %v3839, %v5086
  %v5088 = vpop.f32.mrb[0].mxu0
  %v5089 = vadd.f32 %v3835, %v5088
  %v5090 = vpop.f32.mrb[0].mxu0
  %v5091 = vadd.f32 %v3839, %v5090
  %5092 = vmatprep.mubr.bf16.mxu0 %v3671
  %5093 = vmatmul.mubr.bf16.gmra.mrb[0].mxu0 %v3670
  %v5094 = vpop.f32.mrb[0].mxu0
  %v5095 = vadd.f32 %v3835, %v5094
  %v5096 = vpop.f32.mrb[0].mxu0
  %v5097 = vadd.f32 %v3839, %v5096
  %v5098 = vpop.f32.mrb[0].mxu0
  %v5099 = vadd.f32 %v3835, %v5098
  %v5100 = vpop.f32.mrb[0].mxu0
  %v5101 = vadd.f32 %v3839, %v5100
  %5102 = vmatprep.mubr.bf16.mxu0 %v3675
  %5103 = vmatmul.mubr.bf16.gmra.mrb[0].mxu0 %v3674
  %v5104 = vpop.f32.mrb[0].mxu0
  %v5105 = vadd.f32 %v3835, %v5104
  %v5106 = vpop.f32.mrb[0].mxu0
  %v5107 = vadd.f32 %v3839, %v5106
  %v5108 = vpop.f32.mrb[0].mxu0
  %v5109 = vadd.f32 %v3835, %v5108
  %v5110 = vpop.f32.mrb[0].mxu0
  %v5111 = vadd.f32 %v3839, %v5110
  %5112 = vmatprep.mubr.bf16.mxu0 %v3679
  %5113 = vmatmul.mubr.bf16.gmra.mrb[0].mxu0 %v3678
  %v5114 = vpop.f32.mrb[0].mxu0
  %v5115 = vadd.f32 %v3835, %v5114
  %v5116 = vpop.f32.mrb[0].mxu0
  %v5117 = vadd.f32 %v3839, %v5116
  %v5118 = vpop.f32.mrb[0].mxu0
  %v5119 = vadd.f32 %v3835, %v5118
  %v5120 = vpop.f32.mrb[0].mxu0
  %v5121 = vadd.f32 %v3839, %v5120
  %5122 = vmatprep.mubr.bf16.mxu0 %v3683
  %5123 = vmatmul.mubr.bf16.gmra.mrb[0].mxu0 %v3682
  %v5124 = vpop.f32.mrb[0].mxu0
  %v5125 = vadd.f32 %v3835, %v5124
  %v5126 = vpop.f32.mrb[0].mxu0
  %v5127 = vadd.f32 %v3839, %v5126
  %v5128 = vpop.f32.mrb[0].mxu0
  %v5129 = vadd.f32 %v3835, %v5128
  %v5130 = vpop.f32.mrb[0].mxu0
  %v5131 = vadd.f32 %v3839, %v5130
  %5132 = vmatprep.mubr.bf16.mxu0 %v3687
  %5133 = vmatmul.mubr.bf16.gmra.mrb[0].mxu0 %v3686
  %v5134 = vpop.f32.mrb[0].mxu0
  %v5135 = vadd.f32 %v3835, %v5134
  %v5136 = vpop.f32.mrb[0].mxu0
  %v5137 = vadd.f32 %v3839, %v5136
  %v5138 = vpop.f32.mrb[0].mxu0
  %v5139 = vadd.f32 %v3835, %v5138
  %v5140 = vpop.f32.mrb[0].mxu0
  %v5141 = vadd.f32 %v3839, %v5140
  %5142 = vmatprep.mubr.bf16.mxu0 %v3691
  %5143 = vmatmul.mubr.bf16.gmra.mrb[0].mxu0 %v3690
  %v5144 = vpop.f32.mrb[0].mxu0
  %v5145 = vadd.f32 %v3835, %v5144
  %v5146 = vpop.f32.mrb[0].mxu0
  %v5147 = vadd.f32 %v3839, %v5146
  %v5148 = vpop.f32.mrb[0].mxu0
  %v5149 = vadd.f32 %v3835, %v5148
  %v5150 = vpop.f32.mrb[0].mxu0
  %v5151 = vadd.f32 %v3839, %v5150
  %5152 = vdwg.mxu0
  %5153 = vmatprep.subr.bf16.mxu0 %v4295
  %5154 = vmatpush1.bf16.msra.mxu0 %v4294
  %5155 = vmatprep.subr.bf16.mxu0 %v4299
  %5156 = vmatpush1.bf16.msra.mxu0 %v4298
  %5157 = vmatprep.subr.bf16.mxu0 %v4303
  %5158 = vmatpush1.bf16.msra.mxu0 %v4302
  %5159 = vmatprep.subr.bf16.mxu0 %v4307
  %5160 = vmatpush1.bf16.msra.mxu0 %v4306
  %5161 = vmatprep.subr.bf16.mxu0 %v4311
  %5162 = vmatpush1.bf16.msra.mxu0 %v4310
  %5163 = vmatprep.subr.bf16.mxu0 %v4315
  %5164 = vmatpush1.bf16.msra.mxu0 %v4314
  %5165 = vmatprep.subr.bf16.mxu0 %v4319
  %5166 = vmatpush1.bf16.msra.mxu0 %v4318
  %5167 = vmatprep.subr.bf16.mxu0 %v4323
  %5168 = vmatpush1.bf16.msra.mxu0 %v4322
  %5169 = vmatprep.subr.bf16.mxu0 %v4327
  %5170 = vmatpush1.bf16.msra.mxu0 %v4326
  %5171 = vmatprep.subr.bf16.mxu0 %v4331
  %5172 = vmatpush1.bf16.msra.mxu0 %v4330
  %5173 = vmatprep.subr.bf16.mxu0 %v4335
  %5174 = vmatpush1.bf16.msra.mxu0 %v4334
  %5175 = vmatprep.subr.bf16.mxu0 %v4339
  %5176 = vmatpush1.bf16.msra.mxu0 %v4338
  %5177 = vmatprep.subr.bf16.mxu0 %v4343
  %5178 = vmatpush1.bf16.msra.mxu0 %v4342
  %5179 = vmatprep.subr.bf16.mxu0 %v4347
  %5180 = vmatpush1.bf16.msra.mxu0 %v4346
  %5181 = vmatprep.subr.bf16.mxu0 %v4351
  %5182 = vmatpush1.bf16.msra.mxu0 %v4350
  %5183 = vmatprep.subr.bf16.mxu0 %v4355
  %5184 = vmatpush1.bf16.msra.mxu0 %v4354
  %5185 = vmatprep.mubr.bf16.mxu0 %v3621
  %5186 = vmatmul.mubr.bf16.gmra.mrb[0].mxu0 %v3620
  %v5187 = vpop.f32.mrb[0].mxu0
  %v5188 = vadd.f32 %v4965, %v5187
  %v5189 = vpop.f32.mrb[0].mxu0
  %v5190 = vadd.f32 %v4967, %v5189
  %v5191 = vpop.f32.mrb[0].mxu0
  %v5192 = vadd.f32 %v4969, %v5191
  %v5193 = vpop.f32.mrb[0].mxu0
  %v5194 = vadd.f32 %v4971, %v5193
  %5195 = vmatprep.mubr.bf16.mxu0 %v3625
  %5196 = vmatmul.mubr.bf16.gmra.mrb[0].mxu0 %v3624
  %v5197 = vpop.f32.mrb[0].mxu0
  %v5198 = vadd.f32 %v4975, %v5197
  %v5199 = vpop.f32.mrb[0].mxu0
  %v5200 = vadd.f32 %v4977, %v5199
  %v5201 = vpop.f32.mrb[0].mxu0
  %v5202 = vadd.f32 %v4979, %v5201
  %v5203 = vpop.f32.mrb[0].mxu0
  %v5204 = vadd.f32 %v4981, %v5203
  %5205 = vmatprep.mubr.bf16.mxu0 %v3629
  %5206 = vmatmul.mubr.bf16.gmra.mrb[0].mxu0 %v3628
  %v5207 = vpop.f32.mrb[0].mxu0
  %v5208 = vadd.f32 %v4985, %v5207
  %v5209 = vpop.f32.mrb[0].mxu0
  %v5210 = vadd.f32 %v4987, %v5209
  %v5211 = vpop.f32.mrb[0].mxu0
  %v5212 = vadd.f32 %v4989, %v5211
  %v5213 = vpop.f32.mrb[0].mxu0
  %v5214 = vadd.f32 %v4991, %v5213
  %5215 = vmatprep.mubr.bf16.mxu0 %v3633
  %5216 = vmatmul.mubr.bf16.gmra.mrb[0].mxu0 %v3632
  %v5217 = vpop.f32.mrb[0].mxu0
  %v5218 = vadd.f32 %v4995, %v5217
  %v5219 = vpop.f32.mrb[0].mxu0
  %v5220 = vadd.f32 %v4997, %v5219
  %v5221 = vpop.f32.mrb[0].mxu0
  %v5222 = vadd.f32 %v4999, %v5221
  %v5223 = vpop.f32.mrb[0].mxu0
  %v5224 = vadd.f32 %v5001, %v5223
  %5225 = vmatprep.mubr.bf16.mxu0 %v3637
  %5226 = vmatmul.mubr.bf16.gmra.mrb[0].mxu0 %v3636
  %v5227 = vpop.f32.mrb[0].mxu0
  %v5228 = vadd.f32 %v5005, %v5227
  %v5229 = vpop.f32.mrb[0].mxu0
  %v5230 = vadd.f32 %v5007, %v5229
  %v5231 = vpop.f32.mrb[0].mxu0
  %v5232 = vadd.f32 %v5009, %v5231
  %v5233 = vpop.f32.mrb[0].mxu0
  %v5234 = vadd.f32 %v5011, %v5233
  %5235 = vmatprep.mubr.bf16.mxu0 %v3641
  %5236 = vmatmul.mubr.bf16.gmra.mrb[0].mxu0 %v3640
  %v5237 = vpop.f32.mrb[0].mxu0
  %v5238 = vadd.f32 %v5015, %v5237
  %v5239 = vpop.f32.mrb[0].mxu0
  %v5240 = vadd.f32 %v5017, %v5239
  %v5241 = vpop.f32.mrb[0].mxu0
  %v5242 = vadd.f32 %v5019, %v5241
  %v5243 = vpop.f32.mrb[0].mxu0
  %v5244 = vadd.f32 %v5021, %v5243
  %5245 = vmatprep.mubr.bf16.mxu0 %v3645
  %5246 = vmatmul.mubr.bf16.gmra.mrb[0].mxu0 %v3644
  %v5247 = vpop.f32.mrb[0].mxu0
  %v5248 = vadd.f32 %v5025, %v5247
  %v5249 = vpop.f32.mrb[0].mxu0
  %v5250 = vadd.f32 %v5027, %v5249
  %v5251 = vpop.f32.mrb[0].mxu0
  %v5252 = vadd.f32 %v5029, %v5251
  %v5253 = vpop.f32.mrb[0].mxu0
  %v5254 = vadd.f32 %v5031, %v5253
  %5255 = vmatprep.mubr.bf16.mxu0 %v3649
  %5256 = vmatmul.mubr.bf16.gmra.mrb[0].mxu0 %v3648
  %v5257 = vpop.f32.mrb[0].mxu0
  %v5258 = vadd.f32 %v5035, %v5257
  %v5259 = vpop.f32.mrb[0].mxu0
  %v5260 = vadd.f32 %v5037, %v5259
  %v5261 = vpop.f32.mrb[0].mxu0
  %v5262 = vadd.f32 %v5039, %v5261
  %v5263 = vpop.f32.mrb[0].mxu0
  %v5264 = vadd.f32 %v5041, %v5263
  %5265 = vmatprep.mubr.bf16.mxu0 %v3653
  %5266 = vmatmul.mubr.bf16.gmra.mrb[0].mxu0 %v3652
  %v5267 = vpop.f32.mrb[0].mxu0
  %v5268 = vadd.f32 %v5045, %v5267
  %v5269 = vpop.f32.mrb[0].mxu0
  %v5270 = vadd.f32 %v5047, %v5269
  %v5271 = vpop.f32.mrb[0].mxu0
  %v5272 = vadd.f32 %v5049, %v5271
  %v5273 = vpop.f32.mrb[0].mxu0
  %v5274 = vadd.f32 %v5051, %v5273
  %5275 = vmatprep.mubr.bf16.mxu0 %v3657
  %5276 = vmatmul.mubr.bf16.gmra.mrb[0].mxu0 %v3656
  %v5277 = vpop.f32.mrb[0].mxu0
  %v5278 = vadd.f32 %v5055, %v5277
  %v5279 = vpop.f32.mrb[0].mxu0
  %v5280 = vadd.f32 %v5057, %v5279
  %v5281 = vpop.f32.mrb[0].mxu0
  %v5282 = vadd.f32 %v5059, %v5281
  %v5283 = vpop.f32.mrb[0].mxu0
  %v5284 = vadd.f32 %v5061, %v5283
  %5285 = vmatprep.mubr.bf16.mxu0 %v3661
  %5286 = vmatmul.mubr.bf16.gmra.mrb[0].mxu0 %v3660
  %v5287 = vpop.f32.mrb[0].mxu0
  %v5288 = vadd.f32 %v5065, %v5287
  %v5289 = vpop.f32.mrb[0].mxu0
  %v5290 = vadd.f32 %v5067, %v5289
  %v5291 = vpop.f32.mrb[0].mxu0
  %v5292 = vadd.f32 %v5069, %v5291
  %v5293 = vpop.f32.mrb[0].mxu0
  %v5294 = vadd.f32 %v5071, %v5293
  %5295 = vmatprep.mubr.bf16.mxu0 %v3665
  %5296 = vmatmul.mubr.bf16.gmra.mrb[0].mxu0 %v3664
  %v5297 = vpop.f32.mrb[0].mxu0
  %v5298 = vadd.f32 %v5075, %v5297
  %v5299 = vpop.f32.mrb[0].mxu0
  %v5300 = vadd.f32 %v5077, %v5299
  %v5301 = vpop.f32.mrb[0].mxu0
  %v5302 = vadd.f32 %v5079, %v5301
  %v5303 = vpop.f32.mrb[0].mxu0
  %v5304 = vadd.f32 %v5081, %v5303
  %5305 = vmatprep.mubr.bf16.mxu0 %v3669
  %5306 = vmatmul.mubr.bf16.gmra.mrb[0].mxu0 %v3668
  %v5307 = vpop.f32.mrb[0].mxu0
  %v5308 = vadd.f32 %v5085, %v5307
  %v5309 = vpop.f32.mrb[0].mxu0
  %v5310 = vadd.f32 %v5087, %v5309
  %v5311 = vpop.f32.mrb[0].mxu0
  %v5312 = vadd.f32 %v5089, %v5311
  %v5313 = vpop.f32.mrb[0].mxu0
  %v5314 = vadd.f32 %v5091, %v5313
  %5315 = vmatprep.mubr.bf16.mxu0 %v3673
  %5316 = vmatmul.mubr.bf16.gmra.mrb[0].mxu0 %v3672
  %v5317 = vpop.f32.mrb[0].mxu0
  %v5318 = vadd.f32 %v5095, %v5317
  %v5319 = vpop.f32.mrb[0].mxu0
  %v5320 = vadd.f32 %v5097, %v5319
  %v5321 = vpop.f32.mrb[0].mxu0
  %v5322 = vadd.f32 %v5099, %v5321
  %v5323 = vpop.f32.mrb[0].mxu0
  %v5324 = vadd.f32 %v5101, %v5323
  %5325 = vmatprep.mubr.bf16.mxu0 %v3677
  %5326 = vmatmul.mubr.bf16.gmra.mrb[0].mxu0 %v3676
  %v5327 = vpop.f32.mrb[0].mxu0
  %v5328 = vadd.f32 %v5105, %v5327
  %v5329 = vpop.f32.mrb[0].mxu0
  %v5330 = vadd.f32 %v5107, %v5329
  %v5331 = vpop.f32.mrb[0].mxu0
  %v5332 = vadd.f32 %v5109, %v5331
  %v5333 = vpop.f32.mrb[0].mxu0
  %v5334 = vadd.f32 %v5111, %v5333
  %5335 = vmatprep.mubr.bf16.mxu0 %v3681
  %5336 = vmatmul.mubr.bf16.gmra.mrb[0].mxu0 %v3680
  %v5337 = vpop.f32.mrb[0].mxu0
  %v5338 = vadd.f32 %v5115, %v5337
  %v5339 = vpop.f32.mrb[0].mxu0
  %v5340 = vadd.f32 %v5117, %v5339
  %v5341 = vpop.f32.mrb[0].mxu0
  %v5342 = vadd.f32 %v5119, %v5341
  %v5343 = vpop.f32.mrb[0].mxu0
  %v5344 = vadd.f32 %v5121, %v5343
  %5345 = vmatprep.mubr.bf16.mxu0 %v3685
  %5346 = vmatmul.mubr.bf16.gmra.mrb[0].mxu0 %v3684
  %v5347 = vpop.f32.mrb[0].mxu0
  %v5348 = vadd.f32 %v5125, %v5347
  %v5349 = vpop.f32.mrb[0].mxu0
  %v5350 = vadd.f32 %v5127, %v5349
  %v5351 = vpop.f32.mrb[0].mxu0
  %v5352 = vadd.f32 %v5129, %v5351
  %v5353 = vpop.f32.mrb[0].mxu0
  %v5354 = vadd.f32 %v5131, %v5353
  %5355 = vmatprep.mubr.bf16.mxu0 %v3689
  %5356 = vmatmul.mubr.bf16.gmra.mrb[0].mxu0 %v3688
  %v5357 = vpop.f32.mrb[0].mxu0
  %v5358 = vadd.f32 %v5135, %v5357
  %v5359 = vpop.f32.mrb[0].mxu0
  %v5360 = vadd.f32 %v5137, %v5359
  %v5361 = vpop.f32.mrb[0].mxu0
  %v5362 = vadd.f32 %v5139, %v5361
  %v5363 = vpop.f32.mrb[0].mxu0
  %v5364 = vadd.f32 %v5141, %v5363
  %5365 = vmatprep.mubr.bf16.mxu0 %v3693
  %5366 = vmatmul.mubr.bf16.gmra.mrb[0].mxu0 %v3692
  %v5367 = vpop.f32.mrb[0].mxu0
  %v5368 = vadd.f32 %v5145, %v5367
  %v5369 = vpop.f32.mrb[0].mxu0
  %v5370 = vadd.f32 %v5147, %v5369
  %v5371 = vpop.f32.mrb[0].mxu0
  %v5372 = vadd.f32 %v5149, %v5371
  %v5373 = vpop.f32.mrb[0].mxu0
  %v5374 = vadd.f32 %v5151, %v5373
  %5375 = vdwg.mxu0
  %v5376 = vmax.f32 %v4742, 0.0
  %v5377 = vmax.f32 %v4744, 0.0
  %v5378 = vmax.f32 %v5188, 0.0
  %v5379 = vmax.f32 %v5190, 0.0
  %v5380 = vmax.f32 %v4746, 0.0
  %v5381 = vmax.f32 %v4748, 0.0
  %v5382 = vmax.f32 %v5192, 0.0
  %v5383 = vmax.f32 %v5194, 0.0
  %v5384 = vmax.f32 %v4752, 0.0
  %v5385 = vmax.f32 %v4754, 0.0
  %v5386 = vmax.f32 %v5198, 0.0
  %v5387 = vmax.f32 %v5200, 0.0
  %v5388 = vmax.f32 %v4756, 0.0
  %v5389 = vmax.f32 %v4758, 0.0
  %v5390 = vmax.f32 %v5202, 0.0
  %v5391 = vmax.f32 %v5204, 0.0
  %v5392 = vmax.f32 %v4762, 0.0
  %v5393 = vmax.f32 %v4764, 0.0
  %v5394 = vmax.f32 %v5208, 0.0
  %v5395 = vmax.f32 %v5210, 0.0
  %v5396 = vmax.f32 %v4766, 0.0
  %v5397 = vmax.f32 %v4768, 0.0
  %v5398 = vmax.f32 %v5212, 0.0
  %v5399 = vmax.f32 %v5214, 0.0
  %v5400 = vmax.f32 %v4772, 0.0
  %v5401 = vmax.f32 %v4774, 0.0
  %v5402 = vmax.f32 %v5218, 0.0
  %v5403 = vmax.f32 %v5220, 0.0
  %v5404 = vmax.f32 %v4776, 0.0
  %v5405 = vmax.f32 %v4778, 0.0
  %v5406 = vmax.f32 %v5222, 0.0
  %v5407 = vmax.f32 %v5224, 0.0
  %v5408 = vmax.f32 %v4782, 0.0
  %v5409 = vmax.f32 %v4784, 0.0
  %v5410 = vmax.f32 %v5228, 0.0
  %v5411 = vmax.f32 %v5230, 0.0
  %v5412 = vmax.f32 %v4786, 0.0
  %v5413 = vmax.f32 %v4788, 0.0
  %v5414 = vmax.f32 %v5232, 0.0
  %v5415 = vmax.f32 %v5234, 0.0
  %v5416 = vmax.f32 %v4792, 0.0
  %v5417 = vmax.f32 %v4794, 0.0
  %v5418 = vmax.f32 %v5238, 0.0
  %v5419 = vmax.f32 %v5240, 0.0
  %v5420 = vmax.f32 %v4796, 0.0
  %v5421 = vmax.f32 %v4798, 0.0
  %v5422 = vmax.f32 %v5242, 0.0
  %v5423 = vmax.f32 %v5244, 0.0
  %v5424 = vmax.f32 %v4802, 0.0
  %v5425 = vmax.f32 %v4804, 0.0
  %v5426 = vmax.f32 %v5248, 0.0
  %v5427 = vmax.f32 %v5250, 0.0
  %v5428 = vmax.f32 %v4806, 0.0
  %v5429 = vmax.f32 %v4808, 0.0
  %v5430 = vmax.f32 %v5252, 0.0
  %v5431 = vmax.f32 %v5254, 0.0
  %v5432 = vmax.f32 %v4812, 0.0
  %v5433 = vmax.f32 %v4814, 0.0
  %v5434 = vmax.f32 %v5258, 0.0
  %v5435 = vmax.f32 %v5260, 0.0
  %v5436 = vmax.f32 %v4816, 0.0
  %v5437 = vmax.f32 %v4818, 0.0
  %v5438 = vmax.f32 %v5262, 0.0
  %v5439 = vmax.f32 %v5264, 0.0
  %v5440 = vmax.f32 %v4822, 0.0
  %v5441 = vmax.f32 %v4824, 0.0
  %v5442 = vmax.f32 %v5268, 0.0
  %v5443 = vmax.f32 %v5270, 0.0
  %v5444 = vmax.f32 %v4826, 0.0
  %v5445 = vmax.f32 %v4828, 0.0
  %v5446 = vmax.f32 %v5272, 0.0
  %v5447 = vmax.f32 %v5274, 0.0
  %v5448 = vmax.f32 %v4832, 0.0
  %v5449 = vmax.f32 %v4834, 0.0
  %v5450 = vmax.f32 %v5278, 0.0
  %v5451 = vmax.f32 %v5280, 0.0
  %v5452 = vmax.f32 %v4836, 0.0
  %v5453 = vmax.f32 %v4838, 0.0
  %v5454 = vmax.f32 %v5282, 0.0
  %v5455 = vmax.f32 %v5284, 0.0
  %v5456 = vmax.f32 %v4842, 0.0
  %v5457 = vmax.f32 %v4844, 0.0
  %v5458 = vmax.f32 %v5288, 0.0
  %v5459 = vmax.f32 %v5290, 0.0
  %v5460 = vmax.f32 %v4846, 0.0
  %v5461 = vmax.f32 %v4848, 0.0
  %v5462 = vmax.f32 %v5292, 0.0
  %v5463 = vmax.f32 %v5294, 0.0
  %v5464 = vmax.f32 %v4852, 0.0
  %v5465 = vmax.f32 %v4854, 0.0
  %v5466 = vmax.f32 %v5298, 0.0
  %v5467 = vmax.f32 %v5300, 0.0
  %v5468 = vmax.f32 %v4856, 0.0
  %v5469 = vmax.f32 %v4858, 0.0
  %v5470 = vmax.f32 %v5302, 0.0
  %v5471 = vmax.f32 %v5304, 0.0
  %v5472 = vmax.f32 %v4862, 0.0
  %v5473 = vmax.f32 %v4864, 0.0
  %v5474 = vmax.f32 %v5308, 0.0
  %v5475 = vmax.f32 %v5310, 0.0
  %v5476 = vmax.f32 %v4866, 0.0
  %v5477 = vmax.f32 %v4868, 0.0
  %v5478 = vmax.f32 %v5312, 0.0
  %v5479 = vmax.f32 %v5314, 0.0
  %v5480 = vmax.f32 %v4872, 0.0
  %v5481 = vmax.f32 %v4874, 0.0
  %v5482 = vmax.f32 %v5318, 0.0
  %v5483 = vmax.f32 %v5320, 0.0
  %v5484 = vmax.f32 %v4876, 0.0
  %v5485 = vmax.f32 %v4878, 0.0
  %v5486 = vmax.f32 %v5322, 0.0
  %v5487 = vmax.f32 %v5324, 0.0
  %v5488 = vmax.f32 %v4882, 0.0
  %v5489 = vmax.f32 %v4884, 0.0
  %v5490 = vmax.f32 %v5328, 0.0
  %v5491 = vmax.f32 %v5330, 0.0
  %v5492 = vmax.f32 %v4886, 0.0
  %v5493 = vmax.f32 %v4888, 0.0
  %v5494 = vmax.f32 %v5332, 0.0
  %v5495 = vmax.f32 %v5334, 0.0
  %v5496 = vmax.f32 %v4892, 0.0
  %v5497 = vmax.f32 %v4894, 0.0
  %v5498 = vmax.f32 %v5338, 0.0
  %v5499 = vmax.f32 %v5340, 0.0
  %v5500 = vmax.f32 %v4896, 0.0
  %v5501 = vmax.f32 %v4898, 0.0
  %v5502 = vmax.f32 %v5342, 0.0
  %v5503 = vmax.f32 %v5344, 0.0
  %v5504 = vmax.f32 %v4902, 0.0
  %v5505 = vmax.f32 %v4904, 0.0
  %v5506 = vmax.f32 %v5348, 0.0
  %v5507 = vmax.f32 %v5350, 0.0
  %v5508 = vmax.f32 %v4906, 0.0
  %v5509 = vmax.f32 %v4908, 0.0
  %v5510 = vmax.f32 %v5352, 0.0
  %v5511 = vmax.f32 %v5354, 0.0
  %v5512 = vmax.f32 %v4912, 0.0
  %v5513 = vmax.f32 %v4914, 0.0
  %v5514 = vmax.f32 %v5358, 0.0
  %v5515 = vmax.f32 %v5360, 0.0
  %v5516 = vmax.f32 %v4916, 0.0
  %v5517 = vmax.f32 %v4918, 0.0
  %v5518 = vmax.f32 %v5362, 0.0
  %v5519 = vmax.f32 %v5364, 0.0
  %v5520 = vmax.f32 %v4922, 0.0
  %v5521 = vmax.f32 %v4924, 0.0
  %v5522 = vmax.f32 %v5368, 0.0
  %v5523 = vmax.f32 %v5370, 0.0
  %v5524 = vmax.f32 %v4926, 0.0
  %v5525 = vmax.f32 %v4928, 0.0
  %v5526 = vmax.f32 %v5372, 0.0
  %v5527 = vmax.f32 %v5374, 0.0
  %v5528 = vpack.c.bf16 %v5380, %v5376
  %v5529 = vpack.c.bf16 %v5381, %v5377
  %v5530 = vpack.c.bf16 %v5382, %v5378
  %v5531 = vpack.c.bf16 %v5383, %v5379
  %v5532 = vpack.c.bf16 %v5388, %v5384
  %v5533 = vpack.c.bf16 %v5389, %v5385
  %v5534 = vpack.c.bf16 %v5390, %v5386
  %v5535 = vpack.c.bf16 %v5391, %v5387
  %v5536 = vpack.c.bf16 %v5396, %v5392
  %v5537 = vpack.c.bf16 %v5397, %v5393
  %v5538 = vpack.c.bf16 %v5398, %v5394
  %v5539 = vpack.c.bf16 %v5399, %v5395
  %v5540 = vpack.c.bf16 %v5404, %v5400
  %v5541 = vpack.c.bf16 %v5405, %v5401
  %v5542 = vpack.c.bf16 %v5406, %v5402
  %v5543 = vpack.c.bf16 %v5407, %v5403
  %v5544 = vpack.c.bf16 %v5412, %v5408
  %v5545 = vpack.c.bf16 %v5413, %v5409
  %v5546 = vpack.c.bf16 %v5414, %v5410
  %v5547 = vpack.c.bf16 %v5415, %v5411
  %v5548 = vpack.c.bf16 %v5420, %v5416
  %v5549 = vpack.c.bf16 %v5421, %v5417
  %v5550 = vpack.c.bf16 %v5422, %v5418
  %v5551 = vpack.c.bf16 %v5423, %v5419
  %v5552 = vpack.c.bf16 %v5428, %v5424
  %v5553 = vpack.c.bf16 %v5429, %v5425
  %v5554 = vpack.c.bf16 %v5430, %v5426
  %v5555 = vpack.c.bf16 %v5431, %v5427
  %v5556 = vpack.c.bf16 %v5436, %v5432
  %v5557 = vpack.c.bf16 %v5437, %v5433
  %v5558 = vpack.c.bf16 %v5438, %v5434
  %v5559 = vpack.c.bf16 %v5439, %v5435
  %v5560 = vpack.c.bf16 %v5444, %v5440
  %v5561 = vpack.c.bf16 %v5445, %v5441
  %v5562 = vpack.c.bf16 %v5446, %v5442
  %v5563 = vpack.c.bf16 %v5447, %v5443
  %v5564 = vpack.c.bf16 %v5452, %v5448
  %v5565 = vpack.c.bf16 %v5453, %v5449
  %v5566 = vpack.c.bf16 %v5454, %v5450
  %v5567 = vpack.c.bf16 %v5455, %v5451
  %v5568 = vpack.c.bf16 %v5460, %v5456
  %v5569 = vpack.c.bf16 %v5461, %v5457
  %v5570 = vpack.c.bf16 %v5462, %v5458
  %v5571 = vpack.c.bf16 %v5463, %v5459
  %v5572 = vpack.c.bf16 %v5468, %v5464
  %v5573 = vpack.c.bf16 %v5469, %v5465
  %v5574 = vpack.c.bf16 %v5470, %v5466
  %v5575 = vpack.c.bf16 %v5471, %v5467
  %v5576 = vpack.c.bf16 %v5476, %v5472
  %v5577 = vpack.c.bf16 %v5477, %v5473
  %v5578 = vpack.c.bf16 %v5478, %v5474
  %v5579 = vpack.c.bf16 %v5479, %v5475
  %v5580 = vpack.c.bf16 %v5484, %v5480
  %v5581 = vpack.c.bf16 %v5485, %v5481
  %v5582 = vpack.c.bf16 %v5486, %v5482
  %v5583 = vpack.c.bf16 %v5487, %v5483
  %v5584 = vpack.c.bf16 %v5492, %v5488
  %v5585 = vpack.c.bf16 %v5493, %v5489
  %v5586 = vpack.c.bf16 %v5494, %v5490
  %v5587 = vpack.c.bf16 %v5495, %v5491
  %v5588 = vpack.c.bf16 %v5500, %v5496
  %v5589 = vpack.c.bf16 %v5501, %v5497
  %v5590 = vpack.c.bf16 %v5502, %v5498
  %v5591 = vpack.c.bf16 %v5503, %v5499
  %v5592 = vpack.c.bf16 %v5508, %v5504
  %v5593 = vpack.c.bf16 %v5509, %v5505
  %v5594 = vpack.c.bf16 %v5510, %v5506
  %v5595 = vpack.c.bf16 %v5511, %v5507
  %v5596 = vpack.c.bf16 %v5516, %v5512
  %v5597 = vpack.c.bf16 %v5517, %v5513
  %v5598 = vpack.c.bf16 %v5518, %v5514
  %v5599 = vpack.c.bf16 %v5519, %v5515
  %v5600 = vpack.c.bf16 %v5524, %v5520
  %v5601 = vpack.c.bf16 %v5525, %v5521
  %v5602 = vpack.c.bf16 %v5526, %v5522
  %v5603 = vpack.c.bf16 %v5527, %v5523
  %v5604 = vld [vmem:[%s5] sm:$0xf]
  %v5605 = vld [vmem:[%s5 + $0x4] sm:$0xf]
  %v5606 = vld [vmem:[%s5 + $0x8] sm:$0xf]
  %v5607 = vld [vmem:[%s5 + $0xc] sm:$0xf]
  %v5608 = vld [vmem:[%s5 + $0x10] sm:$0xf]
  %v5609 = vld [vmem:[%s5 + $0x14] sm:$0xf]
  %v5610 = vld [vmem:[%s5 + $0x18] sm:$0xf]
  %v5611 = vld [vmem:[%s5 + $0x1c] sm:$0xf]
  %v5612 = vld [vmem:[%s5 + $0x20] sm:$0xf]
  %v5613 = vld [vmem:[%s5 + $0x24] sm:$0xf]
  %v5614 = vld [vmem:[%s5 + $0x28] sm:$0xf]
  %v5615 = vld [vmem:[%s5 + $0x2c] sm:$0xf]
  %v5616 = vld [vmem:[%s5 + $0x30] sm:$0xf]
  %v5617 = vld [vmem:[%s5 + $0x34] sm:$0xf]
  %v5618 = vld [vmem:[%s5 + $0x38] sm:$0xf]
  %v5619 = vld [vmem:[%s5 + $0x3c] sm:$0xf]
  %v5620 = vld [vmem:[%s5 + $0x40] sm:$0xf]
  %v5621 = vld [vmem:[%s5 + $0x44] sm:$0xf]
  %v5622 = vld [vmem:[%s5 + $0x48] sm:$0xf]
  %v5623 = vld [vmem:[%s5 + $0x4c] sm:$0xf]
  %v5624 = vld [vmem:[%s5 + $0x50] sm:$0xf]
  %v5625 = vld [vmem:[%s5 + $0x54] sm:$0xf]
  %v5626 = vld [vmem:[%s5 + $0x58] sm:$0xf]
  %v5627 = vld [vmem:[%s5 + $0x5c] sm:$0xf]
  %v5628 = vld [vmem:[%s5 + $0x60] sm:$0xf]
  %v5629 = vld [vmem:[%s5 + $0x64] sm:$0xf]
  %v5630 = vld [vmem:[%s5 + $0x68] sm:$0xf]
  %v5631 = vld [vmem:[%s5 + $0x6c] sm:$0xf]
  %v5632 = vld [vmem:[%s5 + $0x70] sm:$0xf]
  %v5633 = vld [vmem:[%s5 + $0x74] sm:$0xf]
  %v5634 = vld [vmem:[%s5 + $0x78] sm:$0xf]
  %v5635 = vld [vmem:[%s5 + $0x7c] sm:$0xf]
  %v5636 = vld [vmem:[%s5 + $0x80] sm:$0xf]
  %v5637 = vld [vmem:[%s5 + $0x84] sm:$0xf]
  %v5638 = vld [vmem:[%s5 + $0x88] sm:$0xf]
  %v5639 = vld [vmem:[%s5 + $0x8c] sm:$0xf]
  %v5640 = vld [vmem:[%s5 + $0x90] sm:$0xf]
  %v5641 = vld [vmem:[%s5 + $0x94] sm:$0xf]
  %v5642 = vld [vmem:[%s5 + $0x98] sm:$0xf]
  %v5643 = vld [vmem:[%s5 + $0x9c] sm:$0xf]
  %v5644 = vld [vmem:[%s5 + $0xa0] sm:$0xf]
  %v5645 = vld [vmem:[%s5 + $0xa4] sm:$0xf]
  %v5646 = vld [vmem:[%s5 + $0xa8] sm:$0xf]
  %v5647 = vld [vmem:[%s5 + $0xac] sm:$0xf]
  %v5648 = vld [vmem:[%s5 + $0xb0] sm:$0xf]
  %v5649 = vld [vmem:[%s5 + $0xb4] sm:$0xf]
  %v5650 = vld [vmem:[%s5 + $0xb8] sm:$0xf]
  %v5651 = vld [vmem:[%s5 + $0xbc] sm:$0xf]
  %v5652 = vld [vmem:[%s5 + $0xc0] sm:$0xf]
  %v5653 = vld [vmem:[%s5 + $0xc4] sm:$0xf]
  %v5654 = vld [vmem:[%s5 + $0xc8] sm:$0xf]
  %v5655 = vld [vmem:[%s5 + $0xcc] sm:$0xf]
  %v5656 = vld [vmem:[%s5 + $0xd0] sm:$0xf]
  %v5657 = vld [vmem:[%s5 + $0xd4] sm:$0xf]
  %v5658 = vld [vmem:[%s5 + $0xd8] sm:$0xf]
  %v5659 = vld [vmem:[%s5 + $0xdc] sm:$0xf]
  %v5660 = vld [vmem:[%s5 + $0xe0] sm:$0xf]
  %v5661 = vld [vmem:[%s5 + $0xe4] sm:$0xf]
  %v5662 = vld [vmem:[%s5 + $0xe8] sm:$0xf]
  %v5663 = vld [vmem:[%s5 + $0xec] sm:$0xf]
  %v5664 = vld [vmem:[%s5 + $0xf0] sm:$0xf]
  %v5665 = vld [vmem:[%s5 + $0xf4] sm:$0xf]
  %v5666 = vld [vmem:[%s5 + $0xf8] sm:$0xf]
  %v5667 = vld [vmem:[%s5 + $0xfc] sm:$0xf]
  %v5668 = vld [vmem:[%s6] sm:$0x1]
  %v5670 = vlaneseq
  %v5671 = vshrl.u32 %v5670, 7
  %v5672 = vsub.s32 0, %v5671
  %v5673 = vrot.slane %v5668, %v5672
  %v5739 = vunpack.c.l.b16 %v5604
  %v5740 = vunpack.c.l.b16 %v5605
  %v5741 = vunpack.c.l.b16 %v5606
  %v5742 = vunpack.c.l.b16 %v5607
  %v5743 = vunpack.c.l.b16 %v5608
  %v5744 = vunpack.c.l.b16 %v5609
  %v5745 = vunpack.c.l.b16 %v5610
  %v5746 = vunpack.c.l.b16 %v5611
  %v5747 = vunpack.c.l.b16 %v5612
  %v5748 = vunpack.c.l.b16 %v5613
  %v5749 = vunpack.c.l.b16 %v5614
  %v5750 = vunpack.c.l.b16 %v5615
  %v5751 = vunpack.c.l.b16 %v5616
  %v5752 = vunpack.c.l.b16 %v5617
  %v5753 = vunpack.c.l.b16 %v5618
  %v5754 = vunpack.c.l.b16 %v5619
  %v5755 = vunpack.c.l.b16 %v5620
  %v5756 = vunpack.c.l.b16 %v5621
  %v5757 = vunpack.c.l.b16 %v5622
  %v5758 = vunpack.c.l.b16 %v5623
  %v5759 = vunpack.c.l.b16 %v5624
  %v5760 = vunpack.c.l.b16 %v5625
  %v5761 = vunpack.c.l.b16 %v5626
  %v5762 = vunpack.c.l.b16 %v5627
  %v5763 = vunpack.c.l.b16 %v5628
  %v5764 = vunpack.c.l.b16 %v5629
  %v5765 = vunpack.c.l.b16 %v5630
  %v5766 = vunpack.c.l.b16 %v5631
  %v5767 = vunpack.c.l.b16 %v5632
  %v5768 = vunpack.c.l.b16 %v5633
  %v5769 = vunpack.c.l.b16 %v5634
  %v5770 = vunpack.c.l.b16 %v5635
  %v5771 = vunpack.c.l.b16 %v5636
  %v5772 = vunpack.c.l.b16 %v5637
  %v5773 = vunpack.c.l.b16 %v5638
  %v5774 = vunpack.c.l.b16 %v5639
  %v5775 = vunpack.c.l.b16 %v5640
  %v5776 = vunpack.c.l.b16 %v5641
  %v5777 = vunpack.c.l.b16 %v5642
  %v5778 = vunpack.c.l.b16 %v5643
  %v5779 = vunpack.c.l.b16 %v5644
  %v5780 = vunpack.c.l.b16 %v5645
  %v5781 = vunpack.c.l.b16 %v5646
  %v5782 = vunpack.c.l.b16 %v5647
  %v5783 = vunpack.c.l.b16 %v5648
  %v5784 = vunpack.c.l.b16 %v5649
  %v5785 = vunpack.c.l.b16 %v5650
  %v5786 = vunpack.c.l.b16 %v5651
  %v5787 = vunpack.c.l.b16 %v5652
  %v5788 = vunpack.c.l.b16 %v5653
  %v5789 = vunpack.c.l.b16 %v5654
  %v5790 = vunpack.c.l.b16 %v5655
  %v5791 = vunpack.c.l.b16 %v5656
  %v5792 = vunpack.c.l.b16 %v5657
  %v5793 = vunpack.c.l.b16 %v5658
  %v5794 = vunpack.c.l.b16 %v5659
  %v5795 = vunpack.c.l.b16 %v5660
  %v5796 = vunpack.c.l.b16 %v5661
  %v5797 = vunpack.c.l.b16 %v5662
  %v5798 = vunpack.c.l.b16 %v5663
  %v5799 = vunpack.c.l.b16 %v5664
  %v5800 = vunpack.c.l.b16 %v5665
  %v5801 = vunpack.c.l.b16 %v5666
  %v5802 = vunpack.c.l.b16 %v5667
  %v5803 = vpack.c.b16 %v5740, %v5739
  %v5804 = vpack.c.b16 %v5742, %v5741
  %v5805 = vpack.c.b16 %v5744, %v5743
  %v5806 = vpack.c.b16 %v5746, %v5745
  %v5807 = vpack.c.b16 %v5748, %v5747
  %v5808 = vpack.c.b16 %v5750, %v5749
  %v5809 = vpack.c.b16 %v5752, %v5751
  %v5810 = vpack.c.b16 %v5754, %v5753
  %v5811 = vpack.c.b16 %v5756, %v5755
  %v5812 = vpack.c.b16 %v5758, %v5757
  %v5813 = vpack.c.b16 %v5760, %v5759
  %v5814 = vpack.c.b16 %v5762, %v5761
  %v5815 = vpack.c.b16 %v5764, %v5763
  %v5816 = vpack.c.b16 %v5766, %v5765
  %v5817 = vpack.c.b16 %v5768, %v5767
  %v5818 = vpack.c.b16 %v5770, %v5769
  %v5819 = vpack.c.b16 %v5772, %v5771
  %v5820 = vpack.c.b16 %v5774, %v5773
  %v5821 = vpack.c.b16 %v5776, %v5775
  %v5822 = vpack.c.b16 %v5778, %v5777
  %v5823 = vpack.c.b16 %v5780, %v5779
  %v5824 = vpack.c.b16 %v5782, %v5781
  %v5825 = vpack.c.b16 %v5784, %v5783
  %v5826 = vpack.c.b16 %v5786, %v5785
  %v5827 = vpack.c.b16 %v5788, %v5787
  %v5828 = vpack.c.b16 %v5790, %v5789
  %v5829 = vpack.c.b16 %v5792, %v5791
  %v5830 = vpack.c.b16 %v5794, %v5793
  %v5831 = vpack.c.b16 %v5796, %v5795
  %v5832 = vpack.c.b16 %v5798, %v5797
  %v5833 = vpack.c.b16 %v5800, %v5799
  %v5834 = vpack.c.b16 %v5802, %v5801
  %5867 = vmatprep.subr.bf16.mxu0 0
  %5868 = vmatpush1.bf16.msra.mxu0 %v5803
  %5869 = vmatprep.subr.bf16.mxu0 0
  %5870 = vmatpush1.bf16.msra.mxu0 %v5804
  %5871 = vmatprep.subr.bf16.mxu0 0
  %5872 = vmatpush1.bf16.msra.mxu0 %v5805
  %5873 = vmatprep.subr.bf16.mxu0 0
  %5874 = vmatpush1.bf16.msra.mxu0 %v5806
  %5875 = vmatprep.subr.bf16.mxu0 0
  %5876 = vmatpush1.bf16.msra.mxu0 %v5807
  %5877 = vmatprep.subr.bf16.mxu0 0
  %5878 = vmatpush1.bf16.msra.mxu0 %v5808
  %5879 = vmatprep.subr.bf16.mxu0 0
  %5880 = vmatpush1.bf16.msra.mxu0 %v5809
  %5881 = vmatprep.subr.bf16.mxu0 0
  %5882 = vmatpush1.bf16.msra.mxu0 %v5810
  %5883 = vmatprep.subr.bf16.mxu0 0
  %5884 = vmatpush1.bf16.msra.mxu0 %v5811
  %5885 = vmatprep.subr.bf16.mxu0 0
  %5886 = vmatpush1.bf16.msra.mxu0 %v5812
  %5887 = vmatprep.subr.bf16.mxu0 0
  %5888 = vmatpush1.bf16.msra.mxu0 %v5813
  %5889 = vmatprep.subr.bf16.mxu0 0
  %5890 = vmatpush1.bf16.msra.mxu0 %v5814
  %5891 = vmatprep.subr.bf16.mxu0 0
  %5892 = vmatpush1.bf16.msra.mxu0 %v5815
  %5893 = vmatprep.subr.bf16.mxu0 0
  %5894 = vmatpush1.bf16.msra.mxu0 %v5816
  %5895 = vmatprep.subr.bf16.mxu0 0
  %5896 = vmatpush1.bf16.msra.mxu0 %v5817
  %5897 = vmatprep.subr.bf16.mxu0 0
  %5898 = vmatpush1.bf16.msra.mxu0 %v5818
  %5899 = vmatprep.mubr.bf16.mxu0 %v5529
  %5900 = vmatmul.mubr.bf16.gmra.mrb[0].mxu0 %v5528
  %v5901 = vpop.f32.mrb[0].mxu0
  %v5902 = vadd.f32 %v5673, %v5901
  %v5903 = vpop.f32.mrb[0].mxu0
  %v5904 = vpop.f32.mrb[0].mxu0
  %v5905 = vadd.f32 %v5673, %v5904
  %v5906 = vpop.f32.mrb[0].mxu0
  %5907 = vmatprep.mubr.bf16.mxu0 %v5533
  %5908 = vmatmul.mubr.bf16.gmra.mrb[0].mxu0 %v5532
  %v5909 = vpop.f32.mrb[0].mxu0
  %v5910 = vadd.f32 %v5673, %v5909
  %v5911 = vpop.f32.mrb[0].mxu0
  %v5912 = vpop.f32.mrb[0].mxu0
  %v5913 = vadd.f32 %v5673, %v5912
  %v5914 = vpop.f32.mrb[0].mxu0
  %5915 = vmatprep.mubr.bf16.mxu0 %v5537
  %5916 = vmatmul.mubr.bf16.gmra.mrb[0].mxu0 %v5536
  %v5917 = vpop.f32.mrb[0].mxu0
  %v5918 = vadd.f32 %v5673, %v5917
  %v5919 = vpop.f32.mrb[0].mxu0
  %v5920 = vpop.f32.mrb[0].mxu0
  %v5921 = vadd.f32 %v5673, %v5920
  %v5922 = vpop.f32.mrb[0].mxu0
  %5923 = vmatprep.mubr.bf16.mxu0 %v5541
  %5924 = vmatmul.mubr.bf16.gmra.mrb[0].mxu0 %v5540
  %v5925 = vpop.f32.mrb[0].mxu0
  %v5926 = vadd.f32 %v5673, %v5925
  %v5927 = vpop.f32.mrb[0].mxu0
  %v5928 = vpop.f32.mrb[0].mxu0
  %v5929 = vadd.f32 %v5673, %v5928
  %v5930 = vpop.f32.mrb[0].mxu0
  %5931 = vmatprep.mubr.bf16.mxu0 %v5545
  %5932 = vmatmul.mubr.bf16.gmra.mrb[0].mxu0 %v5544
  %v5933 = vpop.f32.mrb[0].mxu0
  %v5934 = vadd.f32 %v5673, %v5933
  %v5935 = vpop.f32.mrb[0].mxu0
  %v5936 = vpop.f32.mrb[0].mxu0
  %v5937 = vadd.f32 %v5673, %v5936
  %v5938 = vpop.f32.mrb[0].mxu0
  %5939 = vmatprep.mubr.bf16.mxu0 %v5549
  %5940 = vmatmul.mubr.bf16.gmra.mrb[0].mxu0 %v5548
  %v5941 = vpop.f32.mrb[0].mxu0
  %v5942 = vadd.f32 %v5673, %v5941
  %v5943 = vpop.f32.mrb[0].mxu0
  %v5944 = vpop.f32.mrb[0].mxu0
  %v5945 = vadd.f32 %v5673, %v5944
  %v5946 = vpop.f32.mrb[0].mxu0
  %5947 = vmatprep.mubr.bf16.mxu0 %v5553
  %5948 = vmatmul.mubr.bf16.gmra.mrb[0].mxu0 %v5552
  %v5949 = vpop.f32.mrb[0].mxu0
  %v5950 = vadd.f32 %v5673, %v5949
  %v5951 = vpop.f32.mrb[0].mxu0
  %v5952 = vpop.f32.mrb[0].mxu0
  %v5953 = vadd.f32 %v5673, %v5952
  %v5954 = vpop.f32.mrb[0].mxu0
  %5955 = vmatprep.mubr.bf16.mxu0 %v5557
  %5956 = vmatmul.mubr.bf16.gmra.mrb[0].mxu0 %v5556
  %v5957 = vpop.f32.mrb[0].mxu0
  %v5958 = vadd.f32 %v5673, %v5957
  %v5959 = vpop.f32.mrb[0].mxu0
  %v5960 = vpop.f32.mrb[0].mxu0
  %v5961 = vadd.f32 %v5673, %v5960
  %v5962 = vpop.f32.mrb[0].mxu0
  %5963 = vmatprep.mubr.bf16.mxu0 %v5561
  %5964 = vmatmul.mubr.bf16.gmra.mrb[0].mxu0 %v5560
  %v5965 = vpop.f32.mrb[0].mxu0
  %v5966 = vadd.f32 %v5673, %v5965
  %v5967 = vpop.f32.mrb[0].mxu0
  %v5968 = vpop.f32.mrb[0].mxu0
  %v5969 = vadd.f32 %v5673, %v5968
  %v5970 = vpop.f32.mrb[0].mxu0
  %5971 = vmatprep.mubr.bf16.mxu0 %v5565
  %5972 = vmatmul.mubr.bf16.gmra.mrb[0].mxu0 %v5564
  %v5973 = vpop.f32.mrb[0].mxu0
  %v5974 = vadd.f32 %v5673, %v5973
  %v5975 = vpop.f32.mrb[0].mxu0
  %v5976 = vpop.f32.mrb[0].mxu0
  %v5977 = vadd.f32 %v5673, %v5976
  %v5978 = vpop.f32.mrb[0].mxu0
  %5979 = vmatprep.mubr.bf16.mxu0 %v5569
  %5980 = vmatmul.mubr.bf16.gmra.mrb[0].mxu0 %v5568
  %v5981 = vpop.f32.mrb[0].mxu0
  %v5982 = vadd.f32 %v5673, %v5981
  %v5983 = vpop.f32.mrb[0].mxu0
  %v5984 = vpop.f32.mrb[0].mxu0
  %v5985 = vadd.f32 %v5673, %v5984
  %v5986 = vpop.f32.mrb[0].mxu0
  %5987 = vmatprep.mubr.bf16.mxu0 %v5573
  %5988 = vmatmul.mubr.bf16.gmra.mrb[0].mxu0 %v5572
  %v5989 = vpop.f32.mrb[0].mxu0
  %v5990 = vadd.f32 %v5673, %v5989
  %v5991 = vpop.f32.mrb[0].mxu0
  %v5992 = vpop.f32.mrb[0].mxu0
  %v5993 = vadd.f32 %v5673, %v5992
  %v5994 = vpop.f32.mrb[0].mxu0
  %5995 = vmatprep.mubr.bf16.mxu0 %v5577
  %5996 = vmatmul.mubr.bf16.gmra.mrb[0].mxu0 %v5576
  %v5997 = vpop.f32.mrb[0].mxu0
  %v5998 = vadd.f32 %v5673, %v5997
  %v5999 = vpop.f32.mrb[0].mxu0
  %v6000 = vpop.f32.mrb[0].mxu0
  %v6001 = vadd.f32 %v5673, %v6000
  %v6002 = vpop.f32.mrb[0].mxu0
  %6003 = vmatprep.mubr.bf16.mxu0 %v5581
  %6004 = vmatmul.mubr.bf16.gmra.mrb[0].mxu0 %v5580
  %v6005 = vpop.f32.mrb[0].mxu0
  %v6006 = vadd.f32 %v5673, %v6005
  %v6007 = vpop.f32.mrb[0].mxu0
  %v6008 = vpop.f32.mrb[0].mxu0
  %v6009 = vadd.f32 %v5673, %v6008
  %v6010 = vpop.f32.mrb[0].mxu0
  %6011 = vmatprep.mubr.bf16.mxu0 %v5585
  %6012 = vmatmul.mubr.bf16.gmra.mrb[0].mxu0 %v5584
  %v6013 = vpop.f32.mrb[0].mxu0
  %v6014 = vadd.f32 %v5673, %v6013
  %v6015 = vpop.f32.mrb[0].mxu0
  %v6016 = vpop.f32.mrb[0].mxu0
  %v6017 = vadd.f32 %v5673, %v6016
  %v6018 = vpop.f32.mrb[0].mxu0
  %6019 = vmatprep.mubr.bf16.mxu0 %v5589
  %6020 = vmatmul.mubr.bf16.gmra.mrb[0].mxu0 %v5588
  %v6021 = vpop.f32.mrb[0].mxu0
  %v6022 = vadd.f32 %v5673, %v6021
  %v6023 = vpop.f32.mrb[0].mxu0
  %v6024 = vpop.f32.mrb[0].mxu0
  %v6025 = vadd.f32 %v5673, %v6024
  %v6026 = vpop.f32.mrb[0].mxu0
  %6027 = vmatprep.mubr.bf16.mxu0 %v5593
  %6028 = vmatmul.mubr.bf16.gmra.mrb[0].mxu0 %v5592
  %v6029 = vpop.f32.mrb[0].mxu0
  %v6030 = vadd.f32 %v5673, %v6029
  %v6031 = vpop.f32.mrb[0].mxu0
  %v6032 = vpop.f32.mrb[0].mxu0
  %v6033 = vadd.f32 %v5673, %v6032
  %v6034 = vpop.f32.mrb[0].mxu0
  %6035 = vmatprep.mubr.bf16.mxu0 %v5597
  %6036 = vmatmul.mubr.bf16.gmra.mrb[0].mxu0 %v5596
  %v6037 = vpop.f32.mrb[0].mxu0
  %v6038 = vadd.f32 %v5673, %v6037
  %v6039 = vpop.f32.mrb[0].mxu0
  %v6040 = vpop.f32.mrb[0].mxu0
  %v6041 = vadd.f32 %v5673, %v6040
  %v6042 = vpop.f32.mrb[0].mxu0
  %6043 = vmatprep.mubr.bf16.mxu0 %v5601
  %6044 = vmatmul.mubr.bf16.gmra.mrb[0].mxu0 %v5600
  %v6045 = vpop.f32.mrb[0].mxu0
  %v6046 = vadd.f32 %v5673, %v6045
  %v6047 = vpop.f32.mrb[0].mxu0
  %v6048 = vpop.f32.mrb[0].mxu0
  %v6049 = vadd.f32 %v5673, %v6048
  %v6050 = vpop.f32.mrb[0].mxu0
  %6051 = vdwg.mxu0
  %6052 = vmatprep.subr.bf16.mxu0 0
  %6053 = vmatpush1.bf16.msra.mxu0 %v5819
  %6054 = vmatprep.subr.bf16.mxu0 0
  %6055 = vmatpush1.bf16.msra.mxu0 %v5820
  %6056 = vmatprep.subr.bf16.mxu0 0
  %6057 = vmatpush1.bf16.msra.mxu0 %v5821
  %6058 = vmatprep.subr.bf16.mxu0 0
  %6059 = vmatpush1.bf16.msra.mxu0 %v5822
  %6060 = vmatprep.subr.bf16.mxu0 0
  %6061 = vmatpush1.bf16.msra.mxu0 %v5823
  %6062 = vmatprep.subr.bf16.mxu0 0
  %6063 = vmatpush1.bf16.msra.mxu0 %v5824
  %6064 = vmatprep.subr.bf16.mxu0 0
  %6065 = vmatpush1.bf16.msra.mxu0 %v5825
  %6066 = vmatprep.subr.bf16.mxu0 0
  %6067 = vmatpush1.bf16.msra.mxu0 %v5826
  %6068 = vmatprep.subr.bf16.mxu0 0
  %6069 = vmatpush1.bf16.msra.mxu0 %v5827
  %6070 = vmatprep.subr.bf16.mxu0 0
  %6071 = vmatpush1.bf16.msra.mxu0 %v5828
  %6072 = vmatprep.subr.bf16.mxu0 0
  %6073 = vmatpush1.bf16.msra.mxu0 %v5829
  %6074 = vmatprep.subr.bf16.mxu0 0
  %6075 = vmatpush1.bf16.msra.mxu0 %v5830
  %6076 = vmatprep.subr.bf16.mxu0 0
  %6077 = vmatpush1.bf16.msra.mxu0 %v5831
  %6078 = vmatprep.subr.bf16.mxu0 0
  %6079 = vmatpush1.bf16.msra.mxu0 %v5832
  %6080 = vmatprep.subr.bf16.mxu0 0
  %6081 = vmatpush1.bf16.msra.mxu0 %v5833
  %6082 = vmatprep.subr.bf16.mxu0 0
  %6083 = vmatpush1.bf16.msra.mxu0 %v5834
  %6084 = vmatprep.mubr.bf16.mxu0 %v5531
  %6085 = vmatmul.mubr.bf16.gmra.mrb[0].mxu0 %v5530
  %v6086 = vpop.f32.mrb[0].mxu0
  %v6087 = vadd.f32 %v5902, %v6086
  %v6088 = vpop.f32.mrb[0].mxu0
  %v6089 = vpop.f32.mrb[0].mxu0
  %v6090 = vadd.f32 %v5905, %v6089
  %v6091 = vpop.f32.mrb[0].mxu0
  %6092 = vmatprep.mubr.bf16.mxu0 %v5535
  %6093 = vmatmul.mubr.bf16.gmra.mrb[0].mxu0 %v5534
  %v6094 = vpop.f32.mrb[0].mxu0
  %v6095 = vadd.f32 %v5910, %v6094
  %v6096 = vpop.f32.mrb[0].mxu0
  %v6097 = vpop.f32.mrb[0].mxu0
  %v6098 = vadd.f32 %v5913, %v6097
  %v6099 = vpop.f32.mrb[0].mxu0
  %6100 = vmatprep.mubr.bf16.mxu0 %v5539
  %6101 = vmatmul.mubr.bf16.gmra.mrb[0].mxu0 %v5538
  %v6102 = vpop.f32.mrb[0].mxu0
  %v6103 = vadd.f32 %v5918, %v6102
  %v6104 = vpop.f32.mrb[0].mxu0
  %v6105 = vpop.f32.mrb[0].mxu0
  %v6106 = vadd.f32 %v5921, %v6105
  %v6107 = vpop.f32.mrb[0].mxu0
  %6108 = vmatprep.mubr.bf16.mxu0 %v5543
  %6109 = vmatmul.mubr.bf16.gmra.mrb[0].mxu0 %v5542
  %v6110 = vpop.f32.mrb[0].mxu0
  %v6111 = vadd.f32 %v5926, %v6110
  %v6112 = vpop.f32.mrb[0].mxu0
  %v6113 = vpop.f32.mrb[0].mxu0
  %v6114 = vadd.f32 %v5929, %v6113
  %v6115 = vpop.f32.mrb[0].mxu0
  %6116 = vmatprep.mubr.bf16.mxu0 %v5547
  %6117 = vmatmul.mubr.bf16.gmra.mrb[0].mxu0 %v5546
  %v6118 = vpop.f32.mrb[0].mxu0
  %v6119 = vadd.f32 %v5934, %v6118
  %v6120 = vpop.f32.mrb[0].mxu0
  %v6121 = vpop.f32.mrb[0].mxu0
  %v6122 = vadd.f32 %v5937, %v6121
  %v6123 = vpop.f32.mrb[0].mxu0
  %6124 = vmatprep.mubr.bf16.mxu0 %v5551
  %6125 = vmatmul.mubr.bf16.gmra.mrb[0].mxu0 %v5550
  %v6126 = vpop.f32.mrb[0].mxu0
  %v6127 = vadd.f32 %v5942, %v6126
  %v6128 = vpop.f32.mrb[0].mxu0
  %v6129 = vpop.f32.mrb[0].mxu0
  %v6130 = vadd.f32 %v5945, %v6129
  %v6131 = vpop.f32.mrb[0].mxu0
  %6132 = vmatprep.mubr.bf16.mxu0 %v5555
  %6133 = vmatmul.mubr.bf16.gmra.mrb[0].mxu0 %v5554
  %v6134 = vpop.f32.mrb[0].mxu0
  %v6135 = vadd.f32 %v5950, %v6134
  %v6136 = vpop.f32.mrb[0].mxu0
  %v6137 = vpop.f32.mrb[0].mxu0
  %v6138 = vadd.f32 %v5953, %v6137
  %v6139 = vpop.f32.mrb[0].mxu0
  %6140 = vmatprep.mubr.bf16.mxu0 %v5559
  %6141 = vmatmul.mubr.bf16.gmra.mrb[0].mxu0 %v5558
  %v6142 = vpop.f32.mrb[0].mxu0
  %v6143 = vadd.f32 %v5958, %v6142
  %v6144 = vpop.f32.mrb[0].mxu0
  %v6145 = vpop.f32.mrb[0].mxu0
  %v6146 = vadd.f32 %v5961, %v6145
  %v6147 = vpop.f32.mrb[0].mxu0
  %6148 = vmatprep.mubr.bf16.mxu0 %v5563
  %6149 = vmatmul.mubr.bf16.gmra.mrb[0].mxu0 %v5562
  %v6150 = vpop.f32.mrb[0].mxu0
  %v6151 = vadd.f32 %v5966, %v6150
  %v6152 = vpop.f32.mrb[0].mxu0
  %v6153 = vpop.f32.mrb[0].mxu0
  %v6154 = vadd.f32 %v5969, %v6153
  %v6155 = vpop.f32.mrb[0].mxu0
  %6156 = vmatprep.mubr.bf16.mxu0 %v5567
  %6157 = vmatmul.mubr.bf16.gmra.mrb[0].mxu0 %v5566
  %v6158 = vpop.f32.mrb[0].mxu0
  %v6159 = vadd.f32 %v5974, %v6158
  %v6160 = vpop.f32.mrb[0].mxu0
  %v6161 = vpop.f32.mrb[0].mxu0
  %v6162 = vadd.f32 %v5977, %v6161
  %v6163 = vpop.f32.mrb[0].mxu0
  %6164 = vmatprep.mubr.bf16.mxu0 %v5571
  %6165 = vmatmul.mubr.bf16.gmra.mrb[0].mxu0 %v5570
  %v6166 = vpop.f32.mrb[0].mxu0
  %v6167 = vadd.f32 %v5982, %v6166
  %v6168 = vpop.f32.mrb[0].mxu0
  %v6169 = vpop.f32.mrb[0].mxu0
  %v6170 = vadd.f32 %v5985, %v6169
  %v6171 = vpop.f32.mrb[0].mxu0
  %6172 = vmatprep.mubr.bf16.mxu0 %v5575
  %6173 = vmatmul.mubr.bf16.gmra.mrb[0].mxu0 %v5574
  %v6174 = vpop.f32.mrb[0].mxu0
  %v6175 = vadd.f32 %v5990, %v6174
  %v6176 = vpop.f32.mrb[0].mxu0
  %v6177 = vpop.f32.mrb[0].mxu0
  %v6178 = vadd.f32 %v5993, %v6177
  %v6179 = vpop.f32.mrb[0].mxu0
  %6180 = vmatprep.mubr.bf16.mxu0 %v5579
  %6181 = vmatmul.mubr.bf16.gmra.mrb[0].mxu0 %v5578
  %v6182 = vpop.f32.mrb[0].mxu0
  %v6183 = vadd.f32 %v5998, %v6182
  %v6184 = vpop.f32.mrb[0].mxu0
  %v6185 = vpop.f32.mrb[0].mxu0
  %v6186 = vadd.f32 %v6001, %v6185
  %v6187 = vpop.f32.mrb[0].mxu0
  %6188 = vmatprep.mubr.bf16.mxu0 %v5583
  %6189 = vmatmul.mubr.bf16.gmra.mrb[0].mxu0 %v5582
  %v6190 = vpop.f32.mrb[0].mxu0
  %v6191 = vadd.f32 %v6006, %v6190
  %v6192 = vpop.f32.mrb[0].mxu0
  %v6193 = vpop.f32.mrb[0].mxu0
  %v6194 = vadd.f32 %v6009, %v6193
  %v6195 = vpop.f32.mrb[0].mxu0
  %6196 = vmatprep.mubr.bf16.mxu0 %v5587
  %6197 = vmatmul.mubr.bf16.gmra.mrb[0].mxu0 %v5586
  %v6198 = vpop.f32.mrb[0].mxu0
  %v6199 = vadd.f32 %v6014, %v6198
  %v6200 = vpop.f32.mrb[0].mxu0
  %v6201 = vpop.f32.mrb[0].mxu0
  %v6202 = vadd.f32 %v6017, %v6201
  %v6203 = vpop.f32.mrb[0].mxu0
  %6204 = vmatprep.mubr.bf16.mxu0 %v5591
  %6205 = vmatmul.mubr.bf16.gmra.mrb[0].mxu0 %v5590
  %v6206 = vpop.f32.mrb[0].mxu0
  %v6207 = vadd.f32 %v6022, %v6206
  %v6208 = vpop.f32.mrb[0].mxu0
  %v6209 = vpop.f32.mrb[0].mxu0
  %v6210 = vadd.f32 %v6025, %v6209
  %v6211 = vpop.f32.mrb[0].mxu0
  %6212 = vmatprep.mubr.bf16.mxu0 %v5595
  %6213 = vmatmul.mubr.bf16.gmra.mrb[0].mxu0 %v5594
  %v6214 = vpop.f32.mrb[0].mxu0
  %v6215 = vadd.f32 %v6030, %v6214
  %v6216 = vpop.f32.mrb[0].mxu0
  %v6217 = vpop.f32.mrb[0].mxu0
  %v6218 = vadd.f32 %v6033, %v6217
  %v6219 = vpop.f32.mrb[0].mxu0
  %6220 = vmatprep.mubr.bf16.mxu0 %v5599
  %6221 = vmatmul.mubr.bf16.gmra.mrb[0].mxu0 %v5598
  %v6222 = vpop.f32.mrb[0].mxu0
  %v6223 = vadd.f32 %v6038, %v6222
  %v6224 = vpop.f32.mrb[0].mxu0
  %v6225 = vpop.f32.mrb[0].mxu0
  %v6226 = vadd.f32 %v6041, %v6225
  %v6227 = vpop.f32.mrb[0].mxu0
  %6228 = vmatprep.mubr.bf16.mxu0 %v5603
  %6229 = vmatmul.mubr.bf16.gmra.mrb[0].mxu0 %v5602
  %v6230 = vpop.f32.mrb[0].mxu0
  %v6231 = vadd.f32 %v6046, %v6230
  %v6232 = vpop.f32.mrb[0].mxu0
  %v6233 = vpop.f32.mrb[0].mxu0
  %v6234 = vadd.f32 %v6049, %v6233
  %v6235 = vpop.f32.mrb[0].mxu0
  %6236 = vdwg.mxu0
  %6237 = vst [vmem:[%s7] sm:$0xff] %v6087
  %6238 = vst [vmem:[%s7 + $0x8] sm:$0xff] %v6090
  %6239 = vst [vmem:[%s7 + $0x10] sm:$0xff] %v6095
  %6240 = vst [vmem:[%s7 + $0x18] sm:$0xff] %v6098
  %6241 = vst [vmem:[%s7 + $0x20] sm:$0xff] %v6103
  %6242 = vst [vmem:[%s7 + $0x28] sm:$0xff] %v6106
  %6243 = vst [vmem:[%s7 + $0x30] sm:$0xff] %v6111
  %6244 = vst [vmem:[%s7 + $0x38] sm:$0xff] %v6114
  %6245 = vst [vmem:[%s7 + $0x40] sm:$0xff] %v6119
  %6246 = vst [vmem:[%s7 + $0x48] sm:$0xff] %v6122
  %6247 = vst [vmem:[%s7 + $0x50] sm:$0xff] %v6127
  %6248 = vst [vmem:[%s7 + $0x58] sm:$0xff] %v6130
  %6249 = vst [vmem:[%s7 + $0x60] sm:$0xff] %v6135
  %6250 = vst [vmem:[%s7 + $0x68] sm:$0xff] %v6138
  %6251 = vst [vmem:[%s7 + $0x70] sm:$0xff] %v6143
  %6252 = vst [vmem:[%s7 + $0x78] sm:$0xff] %v6146
  %6253 = vst [vmem:[%s7 + $0x80] sm:$0xff] %v6151
  %6254 = vst [vmem:[%s7 + $0x88] sm:$0xff] %v6154
  %6255 = vst [vmem:[%s7 + $0x90] sm:$0xff] %v6159
  %6256 = vst [vmem:[%s7 + $0x98] sm:$0xff] %v6162
  %6257 = vst [vmem:[%s7 + $0xa0] sm:$0xff] %v6167
  %6258 = vst [vmem:[%s7 + $0xa8] sm:$0xff] %v6170
  %6259 = vst [vmem:[%s7 + $0xb0] sm:$0xff] %v6175
  %6260 = vst [vmem:[%s7 + $0xb8] sm:$0xff] %v6178
  %6261 = vst [vmem:[%s7 + $0xc0] sm:$0xff] %v6183
  %6262 = vst [vmem:[%s7 + $0xc8] sm:$0xff] %v6186
  %6263 = vst [vmem:[%s7 + $0xd0] sm:$0xff] %v6191
  %6264 = vst [vmem:[%s7 + $0xd8] sm:$0xff] %v6194
  %6265 = vst [vmem:[%s7 + $0xe0] sm:$0xff] %v6199
  %6266 = vst [vmem:[%s7 + $0xe8] sm:$0xff] %v6202
  %6267 = vst [vmem:[%s7 + $0xf0] sm:$0xff] %v6207
  %6268 = vst [vmem:[%s7 + $0xf8] sm:$0xff] %v6210
  %6269 = vst [vmem:[%s7 + $0x100] sm:$0xff] %v6215
  %6270 = vst [vmem:[%s7 + $0x108] sm:$0xff] %v6218
  %6271 = vst [vmem:[%s7 + $0x110] sm:$0xff] %v6223
  %6272 = vst [vmem:[%s7 + $0x118] sm:$0xff] %v6226
  %6273 = vst [vmem:[%s7 + $0x120] sm:$0xff] %v6231
  %6274 = vst [vmem:[%s7 + $0x128] sm:$0xff] %v6234
  // Predicated region
  $region30: #{neural_net_forward.1} parent=0 // pred_check
    _
  $region31: #{neural_net_forward.1} parent=0 // pred_check_branch
    %6276 = sbr.rel (0) target = $region33
  $region32: #{neural_net_forward.1} parent=0 // pred_region
    _
  $region33: #{neural_net_forward.1} parent=0 // pred_fallthru
    _
  // Predicated region
  $region34: #{neural_net_forward.1} parent=0 // pred_check
    _
  $region35: #{neural_net_forward.1} parent=0 // pred_check_branch
    %6278 = sbr.rel (0) target = $region37
  $region36: #{neural_net_forward.1} parent=0 // pred_region
    _
  $region37: #{neural_net_forward.1} parent=0 // pred_fallthru
    _

</llo_original>
